<compile_context>
chip_gen: v6e
topology: v6e:2x2x1
jax: 0.10.0
libtpu: 0.0.40
codegen_flags: <defaults>
</compile_context>

<pallas_src>
import functools
import math

import jax
import jax.numpy as jnp
from jax.experimental import pallas as pl
from jax.experimental.pallas import tpu as pltpu


# ----------------------------- activations -----------------------------------
def _expm1_safe(y):
    # exp(y) - 1 without cancellation for small |y| (3rd-order Taylor branch);
    # avoids relying on a dedicated expm1 lowering inside the kernel.
    taylor = y * (1.0 + 0.5 * y * (1.0 + y * (1.0 / 3.0)))
    return jnp.where(jnp.abs(y) < 0.2, taylor, jnp.exp(y) - 1.0)


def _apply_activation(y, activation, leaky_relu_slope=0.6):
    """Activations from get_activation(); works in f32 or bf16."""
    if activation == "relu":
        return jnp.maximum(y, 0.0)
    if activation in ("elu", "celu"):          # both alpha = 1.0 by default
        return jnp.where(y > 0, y, _expm1_safe(y))
    if activation == "leaky_relu":
        return jnp.where(y > 0, y, leaky_relu_slope * y)
    if activation == "selu":
        alpha, scale = 1.6732632423543772, 1.0507009873554805
        return scale * jnp.where(y > 0, y, alpha * _expm1_safe(y))
    if activation == "tanh":
        return jnp.tanh(y)
    if activation == "sigmoid":
        return jax.nn.sigmoid(y)
    if activation == "softsign":
        return y / (1.0 + jnp.abs(y))
    if activation == "tanhshrink":
        return y - jnp.tanh(y)
    if activation == "hardshrink":
        return jnp.where(jnp.abs(y) > 0.5, y, 0.0)
    # TODO(synk): PReLU / RReLU carry learnable / random state - not wired up.
    raise NotImplementedError(activation)


# ----------------------------- kernel building blocks -------------------------
def _layer(h, w_val, activation, epilogue_dtype):
    """One Linear(bias=False)+activation: bf16 MXU operands, f32 accumulation."""
    z = jnp.dot(h.astype(w_val.dtype), w_val, preferred_element_type=jnp.float32)
    return _apply_activation(z.astype(epilogue_dtype), activation)


def _final_store(h, wl_ref, out_ref, *, scale, full_activ, final_actv,
                 transposed_out):
    wl = wl_ref[...]
    if transposed_out:
        # (d_out, TILE_M): born lane-dense on the MXU -> unmasked lane-dense
        # stores for narrow d_out (incl. d_out == 1); wrapper transposes back.
        z = jax.lax.dot_general(wl, h.astype(wl.dtype),
                                dimension_numbers=(((0,), (1,)), ((), ())),
                                preferred_element_type=jnp.float32)
    else:
        z = jnp.dot(h.astype(wl.dtype), wl, preferred_element_type=jnp.float32)
    if scale != 1.0:
        z = z * scale
    if full_activ:
        z = _apply_activation(z, final_actv)   # final epilogue kept f32
    out_ref[...] = z.astype(out_ref.dtype)


def _mlp_resident_kernel(*refs, num_layer, activation, final_actv, full_activ,
                         scale, transposed_out, epilogue_dtype):
    """refs = (x, W1, Wh_0..Wh_{L-1}, Wl, out). All weights resident in VMEM."""
    x_ref = refs[0]
    w1_ref = refs[1]
    wh_refs = refs[2:2 + num_layer]
    wl_ref = refs[2 + num_layer]
    out_ref = refs[3 + num_layer]

    h = _layer(x_ref[...], w1_ref[...], activation, epilogue_dtype)  # in-kernel x cast
    for wr in wh_refs:
        h = _layer(h, wr[...], activation, epilogue_dtype)
    _final_store(h, wl_ref, out_ref, scale=scale, full_activ=full_activ,
                 final_actv=final_actv, transposed_out=transposed_out)


def _mlp_streamed_kernel(*refs, num_layer, activation, final_actv, full_activ,
                         scale, transposed_out, epilogue_dtype):
    """Same network, but the Wh_i blocks live in HBM (pl.ANY) and are streamed
    through a 2-slot VMEM buffer with manual double-buffered DMA. Used when the
    resident-weight footprint would exceed VMEM (notably v7x's 64 MiB/TC)."""
    x_ref = refs[0]
    w1_ref = refs[1]
    wh_hbm = refs[2:2 + num_layer]
    wl_ref = refs[2 + num_layer]
    out_ref = refs[3 + num_layer]
    wh_buf = refs[4 + num_layer]            # VMEM (2, H, H) bf16
    sem = refs[5 + num_layer]               # DMA sems (2,)

    copies = [pltpu.make_async_copy(wh_hbm[i], wh_buf.at[i & 1], sem.at[i & 1])
              for i in range(num_layer)]
    if num_layer:
        copies[0].start()

    h = _layer(x_ref[...], w1_ref[...], activation, epilogue_dtype)
    for i in range(num_layer):              # statically unrolled
        copies[i].wait()
        if i + 1 < num_layer:
            copies[i + 1].start()           # prefetch next layer into other slot
        h = _layer(h, wh_buf[i & 1], activation, epilogue_dtype)

    _final_store(h, wl_ref, out_ref, scale=scale, full_activ=full_activ,
                 final_actv=final_actv, transposed_out=transposed_out)


# ----------------------------- wrapper ----------------------------------------
def _device_traits():
    try:
        kind = jax.devices()[0].device_kind.lower()
    except Exception:
        kind = ""
    is_v7 = "v7" in kind
    modern = is_v7 or ("v6" in kind)        # bf16 VPU/EUP, 256-wide MXU
    vmem_cap = (64 if is_v7 else 128) << 20
    return modern, vmem_cap


def prepare_params(params):
    """Convert the weights to bf16 ONCE, outside the per-forward path."""
    def to_bf16(w):
        return w if w.dtype == jnp.bfloat16 else w.astype(jnp.bfloat16)
    return {"w1": to_bf16(params["w1"]),
            "wh": [to_bf16(w) for w in params["wh"]],
            "wl": to_bf16(params["wl"])}


def fully_connected_forward(x, params, *, activation="celu", final_actv="celu",
                            full_activ=True, reduction="mean",
                            force_streamed=False):
    """Forward of Fully_connected (bias=False). x: (B, input_dim) f32.

    params: {"w1": (D_in, H), "wh": [(H, H)] * num_layer, "wl": (H, D_out)},
    ideally already bf16 via prepare_params().
    NOTE: the PyTorch code compares `reduction is 'mean'`; treated here as ==.
    """
    def to_bf16(w):
        return w if w.dtype == jnp.bfloat16 else w.astype(jnp.bfloat16)
    w1 = to_bf16(params["w1"])
    whs = [to_bf16(w) for w in params["wh"]]
    wl = to_bf16(params["wl"])

    num_layer = len(whs)
    d_in, hidden = w1.shape
    d_out = wl.shape[1]
    B = x.shape[0]

    modern, vmem_cap = _device_traits()
    # v5e has no bf16 VPU/EUP path -> keep the activation epilogue in f32 there.
    epilogue_dtype = jnp.bfloat16 if modern else jnp.float32

    # Batch tiling: weights resident across grid steps, batch tiles in parallel.
    Bp0 = pl.cdiv(B, 128) * 128
    if modern:
        # Bigger M tile amortizes MXU fill/drain + per-step overhead on v6e/v7x,
        # but keep >= 2 grid steps so both v7x TensorCores get work.
        TILE_M = max(128, min(512, ((Bp0 // 2) // 128) * 128))
    else:
        TILE_M = 128
    Bp = pl.cdiv(B, TILE_M) * TILE_M
    # Padded rows are zeros; they flow through the activations harmlessly and
    # are sliced off below.
    x_in = x if Bp == B else jnp.pad(x, ((0, Bp - B), (0, 0)))
    grid = (Bp // TILE_M,)

    scale = (1.0 / hidden) if reduction == "mean" else 1.0
    transposed_out = d_out < 128            # lane-dense store for narrow outputs

    # Resident vs streamed hidden-layer weights (v7x: only 64 MiB VMEM per TC).
    def footprint(streamed):
        wbytes = 2 * (d_in * hidden + hidden * d_out)          # W1 + Wl (bf16)
        wbytes += (2 * 2 * hidden * hidden) if streamed else (2 * num_layer * hidden * hidden)
        io = 2 * TILE_M * d_in * 4 + 2 * TILE_M * max(d_out, 1) * 4
        act = 6 * TILE_M * hidden * 4
        return wbytes + io + act

    use_streamed = bool(force_streamed) or (
        num_layer > 0
        and footprint(False) > int(0.70 * vmem_cap)
        and footprint(True) <= int(0.80 * vmem_cap))
    # TODO(synk): configs where even one double-buffered (H,H) bf16 block does
    # not fit (H >~ 4k on v7x) would need K-chunked weight streaming.
    vmem_limit = int(min(0.90 * vmem_cap,
                         max(32 << 20, 2 * footprint(use_streamed) + (8 << 20))))

    if transposed_out:
        out_shape = jax.ShapeDtypeStruct((d_out, Bp), jnp.float32)
        out_spec = pl.BlockSpec((d_out, TILE_M), lambda i: (0, i))
    else:
        out_shape = jax.ShapeDtypeStruct((Bp, d_out), jnp.float32)
        out_spec = pl.BlockSpec((TILE_M, d_out), lambda i: (i, 0))

    kern_fn = _mlp_streamed_kernel if use_streamed else _mlp_resident_kernel
    kernel = functools.partial(
        kern_fn, num_layer=num_layer, activation=activation,
        final_actv=final_actv, full_activ=full_activ, scale=scale,
        transposed_out=transposed_out, epilogue_dtype=epilogue_dtype)

    def run(single_buffer_weights):
        def wspec(shape):
            # Constant-index (revisited) weight blocks: the 2nd pipeline buffer
            # is pure VMEM waste -> single-buffer when the API supports it.
            if single_buffer_weights:
                return pl.BlockSpec(shape, lambda i: (0,) * len(shape),
                                    pipeline_mode=pl.Buffered(1))
            return pl.BlockSpec(shape, lambda i: (0,) * len(shape))

        in_specs = [pl.BlockSpec((TILE_M, d_in), lambda i: (i, 0)),  # x (f32)
                    wspec((d_in, hidden))]                           # W1 resident
        if use_streamed:
            in_specs += [pl.BlockSpec(memory_space=pl.ANY) for _ in whs]
            scratch = [pltpu.VMEM((2, hidden, hidden), jnp.bfloat16),
                       pltpu.SemaphoreType.DMA((2,))]
        else:
            in_specs += [wspec((hidden, hidden)) for _ in whs]
            scratch = []
        in_specs.append(wspec((hidden, d_out)))                      # Wl resident

        return pl.pallas_call(
            kernel,
            out_shape=out_shape,
            grid_spec=pltpu.PrefetchScalarGridSpec(
                num_scalar_prefetch=0,
                grid=grid,
                in_specs=in_specs,
                out_specs=out_spec,
                scratch_shapes=scratch),
            compiler_params=pltpu.CompilerParams(
                dimension_semantics=("parallel",),
                vmem_limit_bytes=vmem_limit),
        )(x_in, w1, *whs, wl)

    try:
        out = run(single_buffer_weights=True)
    except Exception:
        # Older jax without BlockSpec(pipeline_mode=...) -> default buffering.
        out = run(single_buffer_weights=False)

    if transposed_out:
        return out[:, :B].T
    return out[:B]


# ----------------------------- pure-JAX reference -----------------------------
def reference_forward(x, params, *, activation="celu", final_actv="celu",
                      full_activ=True, reduction="mean"):
    h = _apply_activation(jnp.dot(x, params["w1"]), activation)
    for w in params["wh"]:
        h = _apply_activation(jnp.dot(h, w), activation)
    z = jnp.dot(h, params["wl"])
    if reduction == "mean":
        z = z / params["w1"].shape[1]
    if full_activ:
        z = _apply_activation(z, final_actv)
    return z


# ----------------------------------- main --------------------------------------
if __name__ == "__main__":
    # Small shapes consistent with the module (bias=False MLP, output_dim=1).
    batch, input_dim, hidden_dim, output_dim, num_layer = 256, 64, 128, 1, 2
    activation = final_actv = "celu"

    key = jax.random.PRNGKey(0)
    ks = jax.random.split(key, 3 + num_layer)

    def init_linear(k, fan_in, fan_out):
        bound = 1.0 / math.sqrt(fan_in)     # PyTorch nn.Linear default init range
        return jax.random.uniform(k, (fan_in, fan_out), jnp.float32, -bound, bound)

    params = {
        "w1": init_linear(ks[0], input_dim, hidden_dim),
        "wh": [init_linear(ks[1 + i], hidden_dim, hidden_dim)
               for i in range(num_layer)],
        "wl": init_linear(ks[1 + num_layer], hidden_dim, output_dim),
    }
    x = jax.random.normal(ks[2 + num_layer], (batch, input_dim), jnp.float32)

    prepared = prepare_params(params)        # bf16 weight cast happens ONCE here
    ref = reference_forward(x, params, activation=activation,
                            final_actv=final_actv)

    # Fast path: all weights resident in VMEM.
    out = jax.block_until_ready(
        fully_connected_forward(x, prepared, activation=activation,
                                final_actv=final_actv))
    assert out.shape == (batch, output_dim), out.shape
    assert jnp.all(jnp.isfinite(out))
    err = float(jnp.max(jnp.abs(out - ref)))
    assert jnp.allclose(out, ref, atol=3e-3, rtol=3e-2), err

    # Streamed-weight fallback (normally only for huge hidden/num_layer on
    # v7x's 64 MiB VMEM) -- forced here so the path is compiled and verified.
    out_s = jax.block_until_ready(
        fully_connected_forward(x, prepared, activation=activation,
                                final_actv=final_actv, force_streamed=True))
    assert jnp.allclose(out_s, ref, atol=3e-3, rtol=3e-2)

    # Non-multiple-of-tile batch exercises the pad + tail-slice path.
    x2 = x[:200]
    out2 = jax.block_until_ready(
        fully_connected_forward(x2, prepared, activation=activation,
                                final_actv=final_actv))
    ref2 = reference_forward(x2, params, activation=activation,
                             final_actv=final_actv)
    assert out2.shape == (200, output_dim)
    assert jnp.allclose(out2, ref2, atol=3e-3, rtol=3e-2)

    print("KERNEL_OK")
</pallas_src>

<mosaic_0001>
module attributes {stable_mosaic.version = 11 : i64} {
  func.func @_mlp_resident_kernel(%arg0: i32, %arg1: memref<128x64xf32, #tpu.memory_space<vmem>>, %arg2: memref<64x128xbf16, #tpu.memory_space<vmem>>, %arg3: memref<128x128xbf16, #tpu.memory_space<vmem>>, %arg4: memref<128x128xbf16, #tpu.memory_space<vmem>>, %arg5: memref<128x1xbf16, #tpu.memory_space<vmem>>, %arg6: memref<1x128xf32, #tpu.memory_space<vmem>>) attributes {dimension_semantics = [#tpu.dimension_semantics<parallel>], iteration_bounds = array<i64: 2>, scalar_prefetch = 0 : i64, scratch_operands = 0 : i64, tpu.core_type = #tpu.core_type<tc>, window_params = [{transform_indices = @transform_0, window_bounds = array<i64: 128, 64>}, {pipeline_mode = #tpu.pipeline_mode<synchronous>, transform_indices = @transform_1, window_bounds = array<i64: 64, 128>}, {pipeline_mode = #tpu.pipeline_mode<synchronous>, transform_indices = @transform_2, window_bounds = array<i64: 128, 128>}, {pipeline_mode = #tpu.pipeline_mode<synchronous>, transform_indices = @transform_3, window_bounds = array<i64: 128, 128>}, {pipeline_mode = #tpu.pipeline_mode<synchronous>, transform_indices = @transform_4, window_bounds = array<i64: 128, 1>}, {transform_indices = @transform_5, window_bounds = array<i64: 1, 128>}]} {
    %c0 = arith.constant 0 : index
    %c0_0 = arith.constant 0 : index
    %0 = vector.load %arg1[%c0, %c0_0] : memref<128x64xf32, #tpu.memory_space<vmem>>, vector<128x64xf32>
    %c0_1 = arith.constant 0 : index
    %c0_2 = arith.constant 0 : index
    %1 = vector.load %arg2[%c0_1, %c0_2] : memref<64x128xbf16, #tpu.memory_space<vmem>>, vector<64x128xbf16>
    %2 = arith.truncf %0 : vector<128x64xf32> to vector<128x64xbf16>
    %cst = arith.constant dense<0.000000e+00> : vector<128x128xf32>
    %3 = tpu.matmul %2, %1, %cst {dimension_numbers = #tpu.dot_dimension_numbers<[1], [0], [0], [1], [0, 0, 1, 1], [], []>} : vector<128x64xbf16>, vector<64x128xbf16>, vector<128x128xf32> -> vector<128x128xf32>
    %cst_3 = arith.constant 0.000000e+00 : f32
    %4 = vector.broadcast %cst_3 : f32 to vector<128x128xf32>
    %5 = arith.cmpf ogt, %3, %4 : vector<128x128xf32>
    %cst_4 = arith.constant 5.000000e-01 : f32
    %6 = vector.broadcast %cst_4 : f32 to vector<128x128xf32>
    %7 = arith.mulf %6, %3 : vector<128x128xf32>
    %cst_5 = arith.constant 0.333333343 : f32
    %8 = vector.broadcast %cst_5 : f32 to vector<128x128xf32>
    %9 = arith.mulf %3, %8 : vector<128x128xf32>
    %cst_6 = arith.constant 1.000000e+00 : f32
    %10 = vector.broadcast %cst_6 : f32 to vector<128x128xf32>
    %11 = arith.addf %10, %9 : vector<128x128xf32>
    %12 = arith.mulf %7, %11 : vector<128x128xf32>
    %cst_7 = arith.constant 1.000000e+00 : f32
    %13 = vector.broadcast %cst_7 : f32 to vector<128x128xf32>
    %14 = arith.addf %13, %12 : vector<128x128xf32>
    %15 = arith.mulf %3, %14 : vector<128x128xf32>
    %16 = math.absf %3 : vector<128x128xf32>
    %cst_8 = arith.constant 2.000000e-01 : f32
    %17 = vector.broadcast %cst_8 : f32 to vector<128x128xf32>
    %18 = arith.cmpf olt, %16, %17 : vector<128x128xf32>
    %19 = math.exp %3 : vector<128x128xf32>
    %cst_9 = arith.constant 1.000000e+00 : f32
    %20 = vector.broadcast %cst_9 : f32 to vector<128x128xf32>
    %21 = arith.subf %19, %20 : vector<128x128xf32>
    %22 = arith.select %18, %15, %21 : vector<128x128xi1>, vector<128x128xf32>
    %23 = arith.select %5, %3, %22 : vector<128x128xi1>, vector<128x128xf32>
    %c0_10 = arith.constant 0 : index
    %c0_11 = arith.constant 0 : index
    %24 = vector.load %arg3[%c0_10, %c0_11] : memref<128x128xbf16, #tpu.memory_space<vmem>>, vector<128x128xbf16>
    %25 = arith.truncf %23 : vector<128x128xf32> to vector<128x128xbf16>
    %cst_12 = arith.constant dense<0.000000e+00> : vector<128x128xf32>
    %26 = tpu.matmul %25, %24, %cst_12 {dimension_numbers = #tpu.dot_dimension_numbers<[1], [0], [0], [1], [0, 0, 1, 1], [], []>} : vector<128x128xbf16>, vector<128x128xbf16>, vector<128x128xf32> -> vector<128x128xf32>
    %cst_13 = arith.constant 0.000000e+00 : f32
    %27 = vector.broadcast %cst_13 : f32 to vector<128x128xf32>
    %28 = arith.cmpf ogt, %26, %27 : vector<128x128xf32>
    %cst_14 = arith.constant 5.000000e-01 : f32
    %29 = vector.broadcast %cst_14 : f32 to vector<128x128xf32>
    %30 = arith.mulf %29, %26 : vector<128x128xf32>
    %cst_15 = arith.constant 0.333333343 : f32
    %31 = vector.broadcast %cst_15 : f32 to vector<128x128xf32>
    %32 = arith.mulf %26, %31 : vector<128x128xf32>
    %cst_16 = arith.constant 1.000000e+00 : f32
    %33 = vector.broadcast %cst_16 : f32 to vector<128x128xf32>
    %34 = arith.addf %33, %32 : vector<128x128xf32>
    %35 = arith.mulf %30, %34 : vector<128x128xf32>
    %cst_17 = arith.constant 1.000000e+00 : f32
    %36 = vector.broadcast %cst_17 : f32 to vector<128x128xf32>
    %37 = arith.addf %36, %35 : vector<128x128xf32>
    %38 = arith.mulf %26, %37 : vector<128x128xf32>
    %39 = math.absf %26 : vector<128x128xf32>
    %cst_18 = arith.constant 2.000000e-01 : f32
    %40 = vector.broadcast %cst_18 : f32 to vector<128x128xf32>
    %41 = arith.cmpf olt, %39, %40 : vector<128x128xf32>
    %42 = math.exp %26 : vector<128x128xf32>
    %cst_19 = arith.constant 1.000000e+00 : f32
    %43 = vector.broadcast %cst_19 : f32 to vector<128x128xf32>
    %44 = arith.subf %42, %43 : vector<128x128xf32>
    %45 = arith.select %41, %38, %44 : vector<128x128xi1>, vector<128x128xf32>
    %46 = arith.select %28, %26, %45 : vector<128x128xi1>, vector<128x128xf32>
    %c0_20 = arith.constant 0 : index
    %c0_21 = arith.constant 0 : index
    %47 = vector.load %arg4[%c0_20, %c0_21] : memref<128x128xbf16, #tpu.memory_space<vmem>>, vector<128x128xbf16>
    %48 = arith.truncf %46 : vector<128x128xf32> to vector<128x128xbf16>
    %cst_22 = arith.constant dense<0.000000e+00> : vector<128x128xf32>
    %49 = tpu.matmul %48, %47, %cst_22 {dimension_numbers = #tpu.dot_dimension_numbers<[1], [0], [0], [1], [0, 0, 1, 1], [], []>} : vector<128x128xbf16>, vector<128x128xbf16>, vector<128x128xf32> -> vector<128x128xf32>
    %cst_23 = arith.constant 0.000000e+00 : f32
    %50 = vector.broadcast %cst_23 : f32 to vector<128x128xf32>
    %51 = arith.cmpf ogt, %49, %50 : vector<128x128xf32>
    %cst_24 = arith.constant 5.000000e-01 : f32
    %52 = vector.broadcast %cst_24 : f32 to vector<128x128xf32>
    %53 = arith.mulf %52, %49 : vector<128x128xf32>
    %cst_25 = arith.constant 0.333333343 : f32
    %54 = vector.broadcast %cst_25 : f32 to vector<128x128xf32>
    %55 = arith.mulf %49, %54 : vector<128x128xf32>
    %cst_26 = arith.constant 1.000000e+00 : f32
    %56 = vector.broadcast %cst_26 : f32 to vector<128x128xf32>
    %57 = arith.addf %56, %55 : vector<128x128xf32>
    %58 = arith.mulf %53, %57 : vector<128x128xf32>
    %cst_27 = arith.constant 1.000000e+00 : f32
    %59 = vector.broadcast %cst_27 : f32 to vector<128x128xf32>
    %60 = arith.addf %59, %58 : vector<128x128xf32>
    %61 = arith.mulf %49, %60 : vector<128x128xf32>
    %62 = math.absf %49 : vector<128x128xf32>
    %cst_28 = arith.constant 2.000000e-01 : f32
    %63 = vector.broadcast %cst_28 : f32 to vector<128x128xf32>
    %64 = arith.cmpf olt, %62, %63 : vector<128x128xf32>
    %65 = math.exp %49 : vector<128x128xf32>
    %cst_29 = arith.constant 1.000000e+00 : f32
    %66 = vector.broadcast %cst_29 : f32 to vector<128x128xf32>
    %67 = arith.subf %65, %66 : vector<128x128xf32>
    %68 = arith.select %64, %61, %67 : vector<128x128xi1>, vector<128x128xf32>
    %69 = arith.select %51, %49, %68 : vector<128x128xi1>, vector<128x128xf32>
    %c0_30 = arith.constant 0 : index
    %c0_31 = arith.constant 0 : index
    %70 = vector.load %arg5[%c0_30, %c0_31] : memref<128x1xbf16, #tpu.memory_space<vmem>>, vector<128x1xbf16>
    %71 = arith.truncf %69 : vector<128x128xf32> to vector<128x128xbf16>
    %cst_32 = arith.constant dense<0.000000e+00> : vector<1x128xf32>
    %72 = tpu.matmul %70, %71, %cst_32 {dimension_numbers = #tpu.dot_dimension_numbers<[0], [1], [1], [0], [0, 1, 1, 0], [], []>} : vector<128x1xbf16>, vector<128x128xbf16>, vector<1x128xf32> -> vector<1x128xf32>
    %cst_33 = arith.constant 7.812500e-03 : f32
    %73 = vector.broadcast %cst_33 : f32 to vector<1x128xf32>
    %74 = arith.mulf %72, %73 : vector<1x128xf32>
    %cst_34 = arith.constant 0.000000e+00 : f32
    %75 = vector.broadcast %cst_34 : f32 to vector<1x128xf32>
    %76 = arith.cmpf ogt, %74, %75 : vector<1x128xf32>
    %cst_35 = arith.constant 5.000000e-01 : f32
    %77 = vector.broadcast %cst_35 : f32 to vector<1x128xf32>
    %78 = arith.mulf %77, %74 : vector<1x128xf32>
    %cst_36 = arith.constant 0.333333343 : f32
    %79 = vector.broadcast %cst_36 : f32 to vector<1x128xf32>
    %80 = arith.mulf %74, %79 : vector<1x128xf32>
    %cst_37 = arith.constant 1.000000e+00 : f32
    %81 = vector.broadcast %cst_37 : f32 to vector<1x128xf32>
    %82 = arith.addf %81, %80 : vector<1x128xf32>
    %83 = arith.mulf %78, %82 : vector<1x128xf32>
    %cst_38 = arith.constant 1.000000e+00 : f32
    %84 = vector.broadcast %cst_38 : f32 to vector<1x128xf32>
    %85 = arith.addf %84, %83 : vector<1x128xf32>
    %86 = arith.mulf %74, %85 : vector<1x128xf32>
    %87 = math.absf %74 : vector<1x128xf32>
    %cst_39 = arith.constant 2.000000e-01 : f32
    %88 = vector.broadcast %cst_39 : f32 to vector<1x128xf32>
    %89 = arith.cmpf olt, %87, %88 : vector<1x128xf32>
    %90 = math.exp %74 : vector<1x128xf32>
    %cst_40 = arith.constant 1.000000e+00 : f32
    %91 = vector.broadcast %cst_40 : f32 to vector<1x128xf32>
    %92 = arith.subf %90, %91 : vector<1x128xf32>
    %93 = arith.select %89, %86, %92 : vector<1x128xi1>, vector<1x128xf32>
    %94 = arith.select %76, %74, %93 : vector<1x128xi1>, vector<1x128xf32>
    %c0_41 = arith.constant 0 : index
    %c0_42 = arith.constant 0 : index
    %95 = vector.load %arg6[%c0_41, %c0_42] : memref<1x128xf32, #tpu.memory_space<vmem>>, vector<1x128xf32>
    tpu.vector_store %arg6[%c0_41, %c0_42], %94 {strides = array<i32>} : memref<1x128xf32, #tpu.memory_space<vmem>>, vector<1x128xf32>,
    return
  }
  func.func @transform_0(%arg0: i32) -> (i32, i32) {
    %c0_i32 = arith.constant 0 : i32
    %c0_i32_0 = arith.constant 0 : i32
    return %arg0, %c0_i32 : i32, i32
  }
  func.func @transform_1(%arg0: i32) -> (i32, i32) {
    %c0_i32 = arith.constant 0 : i32
    %c0_i32_0 = arith.constant 0 : i32
    %c0_i32_1 = arith.constant 0 : i32
    return %c0_i32, %c0_i32_0 : i32, i32
  }
  func.func @transform_2(%arg0: i32) -> (i32, i32) {
    %c0_i32 = arith.constant 0 : i32
    %c0_i32_0 = arith.constant 0 : i32
    %c0_i32_1 = arith.constant 0 : i32
    return %c0_i32, %c0_i32_0 : i32, i32
  }
  func.func @transform_3(%arg0: i32) -> (i32, i32) {
    %c0_i32 = arith.constant 0 : i32
    %c0_i32_0 = arith.constant 0 : i32
    %c0_i32_1 = arith.constant 0 : i32
    return %c0_i32, %c0_i32_0 : i32, i32
  }
  func.func @transform_4(%arg0: i32) -> (i32, i32) {
    %c0_i32 = arith.constant 0 : i32
    %c0_i32_0 = arith.constant 0 : i32
    %c0_i32_1 = arith.constant 0 : i32
    return %c0_i32, %c0_i32_0 : i32, i32
  }
  func.func @transform_5(%arg0: i32) -> (i32, i32) {
    %c0_i32 = arith.constant 0 : i32
    %c0_i32_0 = arith.constant 0 : i32
    return %c0_i32, %arg0 : i32, i32
  }
}

module attributes {stable_mosaic.version = 11 : i64} {
  func.func @_mlp_resident_kernel(%arg0: i32, %arg1: memref<128x64xf32, #tpu.memory_space<vmem>>, %arg2: memref<64x128xbf16, #tpu.memory_space<vmem>>, %arg3: memref<128x128xbf16, #tpu.memory_space<vmem>>, %arg4: memref<128x128xbf16, #tpu.memory_space<vmem>>, %arg5: memref<128x1xbf16, #tpu.memory_space<vmem>>, %arg6: memref<1x128xf32, #tpu.memory_space<vmem>>) attributes {dimension_semantics = [#tpu.dimension_semantics<parallel>], iteration_bounds = array<i64: 2>, scalar_prefetch = 0 : i64, scratch_operands = 0 : i64, tpu.core_type = #tpu.core_type<tc>, window_params = [{transform_indices = @transform_0, window_bounds = array<i64: 128, 64>}, {pipeline_mode = #tpu.pipeline_mode<synchronous>, transform_indices = @transform_1, window_bounds = array<i64: 64, 128>}, {pipeline_mode = #tpu.pipeline_mode<synchronous>, transform_indices = @transform_2, window_bounds = array<i64: 128, 128>}, {pipeline_mode = #tpu.pipeline_mode<synchronous>, transform_indices = @transform_3, window_bounds = array<i64: 128, 128>}, {pipeline_mode = #tpu.pipeline_mode<synchronous>, transform_indices = @transform_4, window_bounds = array<i64: 128, 1>}, {transform_indices = @transform_5, window_bounds = array<i64: 1, 128>}]} {
    %c0 = arith.constant 0 : index
    %c0_0 = arith.constant 0 : index
    %0 = vector.load %arg1[%c0, %c0_0] : memref<128x64xf32, #tpu.memory_space<vmem>>, vector<128x64xf32>
    %c0_1 = arith.constant 0 : index
    %c0_2 = arith.constant 0 : index
    %1 = vector.load %arg2[%c0_1, %c0_2] : memref<64x128xbf16, #tpu.memory_space<vmem>>, vector<64x128xbf16>
    %2 = arith.truncf %0 : vector<128x64xf32> to vector<128x64xbf16>
    %cst = arith.constant dense<0.000000e+00> : vector<128x128xf32>
    %3 = tpu.matmul %2, %1, %cst {dimension_numbers = #tpu.dot_dimension_numbers<[1], [0], [0], [1], [0, 0, 1, 1], [], []>} : vector<128x64xbf16>, vector<64x128xbf16>, vector<128x128xf32> -> vector<128x128xf32>
    %cst_3 = arith.constant 0.000000e+00 : f32
    %4 = vector.broadcast %cst_3 : f32 to vector<128x128xf32>
    %5 = arith.cmpf ogt, %3, %4 : vector<128x128xf32>
    %cst_4 = arith.constant 5.000000e-01 : f32
    %6 = vector.broadcast %cst_4 : f32 to vector<128x128xf32>
    %7 = arith.mulf %6, %3 : vector<128x128xf32>
    %cst_5 = arith.constant 0.333333343 : f32
    %8 = vector.broadcast %cst_5 : f32 to vector<128x128xf32>
    %9 = arith.mulf %3, %8 : vector<128x128xf32>
    %cst_6 = arith.constant 1.000000e+00 : f32
    %10 = vector.broadcast %cst_6 : f32 to vector<128x128xf32>
    %11 = arith.addf %10, %9 : vector<128x128xf32>
    %12 = arith.mulf %7, %11 : vector<128x128xf32>
    %cst_7 = arith.constant 1.000000e+00 : f32
    %13 = vector.broadcast %cst_7 : f32 to vector<128x128xf32>
    %14 = arith.addf %13, %12 : vector<128x128xf32>
    %15 = arith.mulf %3, %14 : vector<128x128xf32>
    %16 = math.absf %3 : vector<128x128xf32>
    %cst_8 = arith.constant 2.000000e-01 : f32
    %17 = vector.broadcast %cst_8 : f32 to vector<128x128xf32>
    %18 = arith.cmpf olt, %16, %17 : vector<128x128xf32>
    %19 = math.exp %3 : vector<128x128xf32>
    %cst_9 = arith.constant 1.000000e+00 : f32
    %20 = vector.broadcast %cst_9 : f32 to vector<128x128xf32>
    %21 = arith.subf %19, %20 : vector<128x128xf32>
    %22 = arith.select %18, %15, %21 : vector<128x128xi1>, vector<128x128xf32>
    %23 = arith.select %5, %3, %22 : vector<128x128xi1>, vector<128x128xf32>
    %c0_10 = arith.constant 0 : index
    %c0_11 = arith.constant 0 : index
    %24 = vector.load %arg3[%c0_10, %c0_11] : memref<128x128xbf16, #tpu.memory_space<vmem>>, vector<128x128xbf16>
    %25 = arith.truncf %23 : vector<128x128xf32> to vector<128x128xbf16>
    %cst_12 = arith.constant dense<0.000000e+00> : vector<128x128xf32>
    %26 = tpu.matmul %25, %24, %cst_12 {dimension_numbers = #tpu.dot_dimension_numbers<[1], [0], [0], [1], [0, 0, 1, 1], [], []>} : vector<128x128xbf16>, vector<128x128xbf16>, vector<128x128xf32> -> vector<128x128xf32>
    %cst_13 = arith.constant 0.000000e+00 : f32
    %27 = vector.broadcast %cst_13 : f32 to vector<128x128xf32>
    %28 = arith.cmpf ogt, %26, %27 : vector<128x128xf32>
    %cst_14 = arith.constant 5.000000e-01 : f32
    %29 = vector.broadcast %cst_14 : f32 to vector<128x128xf32>
    %30 = arith.mulf %29, %26 : vector<128x128xf32>
    %cst_15 = arith.constant 0.333333343 : f32
    %31 = vector.broadcast %cst_15 : f32 to vector<128x128xf32>
    %32 = arith.mulf %26, %31 : vector<128x128xf32>
    %cst_16 = arith.constant 1.000000e+00 : f32
    %33 = vector.broadcast %cst_16 : f32 to vector<128x128xf32>
    %34 = arith.addf %33, %32 : vector<128x128xf32>
    %35 = arith.mulf %30, %34 : vector<128x128xf32>
    %cst_17 = arith.constant 1.000000e+00 : f32
    %36 = vector.broadcast %cst_17 : f32 to vector<128x128xf32>
    %37 = arith.addf %36, %35 : vector<128x128xf32>
    %38 = arith.mulf %26, %37 : vector<128x128xf32>
    %39 = math.absf %26 : vector<128x128xf32>
    %cst_18 = arith.constant 2.000000e-01 : f32
    %40 = vector.broadcast %cst_18 : f32 to vector<128x128xf32>
    %41 = arith.cmpf olt, %39, %40 : vector<128x128xf32>
    %42 = math.exp %26 : vector<128x128xf32>
    %cst_19 = arith.constant 1.000000e+00 : f32
    %43 = vector.broadcast %cst_19 : f32 to vector<128x128xf32>
    %44 = arith.subf %42, %43 : vector<128x128xf32>
    %45 = arith.select %41, %38, %44 : vector<128x128xi1>, vector<128x128xf32>
    %46 = arith.select %28, %26, %45 : vector<128x128xi1>, vector<128x128xf32>
    %c0_20 = arith.constant 0 : index
    %c0_21 = arith.constant 0 : index
    %47 = vector.load %arg4[%c0_20, %c0_21] : memref<128x128xbf16, #tpu.memory_space<vmem>>, vector<128x128xbf16>
    %48 = arith.truncf %46 : vector<128x128xf32> to vector<128x128xbf16>
    %cst_22 = arith.constant dense<0.000000e+00> : vector<128x128xf32>
    %49 = tpu.matmul %48, %47, %cst_22 {dimension_numbers = #tpu.dot_dimension_numbers<[1], [0], [0], [1], [0, 0, 1, 1], [], []>} : vector<128x128xbf16>, vector<128x128xbf16>, vector<128x128xf32> -> vector<128x128xf32>
    %cst_23 = arith.constant 0.000000e+00 : f32
    %50 = vector.broadcast %cst_23 : f32 to vector<128x128xf32>
    %51 = arith.cmpf ogt, %49, %50 : vector<128x128xf32>
    %cst_24 = arith.constant 5.000000e-01 : f32
    %52 = vector.broadcast %cst_24 : f32 to vector<128x128xf32>
    %53 = arith.mulf %52, %49 : vector<128x128xf32>
    %cst_25 = arith.constant 0.333333343 : f32
    %54 = vector.broadcast %cst_25 : f32 to vector<128x128xf32>
    %55 = arith.mulf %49, %54 : vector<128x128xf32>
    %cst_26 = arith.constant 1.000000e+00 : f32
    %56 = vector.broadcast %cst_26 : f32 to vector<128x128xf32>
    %57 = arith.addf %56, %55 : vector<128x128xf32>
    %58 = arith.mulf %53, %57 : vector<128x128xf32>
    %cst_27 = arith.constant 1.000000e+00 : f32
    %59 = vector.broadcast %cst_27 : f32 to vector<128x128xf32>
    %60 = arith.addf %59, %58 : vector<128x128xf32>
    %61 = arith.mulf %49, %60 : vector<128x128xf32>
    %62 = math.absf %49 : vector<128x128xf32>
    %cst_28 = arith.constant 2.000000e-01 : f32
    %63 = vector.broadcast %cst_28 : f32 to vector<128x128xf32>
    %64 = arith.cmpf olt, %62, %63 : vector<128x128xf32>
    %65 = math.exp %49 : vector<128x128xf32>
    %cst_29 = arith.constant 1.000000e+00 : f32
    %66 = vector.broadcast %cst_29 : f32 to vector<128x128xf32>
    %67 = arith.subf %65, %66 : vector<128x128xf32>
    %68 = arith.select %64, %61, %67 : vector<128x128xi1>, vector<128x128xf32>
    %69 = arith.select %51, %49, %68 : vector<128x128xi1>, vector<128x128xf32>
    %c0_30 = arith.constant 0 : index
    %c0_31 = arith.constant 0 : index
    %70 = vector.load %arg5[%c0_30, %c0_31] : memref<128x1xbf16, #tpu.memory_space<vmem>>, vector<128x1xbf16>
    %71 = arith.truncf %69 : vector<128x128xf32> to vector<128x128xbf16>
    %cst_32 = arith.constant dense<0.000000e+00> : vector<1x128xf32>
    %72 = tpu.matmul %70, %71, %cst_32 {dimension_numbers = #tpu.dot_dimension_numbers<[0], [1], [1], [0], [0, 1, 1, 0], [], []>} : vector<128x1xbf16>, vector<128x128xbf16>, vector<1x128xf32> -> vector<1x128xf32>
    %cst_33 = arith.constant 7.812500e-03 : f32
    %73 = vector.broadcast %cst_33 : f32 to vector<1x128xf32>
    %74 = arith.mulf %72, %73 : vector<1x128xf32>
    %cst_34 = arith.constant 0.000000e+00 : f32
    %75 = vector.broadcast %cst_34 : f32 to vector<1x128xf32>
    %76 = arith.cmpf ogt, %74, %75 : vector<1x128xf32>
    %cst_35 = arith.constant 5.000000e-01 : f32
    %77 = vector.broadcast %cst_35 : f32 to vector<1x128xf32>
    %78 = arith.mulf %77, %74 : vector<1x128xf32>
    %cst_36 = arith.constant 0.333333343 : f32
    %79 = vector.broadcast %cst_36 : f32 to vector<1x128xf32>
    %80 = arith.mulf %74, %79 : vector<1x128xf32>
    %cst_37 = arith.constant 1.000000e+00 : f32
    %81 = vector.broadcast %cst_37 : f32 to vector<1x128xf32>
    %82 = arith.addf %81, %80 : vector<1x128xf32>
    %83 = arith.mulf %78, %82 : vector<1x128xf32>
    %cst_38 = arith.constant 1.000000e+00 : f32
    %84 = vector.broadcast %cst_38 : f32 to vector<1x128xf32>
    %85 = arith.addf %84, %83 : vector<1x128xf32>
    %86 = arith.mulf %74, %85 : vector<1x128xf32>
    %87 = math.absf %74 : vector<1x128xf32>
    %cst_39 = arith.constant 2.000000e-01 : f32
    %88 = vector.broadcast %cst_39 : f32 to vector<1x128xf32>
    %89 = arith.cmpf olt, %87, %88 : vector<1x128xf32>
    %90 = math.exp %74 : vector<1x128xf32>
    %cst_40 = arith.constant 1.000000e+00 : f32
    %91 = vector.broadcast %cst_40 : f32 to vector<1x128xf32>
    %92 = arith.subf %90, %91 : vector<1x128xf32>
    %93 = arith.select %89, %86, %92 : vector<1x128xi1>, vector<1x128xf32>
    %94 = arith.select %76, %74, %93 : vector<1x128xi1>, vector<1x128xf32>
    %c0_41 = arith.constant 0 : index
    %c0_42 = arith.constant 0 : index
    %95 = vector.load %arg6[%c0_41, %c0_42] : memref<1x128xf32, #tpu.memory_space<vmem>>, vector<1x128xf32>
    tpu.vector_store %arg6[%c0_41, %c0_42], %94 {strides = array<i32>} : memref<1x128xf32, #tpu.memory_space<vmem>>, vector<1x128xf32>,
    return
  }
  func.func @transform_0(%arg0: i32) -> (i32, i32) {
    %c0_i32 = arith.constant 0 : i32
    %c0_i32_0 = arith.constant 0 : i32
    return %arg0, %c0_i32 : i32, i32
  }
  func.func @transform_1(%arg0: i32) -> (i32, i32) {
    %c0_i32 = arith.constant 0 : i32
    %c0_i32_0 = arith.constant 0 : i32
    %c0_i32_1 = arith.constant 0 : i32
    return %c0_i32, %c0_i32_0 : i32, i32
  }
  func.func @transform_2(%arg0: i32) -> (i32, i32) {
    %c0_i32 = arith.constant 0 : i32
    %c0_i32_0 = arith.constant 0 : i32
    %c0_i32_1 = arith.constant 0 : i32
    return %c0_i32, %c0_i32_0 : i32, i32
  }
  func.func @transform_3(%arg0: i32) -> (i32, i32) {
    %c0_i32 = arith.constant 0 : i32
    %c0_i32_0 = arith.constant 0 : i32
    %c0_i32_1 = arith.constant 0 : i32
    return %c0_i32, %c0_i32_0 : i32, i32
  }
  func.func @transform_4(%arg0: i32) -> (i32, i32) {
    %c0_i32 = arith.constant 0 : i32
    %c0_i32_0 = arith.constant 0 : i32
    %c0_i32_1 = arith.constant 0 : i32
    return %c0_i32, %c0_i32_0 : i32, i32
  }
  func.func @transform_5(%arg0: i32) -> (i32, i32) {
    %c0_i32 = arith.constant 0 : i32
    %c0_i32_0 = arith.constant 0 : i32
    return %c0_i32, %arg0 : i32, i32
  }
}

</mosaic_0001>

<llo_original>
// kernel: tpu_custom_call.1
$region0: #{tpu_custom_call.1}
  #allocation0 [shape = 'u32[]', space=smem, size = 0x4, offset = 0x4, fixed_abs, tag = 'smem constant byte address 0x4 - core index']
  #allocation1 [shape = 'u32[144,128]{1,0:T(1,128)}', space=vmem, size = 0x12000, scoped, tag = 'internal scratch']
  %s0 = inlined_call_operand.vmem [shape: f32[256,64], index: 0, kind: input, shape index: {}]
  %s1 = inlined_call_operand.vmem [shape: bf16[64,128], index: 1, kind: input, shape index: {}]
  %s2 = inlined_call_operand.vmem [shape: bf16[128,128], index: 2, kind: input, shape index: {}]
  %s3 = inlined_call_operand.vmem [shape: bf16[128,128], index: 3, kind: input, shape index: {}]
  %s4 = inlined_call_operand.vmem [shape: bf16[128,1], index: 4, kind: input, shape index: {}]
  %s5 = inlined_call_operand.hbm [shape: f32[1,256], index: 5, kind: output, shape index: {}]
  %s6 = sld [smem:[#allocation0]]
  $region53: #{tpu_custom_call.1} parent=0
    _
  %s8 = ssub.s32 1, %s6
  %s9 = scalar_select 0, %s8, %s6
  $region1: #{tpu_custom_call.1} parent=0
    #allocation2 [shape = 'u8[1024]{0}', space=vmem, size = 0x400, scoped, tag = 'output window, operand 0']
    #allocation3 [shape = 's32[2]{0}', space=sflag, size = 0x8, scoped, tag = 'scoped memory for tpu_custom_call.1']
    %10 = vsyncpa [#allocation3], 0
    %s11 = scalar_lea.sflag [#allocation3], 1
    %12 = vsyncpa %s11, 0
    loop: start=0, step=1, limit=4
    $region2: #{tpu_custom_call.1} parent=1 // loop_pre_header
      _
    $region3: #{tpu_custom_call.1} parent=1 // loop_header
      %s14 = sphi 0, %s18
      %p15 = scmp.ge.s32.totalorder %s14, 4
      %s24 = sphi 0, %s26
      %s27 = sphi 0, %s24
      %s28 = sphi 0, %s27
      %s44 = sphi 0, %s28
      %s48 = sphi 0, %s48
      %s50 = sphi 0, %s48
      %s51 = sphi 0, %s50
      %s65 = sphi 0, %s51
      %s69 = sphi 0, %s69
      %s71 = sphi 0, %s69
      %s72 = sphi 0, %s71
      %s86 = sphi 0, %s72
      %s90 = sphi 0, %s90
      %s92 = sphi 0, %s90
      %s93 = sphi 0, %s92
      %s107 = sphi 0, %s93
      %s111 = sphi 0, %s111
      %s113 = sphi 0, %s111
      %s114 = sphi 0, %s113
      %s128 = sphi 0, %s114
      %s134 = sphi 0, %s136
      %s137 = sphi 0, %s134
      %s138 = sphi 0, %s137
      %s154 = sphi 0, %s138
    $region4: #{tpu_custom_call.1} parent=1 // loop_header_branch
      %17 = sbr.rel (%p15) target = $region8
    $region5: #{tpu_custom_call.1} parent=1 // loop_body
      %s19 = ssub.s32 %s14, 1
      %s20 = ssub.s32 %s14, 2
      %s21 = sadd.s32 %s14, 1
      %s22 = ssub.s32 %s14, %s21
      %p23 = scmp.eq.s32.totalorder %s22, 0
      %s25 = sadd.s32 %s24, 1
      %s26 = scalar_select %p23, %s24, %s25
      %p29 = pneg %p23
      %p30 = scmp.eq.s32.totalorder %s14, 1
      %p31 = por %p29, %p30
      %p32 = scmp.ne.s32.totalorder %s24, %s27
      %p33 = scmp.eq.s32.totalorder %s14, 0
      %p34 = por %p32, %p33
      %p35 = scmp.ne.s32.totalorder %s24, %s27
      %p36 = scmp.eq.s32.totalorder %s19, 1
      %p37 = por %p35, %p36
      %p38 = scmp.ne.s32.totalorder %s27, %s28
      %p39 = scmp.eq.s32.totalorder %s19, 0
      %p40 = por %p38, %p39
      %p41 = scmp.ne.s32.totalorder %s27, %s28
      %p42 = scmp.eq.s32.totalorder %s20, 1
      %p43 = por %p41, %p42
      %p45 = scmp.ne.s32.totalorder %s28, %s44
      %p46 = scmp.eq.s32.totalorder %s20, 0
      %p47 = por %p45, %p46
      %s49 = sadd.s32 %s48, 1
      %p52 = scmp.eq.s32.totalorder %s14, 1
      %p53 = scmp.ne.s32.totalorder %s48, %s50
      %p54 = scmp.eq.s32.totalorder %s14, 0
      %p55 = por %p53, %p54
      %p56 = scmp.ne.s32.totalorder %s48, %s50
      %p57 = scmp.eq.s32.totalorder %s19, 1
      %p58 = por %p56, %p57
      %p59 = scmp.ne.s32.totalorder %s50, %s51
      %p60 = scmp.eq.s32.totalorder %s19, 0
      %p61 = por %p59, %p60
      %p62 = scmp.ne.s32.totalorder %s50, %s51
      %p63 = scmp.eq.s32.totalorder %s20, 1
      %p64 = por %p62, %p63
      %p66 = scmp.ne.s32.totalorder %s51, %s65
      %p67 = scmp.eq.s32.totalorder %s20, 0
      %p68 = por %p66, %p67
      %s70 = sadd.s32 %s69, 1
      %p73 = scmp.eq.s32.totalorder %s14, 1
      %p74 = scmp.ne.s32.totalorder %s69, %s71
      %p75 = scmp.eq.s32.totalorder %s14, 0
      %p76 = por %p74, %p75
      %p77 = scmp.ne.s32.totalorder %s69, %s71
      %p78 = scmp.eq.s32.totalorder %s19, 1
      %p79 = por %p77, %p78
      %p80 = scmp.ne.s32.totalorder %s71, %s72
      %p81 = scmp.eq.s32.totalorder %s19, 0
      %p82 = por %p80, %p81
      %p83 = scmp.ne.s32.totalorder %s71, %s72
      %p84 = scmp.eq.s32.totalorder %s20, 1
      %p85 = por %p83, %p84
      %p87 = scmp.ne.s32.totalorder %s72, %s86
      %p88 = scmp.eq.s32.totalorder %s20, 0
      %p89 = por %p87, %p88
      %s91 = sadd.s32 %s90, 1
      %p94 = scmp.eq.s32.totalorder %s14, 1
      %p95 = scmp.ne.s32.totalorder %s90, %s92
      %p96 = scmp.eq.s32.totalorder %s14, 0
      %p97 = por %p95, %p96
      %p98 = scmp.ne.s32.totalorder %s90, %s92
      %p99 = scmp.eq.s32.totalorder %s19, 1
      %p100 = por %p98, %p99
      %p101 = scmp.ne.s32.totalorder %s92, %s93
      %p102 = scmp.eq.s32.totalorder %s19, 0
      %p103 = por %p101, %p102
      %p104 = scmp.ne.s32.totalorder %s92, %s93
      %p105 = scmp.eq.s32.totalorder %s20, 1
      %p106 = por %p104, %p105
      %p108 = scmp.ne.s32.totalorder %s93, %s107
      %p109 = scmp.eq.s32.totalorder %s20, 0
      %p110 = por %p108, %p109
      %s112 = sadd.s32 %s111, 1
      %p115 = scmp.eq.s32.totalorder %s14, 1
      %p116 = scmp.ne.s32.totalorder %s111, %s113
      %p117 = scmp.eq.s32.totalorder %s14, 0
      %p118 = por %p116, %p117
      %p119 = scmp.ne.s32.totalorder %s111, %s113
      %p120 = scmp.eq.s32.totalorder %s19, 1
      %p121 = por %p119, %p120
      %p122 = scmp.ne.s32.totalorder %s113, %s114
      %p123 = scmp.eq.s32.totalorder %s19, 0
      %p124 = por %p122, %p123
      %p125 = scmp.ne.s32.totalorder %s113, %s114
      %p126 = scmp.eq.s32.totalorder %s20, 1
      %p127 = por %p125, %p126
      %p129 = scmp.ne.s32.totalorder %s114, %s128
      %p130 = scmp.eq.s32.totalorder %s20, 0
      %p131 = por %p129, %p130
      %s132 = ssub.s32 %s14, %s21
      %p133 = scmp.eq.s32.totalorder %s132, 0
      %s135 = sadd.s32 %s134, 1
      %s136 = scalar_select %p133, %s134, %s135
      %p139 = pneg %p133
      %p140 = scmp.eq.s32.totalorder %s14, 1
      %p141 = por %p139, %p140
      %p142 = scmp.ne.s32.totalorder %s134, %s137
      %p143 = scmp.eq.s32.totalorder %s14, 0
      %p144 = por %p142, %p143
      %p145 = scmp.ne.s32.totalorder %s134, %s137
      %p146 = scmp.eq.s32.totalorder %s19, 1
      %p147 = por %p145, %p146
      %p148 = scmp.ne.s32.totalorder %s137, %s138
      %p149 = scmp.eq.s32.totalorder %s19, 0
      %p150 = por %p148, %p149
      %p151 = scmp.ne.s32.totalorder %s137, %s138
      %p152 = scmp.eq.s32.totalorder %s20, 1
      %p153 = por %p151, %p152
      %p155 = scmp.ne.s32.totalorder %s138, %s154
      %p156 = scmp.eq.s32.totalorder %s20, 0
      %p157 = por %p155, %p156
      %p158 = scmp.le.s32.totalorder 1, %s14
      %p159 = scmp.lt.s32.totalorder %s14, 3
      %p160 = pnand %p158, %p159
      %p161 = pneg %p160
      // Predicated region
      $region9: #{tpu_custom_call.1} parent=5 // pred_check
        _
      $region10: #{tpu_custom_call.1} parent=5 // pred_check_branch
        %163 = sbr.rel (%p160) target = $region12
      $region11: #{tpu_custom_call.1} parent=5 // pred_region
        %s164 = ssub.s32 %s14, 1
        // Predicated region
        $region13: #{tpu_custom_call.1} parent=11 // pred_check
          %p165 = pneg %p61
        $region14: #{tpu_custom_call.1} parent=11 // pred_check_branch
          %167 = sbr.rel (%p165) target = $region16
        $region15: #{tpu_custom_call.1} parent=11 // pred_region
          _
        $region16: #{tpu_custom_call.1} parent=11 // pred_fallthru
          _
        // Predicated region
        $region17: #{tpu_custom_call.1} parent=11 // pred_check
          %p168 = pneg %p82
        $region18: #{tpu_custom_call.1} parent=11 // pred_check_branch
          %170 = sbr.rel (%p168) target = $region20
        $region19: #{tpu_custom_call.1} parent=11 // pred_region
          _
        $region20: #{tpu_custom_call.1} parent=11 // pred_fallthru
          _
        // Predicated region
        $region21: #{tpu_custom_call.1} parent=11 // pred_check
          %p171 = pneg %p103
        $region22: #{tpu_custom_call.1} parent=11 // pred_check_branch
          %173 = sbr.rel (%p171) target = $region24
        $region23: #{tpu_custom_call.1} parent=11 // pred_region
          _
        $region24: #{tpu_custom_call.1} parent=11 // pred_fallthru
          _
        // Predicated region
        $region25: #{tpu_custom_call.1} parent=11 // pred_check
          %p174 = pneg %p124
        $region26: #{tpu_custom_call.1} parent=11 // pred_check_branch
          %176 = sbr.rel (%p174) target = $region28
        $region27: #{tpu_custom_call.1} parent=11 // pred_region
          _
        $region28: #{tpu_custom_call.1} parent=11 // pred_fallthru
          _
      $region12: #{tpu_custom_call.1} parent=5 // pred_fallthru
        _
      %p177 = scmp.lt.s32.totalorder %s14, 2
      // Predicated region
      $region29: #{tpu_custom_call.1} parent=5 // pred_check
        %p178 = pneg %p177
      $region30: #{tpu_custom_call.1} parent=5 // pred_check_branch
        %180 = sbr.rel (%p178) target = $region32
      $region31: #{tpu_custom_call.1} parent=5 // pred_region
        // Predicated region
        $region33: #{tpu_custom_call.1} parent=31 // pred_check
          %p181 = pneg %p34
        $region34: #{tpu_custom_call.1} parent=31 // pred_check_branch
          %183 = sbr.rel (%p181) target = $region36
        $region35: #{tpu_custom_call.1} parent=31 // pred_region
          %s184 = smul.u32 16, %s14
          %p185 = scmp.lt.s32.totalorder %s184, 31
          %s186 = scalar_select %p185, %s184, 31
          %s187 = smul.addr %s186, 8
          %s188 = scalar_lea.vmem %s0, %s187
          %s189 = smul.u32 16, %s14
        $region36: #{tpu_custom_call.1} parent=31 // pred_fallthru
          _
      $region32: #{tpu_custom_call.1} parent=5 // pred_fallthru
        _
      %p190 = scmp.le.s32.totalorder 1, %s14
      %p191 = scmp.lt.s32.totalorder %s14, 3
      %p192 = pnand %p190, %p191
      %p193 = pneg %p192
      // Predicated region
      $region37: #{tpu_custom_call.1} parent=5 // pred_check
        _
      $region38: #{tpu_custom_call.1} parent=5 // pred_check_branch
        %195 = sbr.rel (%p192) target = $region40
      $region39: #{tpu_custom_call.1} parent=5 // pred_region
        %s196 = ssub.s32 %s14, 1
        %s197 = smul.u32 16, %s19
        %p198 = scmp.lt.s32.totalorder %s197, 31
        %s199 = scalar_select %p198, %s197, 31
        %s200 = smul.addr %s199, 8
        %s201 = scalar_lea.vmem %s0, %s200
        %p202 = pneg %p40
        %p203 = pneg %p37
        %p204 = pneg %p61
        %p205 = pneg %p58
        %p206 = pneg %p82
        %p207 = pneg %p79
        %p208 = pneg %p103
        %p209 = pneg %p100
        %p210 = pneg %p124
        %p211 = pneg %p121
        %p212 = pneg %p150
        %p213 = pneg %p147
        %s214 = sand.u32 %s137, 1
        %s215 = scalar_lea.sflag [#allocation3], %s214
        %s216 = sand.u32 %s137, 1
        %s217 = scalar_lea.vmem [#allocation2], %s216
        %s218 = smul.u32 16, %s19
        %p219 = scmp.lt.s32.totalorder %s218, 31
        %s220 = scalar_select %p219, %s218, 31
        %s221 = smul.addr %s220, 8
        %s222 = scalar_lea.vmem %s0, %s221
        %s223 = smul.u32 16, %s19
        %v225 = vld [vmem:[%s222] sm:$0xff]
        %v226 = vld [vmem:[%s222 + $0x8] sm:$0xff]
        %v227 = vld [vmem:[%s222 + $0x10] sm:$0xff]
        %v228 = vld [vmem:[%s222 + $0x18] sm:$0xff]
        %v229 = vld [vmem:[%s222 + $0x20] sm:$0xff]
        %v230 = vld [vmem:[%s222 + $0x28] sm:$0xff]
        %v231 = vld [vmem:[%s222 + $0x30] sm:$0xff]
        %v232 = vld [vmem:[%s222 + $0x38] sm:$0xff]
        %v233 = vld [vmem:[%s222 + $0x40] sm:$0xff]
        %v234 = vld [vmem:[%s222 + $0x48] sm:$0xff]
        %v235 = vld [vmem:[%s222 + $0x50] sm:$0xff]
        %v236 = vld [vmem:[%s222 + $0x58] sm:$0xff]
        %v237 = vld [vmem:[%s222 + $0x60] sm:$0xff]
        %v238 = vld [vmem:[%s222 + $0x68] sm:$0xff]
        %v239 = vld [vmem:[%s222 + $0x70] sm:$0xff]
        %v240 = vld [vmem:[%s222 + $0x78] sm:$0xff]
        %v241 = vld [vmem:[%s1] sm:$0xf]
        %v242 = vld [vmem:[%s1 + $0x4] sm:$0xf]
        %v243 = vld [vmem:[%s1 + $0x8] sm:$0xf]
        %v244 = vld [vmem:[%s1 + $0xc] sm:$0xf]
        %v245 = vld [vmem:[%s1 + $0x10] sm:$0xf]
        %v246 = vld [vmem:[%s1 + $0x14] sm:$0xf]
        %v247 = vld [vmem:[%s1 + $0x18] sm:$0xf]
        %v248 = vld [vmem:[%s1 + $0x1c] sm:$0xf]
        %v249 = vpack.c.bf16 %v226, %v225
        %v250 = vpack.c.bf16 %v228, %v227
        %v251 = vpack.c.bf16 %v230, %v229
        %v252 = vpack.c.bf16 %v232, %v231
        %v253 = vpack.c.bf16 %v234, %v233
        %v254 = vpack.c.bf16 %v236, %v235
        %v255 = vpack.c.bf16 %v238, %v237
        %v256 = vpack.c.bf16 %v240, %v239
        %v265 = vunpack.c.l.b16 %v241
        %v266 = vunpack.c.l.b16 %v242
        %v267 = vunpack.c.l.b16 %v243
        %v268 = vunpack.c.l.b16 %v244
        %v269 = vunpack.c.l.b16 %v245
        %v270 = vunpack.c.l.b16 %v246
        %v271 = vunpack.c.l.b16 %v247
        %v272 = vunpack.c.l.b16 %v248
        %v273 = vpack.c.b16 %v266, %v265
        %v274 = vpack.c.b16 %v268, %v267
        %v275 = vpack.c.b16 %v270, %v269
        %v276 = vpack.c.b16 %v272, %v271
        %vm281 = vcmask 523264
        %v283 = vsel %vm281, %v249, 0
        %v286 = vsel %vm281, %v250, 0
        %v289 = vsel %vm281, %v251, 0
        %v292 = vsel %vm281, %v252, 0
        %v295 = vsel %vm281, %v253, 0
        %v298 = vsel %vm281, %v254, 0
        %v301 = vsel %vm281, %v255, 0
        %v304 = vsel %vm281, %v256, 0
        %306 = vmatprep.subr.bf16.mxu0 0
        %307 = vmatpush1.bf16.msra.mxu0 0
        %308 = vmatprep.subr.bf16.mxu0 0
        %309 = vmatpush1.bf16.msra.mxu0 0
        %310 = vmatprep.subr.bf16.mxu0 0
        %311 = vmatpush1.bf16.msra.mxu0 0
        %312 = vmatprep.subr.bf16.mxu0 0
        %313 = vmatpush1.bf16.msra.mxu0 0
        %314 = vmatprep.subr.bf16.mxu0 0
        %315 = vmatpush1.bf16.msra.mxu0 %v276
        %316 = vmatprep.subr.bf16.mxu0 0
        %317 = vmatpush1.bf16.msra.mxu0 %v275
        %318 = vmatprep.subr.bf16.mxu0 0
        %319 = vmatpush1.bf16.msra.mxu0 %v274
        %320 = vmatprep.subr.bf16.mxu0 0
        %321 = vmatpush1.bf16.msra.mxu0 %v273
        %322 = vmatprep.subr.bf16.mxu0 0
        %323 = vmatpush2.bf16.msra.mxu0 0
        %324 = vmatprep.subr.bf16.mxu0 0
        %325 = vmatpush2.bf16.msra.mxu0 0
        %326 = vmatprep.subr.bf16.mxu0 0
        %327 = vmatpush2.bf16.msra.mxu0 0
        %328 = vmatprep.subr.bf16.mxu0 0
        %329 = vmatpush2.bf16.msra.mxu0 0
        %330 = vmatprep.subr.bf16.mxu0 0
        %331 = vmatpush2.bf16.msra.mxu0 0
        %332 = vmatprep.subr.bf16.mxu0 0
        %333 = vmatpush2.bf16.msra.mxu0 0
        %334 = vmatprep.subr.bf16.mxu0 0
        %335 = vmatpush2.bf16.msra.mxu0 0
        %336 = vmatprep.subr.bf16.mxu0 0
        %337 = vmatpush2.bf16.msra.mxu0 0
        %338 = vmatprep.mubr.bf16.mxu0 0
        %339 = vmatmul.mubr.bf16.gmra.mxu0 %v283
        %v340 = vpop.f32.mrf.mxu0
        %v341 = vadd.f32 0.0, %v340
        %v342 = vpop.f32.mrf.mxu0
        %v343 = vpop.f32.mrf.mxu0
        %v344 = vadd.f32 0.0, %v343
        %v345 = vpop.f32.mrf.mxu0
        %346 = vmatprep.mubr.bf16.mxu0 0
        %347 = vmatmul.mubr.bf16.gmra.mxu0 %v286
        %v348 = vpop.f32.mrf.mxu0
        %v349 = vadd.f32 0.0, %v348
        %v350 = vpop.f32.mrf.mxu0
        %v351 = vpop.f32.mrf.mxu0
        %v352 = vadd.f32 0.0, %v351
        %v353 = vpop.f32.mrf.mxu0
        %354 = vmatprep.mubr.bf16.mxu0 0
        %355 = vmatmul.mubr.bf16.gmra.mxu0 %v289
        %v356 = vpop.f32.mrf.mxu0
        %v357 = vadd.f32 0.0, %v356
        %v358 = vpop.f32.mrf.mxu0
        %v359 = vpop.f32.mrf.mxu0
        %v360 = vadd.f32 0.0, %v359
        %v361 = vpop.f32.mrf.mxu0
        %362 = vmatprep.mubr.bf16.mxu0 0
        %363 = vmatmul.mubr.bf16.gmra.mxu0 %v292
        %v364 = vpop.f32.mrf.mxu0
        %v365 = vadd.f32 0.0, %v364
        %v366 = vpop.f32.mrf.mxu0
        %v367 = vpop.f32.mrf.mxu0
        %v368 = vadd.f32 0.0, %v367
        %v369 = vpop.f32.mrf.mxu0
        %370 = vmatprep.mubr.bf16.mxu0 0
        %371 = vmatmul.mubr.bf16.gmra.mxu0 %v295
        %v372 = vpop.f32.mrf.mxu0
        %v373 = vadd.f32 0.0, %v372
        %v374 = vpop.f32.mrf.mxu0
        %v375 = vpop.f32.mrf.mxu0
        %v376 = vadd.f32 0.0, %v375
        %v377 = vpop.f32.mrf.mxu0
        %378 = vmatprep.mubr.bf16.mxu0 0
        %379 = vmatmul.mubr.bf16.gmra.mxu0 %v298
        %v380 = vpop.f32.mrf.mxu0
        %v381 = vadd.f32 0.0, %v380
        %v382 = vpop.f32.mrf.mxu0
        %v383 = vpop.f32.mrf.mxu0
        %v384 = vadd.f32 0.0, %v383
        %v385 = vpop.f32.mrf.mxu0
        %386 = vmatprep.mubr.bf16.mxu0 0
        %387 = vmatmul.mubr.bf16.gmra.mxu0 %v301
        %v388 = vpop.f32.mrf.mxu0
        %v389 = vadd.f32 0.0, %v388
        %v390 = vpop.f32.mrf.mxu0
        %v391 = vpop.f32.mrf.mxu0
        %v392 = vadd.f32 0.0, %v391
        %v393 = vpop.f32.mrf.mxu0
        %394 = vmatprep.mubr.bf16.mxu0 0
        %395 = vmatmul.mubr.bf16.gmra.mxu0 %v304
        %v396 = vpop.f32.mrf.mxu0
        %v397 = vadd.f32 0.0, %v396
        %v398 = vpop.f32.mrf.mxu0
        %v399 = vpop.f32.mrf.mxu0
        %v400 = vadd.f32 0.0, %v399
        %v401 = vpop.f32.mrf.mxu0
        %402 = vdwg.mxu0
        %vm403 = vcmp.gt.f32.partialorder %v341, 0.0
        %vm404 = vcmp.gt.f32.partialorder %v344, 0.0
        %vm405 = vcmp.gt.f32.partialorder %v349, 0.0
        %vm406 = vcmp.gt.f32.partialorder %v352, 0.0
        %vm407 = vcmp.gt.f32.partialorder %v357, 0.0
        %vm408 = vcmp.gt.f32.partialorder %v360, 0.0
        %vm409 = vcmp.gt.f32.partialorder %v365, 0.0
        %vm410 = vcmp.gt.f32.partialorder %v368, 0.0
        %vm411 = vcmp.gt.f32.partialorder %v373, 0.0
        %vm412 = vcmp.gt.f32.partialorder %v376, 0.0
        %vm413 = vcmp.gt.f32.partialorder %v381, 0.0
        %vm414 = vcmp.gt.f32.partialorder %v384, 0.0
        %vm415 = vcmp.gt.f32.partialorder %v389, 0.0
        %vm416 = vcmp.gt.f32.partialorder %v392, 0.0
        %vm417 = vcmp.gt.f32.partialorder %v397, 0.0
        %vm418 = vcmp.gt.f32.partialorder %v400, 0.0
        %v419 = vmul.f32 %v341, 0.5
        %v420 = vmul.f32 %v344, 0.5
        %v421 = vmul.f32 %v349, 0.5
        %v422 = vmul.f32 %v352, 0.5
        %v423 = vmul.f32 %v357, 0.5
        %v424 = vmul.f32 %v360, 0.5
        %v425 = vmul.f32 %v365, 0.5
        %v426 = vmul.f32 %v368, 0.5
        %v427 = vmul.f32 %v373, 0.5
        %v428 = vmul.f32 %v376, 0.5
        %v429 = vmul.f32 %v381, 0.5
        %v430 = vmul.f32 %v384, 0.5
        %v431 = vmul.f32 %v389, 0.5
        %v432 = vmul.f32 %v392, 0.5
        %v433 = vmul.f32 %v397, 0.5
        %v434 = vmul.f32 %v400, 0.5
        %v435 = vmul.f32 %v341, 0.33333334
        %v436 = vmul.f32 %v344, 0.33333334
        %v437 = vmul.f32 %v349, 0.33333334
        %v438 = vmul.f32 %v352, 0.33333334
        %v439 = vmul.f32 %v357, 0.33333334
        %v440 = vmul.f32 %v360, 0.33333334
        %v441 = vmul.f32 %v365, 0.33333334
        %v442 = vmul.f32 %v368, 0.33333334
        %v443 = vmul.f32 %v373, 0.33333334
        %v444 = vmul.f32 %v376, 0.33333334
        %v445 = vmul.f32 %v381, 0.33333334
        %v446 = vmul.f32 %v384, 0.33333334
        %v447 = vmul.f32 %v389, 0.33333334
        %v448 = vmul.f32 %v392, 0.33333334
        %v449 = vmul.f32 %v397, 0.33333334
        %v450 = vmul.f32 %v400, 0.33333334
        %v451 = vadd.f32 %v435, 1.0
        %v452 = vadd.f32 %v436, 1.0
        %v453 = vadd.f32 %v437, 1.0
        %v454 = vadd.f32 %v438, 1.0
        %v455 = vadd.f32 %v439, 1.0
        %v456 = vadd.f32 %v440, 1.0
        %v457 = vadd.f32 %v441, 1.0
        %v458 = vadd.f32 %v442, 1.0
        %v459 = vadd.f32 %v443, 1.0
        %v460 = vadd.f32 %v444, 1.0
        %v461 = vadd.f32 %v445, 1.0
        %v462 = vadd.f32 %v446, 1.0
        %v463 = vadd.f32 %v447, 1.0
        %v464 = vadd.f32 %v448, 1.0
        %v465 = vadd.f32 %v449, 1.0
        %v466 = vadd.f32 %v450, 1.0
        %v467 = vmul.f32 %v419, %v451
        %v468 = vmul.f32 %v420, %v452
        %v469 = vmul.f32 %v421, %v453
        %v470 = vmul.f32 %v422, %v454
        %v471 = vmul.f32 %v423, %v455
        %v472 = vmul.f32 %v424, %v456
        %v473 = vmul.f32 %v425, %v457
        %v474 = vmul.f32 %v426, %v458
        %v475 = vmul.f32 %v427, %v459
        %v476 = vmul.f32 %v428, %v460
        %v477 = vmul.f32 %v429, %v461
        %v478 = vmul.f32 %v430, %v462
        %v479 = vmul.f32 %v431, %v463
        %v480 = vmul.f32 %v432, %v464
        %v481 = vmul.f32 %v433, %v465
        %v482 = vmul.f32 %v434, %v466
        %v483 = vadd.f32 %v467, 1.0
        %v484 = vadd.f32 %v468, 1.0
        %v485 = vadd.f32 %v469, 1.0
        %v486 = vadd.f32 %v470, 1.0
        %v487 = vadd.f32 %v471, 1.0
        %v488 = vadd.f32 %v472, 1.0
        %v489 = vadd.f32 %v473, 1.0
        %v490 = vadd.f32 %v474, 1.0
        %v491 = vadd.f32 %v475, 1.0
        %v492 = vadd.f32 %v476, 1.0
        %v493 = vadd.f32 %v477, 1.0
        %v494 = vadd.f32 %v478, 1.0
        %v495 = vadd.f32 %v479, 1.0
        %v496 = vadd.f32 %v480, 1.0
        %v497 = vadd.f32 %v481, 1.0
        %v498 = vadd.f32 %v482, 1.0
        %v499 = vmul.f32 %v341, %v483
        %v500 = vmul.f32 %v344, %v484
        %v501 = vmul.f32 %v349, %v485
        %v502 = vmul.f32 %v352, %v486
        %v503 = vmul.f32 %v357, %v487
        %v504 = vmul.f32 %v360, %v488
        %v505 = vmul.f32 %v365, %v489
        %v506 = vmul.f32 %v368, %v490
        %v507 = vmul.f32 %v373, %v491
        %v508 = vmul.f32 %v376, %v492
        %v509 = vmul.f32 %v381, %v493
        %v510 = vmul.f32 %v384, %v494
        %v511 = vmul.f32 %v389, %v495
        %v512 = vmul.f32 %v392, %v496
        %v513 = vmul.f32 %v397, %v497
        %v514 = vmul.f32 %v400, %v498
        %v515 = vand.u32 2147483647, %v341
        %v516 = vand.u32 2147483647, %v344
        %v517 = vand.u32 2147483647, %v349
        %v518 = vand.u32 2147483647, %v352
        %v519 = vand.u32 2147483647, %v357
        %v520 = vand.u32 2147483647, %v360
        %v521 = vand.u32 2147483647, %v365
        %v522 = vand.u32 2147483647, %v368
        %v523 = vand.u32 2147483647, %v373
        %v524 = vand.u32 2147483647, %v376
        %v525 = vand.u32 2147483647, %v381
        %v526 = vand.u32 2147483647, %v384
        %v527 = vand.u32 2147483647, %v389
        %v528 = vand.u32 2147483647, %v392
        %v529 = vand.u32 2147483647, %v397
        %v530 = vand.u32 2147483647, %v400
        %vm531 = vcmp.lt.f32.partialorder %v515, 0.2
        %vm532 = vcmp.lt.f32.partialorder %v516, 0.2
        %vm533 = vcmp.lt.f32.partialorder %v517, 0.2
        %vm534 = vcmp.lt.f32.partialorder %v518, 0.2
        %vm535 = vcmp.lt.f32.partialorder %v519, 0.2
        %vm536 = vcmp.lt.f32.partialorder %v520, 0.2
        %vm537 = vcmp.lt.f32.partialorder %v521, 0.2
        %vm538 = vcmp.lt.f32.partialorder %v522, 0.2
        %vm539 = vcmp.lt.f32.partialorder %v523, 0.2
        %vm540 = vcmp.lt.f32.partialorder %v524, 0.2
        %vm541 = vcmp.lt.f32.partialorder %v525, 0.2
        %vm542 = vcmp.lt.f32.partialorder %v526, 0.2
        %vm543 = vcmp.lt.f32.partialorder %v527, 0.2
        %vm544 = vcmp.lt.f32.partialorder %v528, 0.2
        %vm545 = vcmp.lt.f32.partialorder %v529, 0.2
        %vm546 = vcmp.lt.f32.partialorder %v530, 0.2
        %v547 = vmul.f32 %v341, 1.442695
        %v548 = vpow.pop %v547
        %v549 = vmul.f32 %v344, 1.442695
        %v550 = vpow.pop %v549
        %v551 = vmul.f32 %v349, 1.442695
        %v552 = vpow.pop %v551
        %v553 = vmul.f32 %v352, 1.442695
        %v554 = vpow.pop %v553
        %v555 = vmul.f32 %v357, 1.442695
        %v556 = vpow.pop %v555
        %v557 = vmul.f32 %v360, 1.442695
        %v558 = vpow.pop %v557
        %v559 = vmul.f32 %v365, 1.442695
        %v560 = vpow.pop %v559
        %v561 = vmul.f32 %v368, 1.442695
        %v562 = vpow.pop %v561
        %v563 = vmul.f32 %v373, 1.442695
        %v564 = vpow.pop %v563
        %v565 = vmul.f32 %v376, 1.442695
        %v566 = vpow.pop %v565
        %v567 = vmul.f32 %v381, 1.442695
        %v568 = vpow.pop %v567
        %v569 = vmul.f32 %v384, 1.442695
        %v570 = vpow.pop %v569
        %v571 = vmul.f32 %v389, 1.442695
        %v572 = vpow.pop %v571
        %v573 = vmul.f32 %v392, 1.442695
        %v574 = vpow.pop %v573
        %v575 = vmul.f32 %v397, 1.442695
        %v576 = vpow.pop %v575
        %v577 = vmul.f32 %v400, 1.442695
        %v578 = vpow.pop %v577
        %v579 = vsub.f32 %v548, 1.0
        %v580 = vsub.f32 %v550, 1.0
        %v581 = vsub.f32 %v552, 1.0
        %v582 = vsub.f32 %v554, 1.0
        %v583 = vsub.f32 %v556, 1.0
        %v584 = vsub.f32 %v558, 1.0
        %v585 = vsub.f32 %v560, 1.0
        %v586 = vsub.f32 %v562, 1.0
        %v587 = vsub.f32 %v564, 1.0
        %v588 = vsub.f32 %v566, 1.0
        %v589 = vsub.f32 %v568, 1.0
        %v590 = vsub.f32 %v570, 1.0
        %v591 = vsub.f32 %v572, 1.0
        %v592 = vsub.f32 %v574, 1.0
        %v593 = vsub.f32 %v576, 1.0
        %v594 = vsub.f32 %v578, 1.0
        %v595 = vsel %vm531, %v499, %v579
        %v596 = vsel %vm532, %v500, %v580
        %v597 = vsel %vm533, %v501, %v581
        %v598 = vsel %vm534, %v502, %v582
        %v599 = vsel %vm535, %v503, %v583
        %v600 = vsel %vm536, %v504, %v584
        %v601 = vsel %vm537, %v505, %v585
        %v602 = vsel %vm538, %v506, %v586
        %v603 = vsel %vm539, %v507, %v587
        %v604 = vsel %vm540, %v508, %v588
        %v605 = vsel %vm541, %v509, %v589
        %v606 = vsel %vm542, %v510, %v590
        %v607 = vsel %vm543, %v511, %v591
        %v608 = vsel %vm544, %v512, %v592
        %v609 = vsel %vm545, %v513, %v593
        %v610 = vsel %vm546, %v514, %v594
        %v611 = vsel %vm403, %v341, %v595
        %v612 = vsel %vm404, %v344, %v596
        %v613 = vsel %vm405, %v349, %v597
        %v614 = vsel %vm406, %v352, %v598
        %v615 = vsel %vm407, %v357, %v599
        %v616 = vsel %vm408, %v360, %v600
        %v617 = vsel %vm409, %v365, %v601
        %v618 = vsel %vm410, %v368, %v602
        %v619 = vsel %vm411, %v373, %v603
        %v620 = vsel %vm412, %v376, %v604
        %v621 = vsel %vm413, %v381, %v605
        %v622 = vsel %vm414, %v384, %v606
        %v623 = vsel %vm415, %v389, %v607
        %v624 = vsel %vm416, %v392, %v608
        %v625 = vsel %vm417, %v397, %v609
        %v626 = vsel %vm418, %v400, %v610
        %v627 = vld [vmem:[%s2] sm:$0xf]
        %v628 = vld [vmem:[%s2 + $0x4] sm:$0xf]
        %v629 = vld [vmem:[%s2 + $0x8] sm:$0xf]
        %v630 = vld [vmem:[%s2 + $0xc] sm:$0xf]
        %v631 = vld [vmem:[%s2 + $0x10] sm:$0xf]
        %v632 = vld [vmem:[%s2 + $0x14] sm:$0xf]
        %v633 = vld [vmem:[%s2 + $0x18] sm:$0xf]
        %v634 = vld [vmem:[%s2 + $0x1c] sm:$0xf]
        %v635 = vld [vmem:[%s2 + $0x20] sm:$0xf]
        %v636 = vld [vmem:[%s2 + $0x24] sm:$0xf]
        %v637 = vld [vmem:[%s2 + $0x28] sm:$0xf]
        %v638 = vld [vmem:[%s2 + $0x2c] sm:$0xf]
        %v639 = vld [vmem:[%s2 + $0x30] sm:$0xf]
        %v640 = vld [vmem:[%s2 + $0x34] sm:$0xf]
        %v641 = vld [vmem:[%s2 + $0x38] sm:$0xf]
        %v642 = vld [vmem:[%s2 + $0x3c] sm:$0xf]
        %v643 = vpack.c.bf16 %v612, %v611
        %v644 = vpack.c.bf16 %v614, %v613
        %v645 = vpack.c.bf16 %v616, %v615
        %v646 = vpack.c.bf16 %v618, %v617
        %v647 = vpack.c.bf16 %v620, %v619
        %v648 = vpack.c.bf16 %v622, %v621
        %v649 = vpack.c.bf16 %v624, %v623
        %v650 = vpack.c.bf16 %v626, %v625
        %v667 = vunpack.c.l.b16 %v627
        %v668 = vunpack.c.l.b16 %v628
        %v669 = vunpack.c.l.b16 %v629
        %v670 = vunpack.c.l.b16 %v630
        %v671 = vunpack.c.l.b16 %v631
        %v672 = vunpack.c.l.b16 %v632
        %v673 = vunpack.c.l.b16 %v633
        %v674 = vunpack.c.l.b16 %v634
        %v675 = vunpack.c.l.b16 %v635
        %v676 = vunpack.c.l.b16 %v636
        %v677 = vunpack.c.l.b16 %v637
        %v678 = vunpack.c.l.b16 %v638
        %v679 = vunpack.c.l.b16 %v639
        %v680 = vunpack.c.l.b16 %v640
        %v681 = vunpack.c.l.b16 %v641
        %v682 = vunpack.c.l.b16 %v642
        %v683 = vpack.c.b16 %v668, %v667
        %v684 = vpack.c.b16 %v670, %v669
        %v685 = vpack.c.b16 %v672, %v671
        %v686 = vpack.c.b16 %v674, %v673
        %v687 = vpack.c.b16 %v676, %v675
        %v688 = vpack.c.b16 %v678, %v677
        %v689 = vpack.c.b16 %v680, %v679
        %v690 = vpack.c.b16 %v682, %v681
        %699 = vmatprep.subr.bf16.mxu0 0
        %700 = vmatpush1.bf16.msra.mxu0 %v690
        %701 = vmatprep.subr.bf16.mxu0 0
        %702 = vmatpush1.bf16.msra.mxu0 %v689
        %703 = vmatprep.subr.bf16.mxu0 0
        %704 = vmatpush1.bf16.msra.mxu0 %v688
        %705 = vmatprep.subr.bf16.mxu0 0
        %706 = vmatpush1.bf16.msra.mxu0 %v687
        %707 = vmatprep.subr.bf16.mxu0 0
        %708 = vmatpush1.bf16.msra.mxu0 %v686
        %709 = vmatprep.subr.bf16.mxu0 0
        %710 = vmatpush1.bf16.msra.mxu0 %v685
        %711 = vmatprep.subr.bf16.mxu0 0
        %712 = vmatpush1.bf16.msra.mxu0 %v684
        %713 = vmatprep.subr.bf16.mxu0 0
        %714 = vmatpush1.bf16.msra.mxu0 %v683
        %715 = vmatprep.subr.bf16.mxu0 0
        %716 = vmatpush2.bf16.msra.mxu0 0
        %717 = vmatprep.subr.bf16.mxu0 0
        %718 = vmatpush2.bf16.msra.mxu0 0
        %719 = vmatprep.subr.bf16.mxu0 0
        %720 = vmatpush2.bf16.msra.mxu0 0
        %721 = vmatprep.subr.bf16.mxu0 0
        %722 = vmatpush2.bf16.msra.mxu0 0
        %723 = vmatprep.subr.bf16.mxu0 0
        %724 = vmatpush2.bf16.msra.mxu0 0
        %725 = vmatprep.subr.bf16.mxu0 0
        %726 = vmatpush2.bf16.msra.mxu0 0
        %727 = vmatprep.subr.bf16.mxu0 0
        %728 = vmatpush2.bf16.msra.mxu0 0
        %729 = vmatprep.subr.bf16.mxu0 0
        %730 = vmatpush2.bf16.msra.mxu0 0
        %731 = vmatprep.mubr.bf16.mxu0 0
        %732 = vmatmul.mubr.bf16.gmra.mxu0 %v643
        %v733 = vpop.f32.mrf.mxu0
        %v734 = vadd.f32 0.0, %v733
        %v735 = vpop.f32.mrf.mxu0
        %v736 = vpop.f32.mrf.mxu0
        %v737 = vadd.f32 0.0, %v736
        %v738 = vpop.f32.mrf.mxu0
        %739 = vmatprep.mubr.bf16.mxu0 0
        %740 = vmatmul.mubr.bf16.gmra.mxu0 %v644
        %v741 = vpop.f32.mrf.mxu0
        %v742 = vadd.f32 0.0, %v741
        %v743 = vpop.f32.mrf.mxu0
        %v744 = vpop.f32.mrf.mxu0
        %v745 = vadd.f32 0.0, %v744
        %v746 = vpop.f32.mrf.mxu0
        %747 = vmatprep.mubr.bf16.mxu0 0
        %748 = vmatmul.mubr.bf16.gmra.mxu0 %v645
        %v749 = vpop.f32.mrf.mxu0
        %v750 = vadd.f32 0.0, %v749
        %v751 = vpop.f32.mrf.mxu0
        %v752 = vpop.f32.mrf.mxu0
        %v753 = vadd.f32 0.0, %v752
        %v754 = vpop.f32.mrf.mxu0
        %755 = vmatprep.mubr.bf16.mxu0 0
        %756 = vmatmul.mubr.bf16.gmra.mxu0 %v646
        %v757 = vpop.f32.mrf.mxu0
        %v758 = vadd.f32 0.0, %v757
        %v759 = vpop.f32.mrf.mxu0
        %v760 = vpop.f32.mrf.mxu0
        %v761 = vadd.f32 0.0, %v760
        %v762 = vpop.f32.mrf.mxu0
        %763 = vmatprep.mubr.bf16.mxu0 0
        %764 = vmatmul.mubr.bf16.gmra.mxu0 %v647
        %v765 = vpop.f32.mrf.mxu0
        %v766 = vadd.f32 0.0, %v765
        %v767 = vpop.f32.mrf.mxu0
        %v768 = vpop.f32.mrf.mxu0
        %v769 = vadd.f32 0.0, %v768
        %v770 = vpop.f32.mrf.mxu0
        %771 = vmatprep.mubr.bf16.mxu0 0
        %772 = vmatmul.mubr.bf16.gmra.mxu0 %v648
        %v773 = vpop.f32.mrf.mxu0
        %v774 = vadd.f32 0.0, %v773
        %v775 = vpop.f32.mrf.mxu0
        %v776 = vpop.f32.mrf.mxu0
        %v777 = vadd.f32 0.0, %v776
        %v778 = vpop.f32.mrf.mxu0
        %779 = vmatprep.mubr.bf16.mxu0 0
        %780 = vmatmul.mubr.bf16.gmra.mxu0 %v649
        %v781 = vpop.f32.mrf.mxu0
        %v782 = vadd.f32 0.0, %v781
        %v783 = vpop.f32.mrf.mxu0
        %v784 = vpop.f32.mrf.mxu0
        %v785 = vadd.f32 0.0, %v784
        %v786 = vpop.f32.mrf.mxu0
        %787 = vmatprep.mubr.bf16.mxu0 0
        %788 = vmatmul.mubr.bf16.gmra.mxu0 %v650
        %v789 = vpop.f32.mrf.mxu0
        %v790 = vadd.f32 0.0, %v789
        %v791 = vpop.f32.mrf.mxu0
        %v792 = vpop.f32.mrf.mxu0
        %v793 = vadd.f32 0.0, %v792
        %v794 = vpop.f32.mrf.mxu0
        %795 = vdwg.mxu0
        %vm796 = vcmp.gt.f32.partialorder %v734, 0.0
        %vm797 = vcmp.gt.f32.partialorder %v737, 0.0
        %vm798 = vcmp.gt.f32.partialorder %v742, 0.0
        %vm799 = vcmp.gt.f32.partialorder %v745, 0.0
        %vm800 = vcmp.gt.f32.partialorder %v750, 0.0
        %vm801 = vcmp.gt.f32.partialorder %v753, 0.0
        %vm802 = vcmp.gt.f32.partialorder %v758, 0.0
        %vm803 = vcmp.gt.f32.partialorder %v761, 0.0
        %vm804 = vcmp.gt.f32.partialorder %v766, 0.0
        %vm805 = vcmp.gt.f32.partialorder %v769, 0.0
        %vm806 = vcmp.gt.f32.partialorder %v774, 0.0
        %vm807 = vcmp.gt.f32.partialorder %v777, 0.0
        %vm808 = vcmp.gt.f32.partialorder %v782, 0.0
        %vm809 = vcmp.gt.f32.partialorder %v785, 0.0
        %vm810 = vcmp.gt.f32.partialorder %v790, 0.0
        %vm811 = vcmp.gt.f32.partialorder %v793, 0.0
        %v812 = vmul.f32 %v734, 0.5
        %v813 = vmul.f32 %v737, 0.5
        %v814 = vmul.f32 %v742, 0.5
        %v815 = vmul.f32 %v745, 0.5
        %v816 = vmul.f32 %v750, 0.5
        %v817 = vmul.f32 %v753, 0.5
        %v818 = vmul.f32 %v758, 0.5
        %v819 = vmul.f32 %v761, 0.5
        %v820 = vmul.f32 %v766, 0.5
        %v821 = vmul.f32 %v769, 0.5
        %v822 = vmul.f32 %v774, 0.5
        %v823 = vmul.f32 %v777, 0.5
        %v824 = vmul.f32 %v782, 0.5
        %v825 = vmul.f32 %v785, 0.5
        %v826 = vmul.f32 %v790, 0.5
        %v827 = vmul.f32 %v793, 0.5
        %v828 = vmul.f32 %v734, 0.33333334
        %v829 = vmul.f32 %v737, 0.33333334
        %v830 = vmul.f32 %v742, 0.33333334
        %v831 = vmul.f32 %v745, 0.33333334
        %v832 = vmul.f32 %v750, 0.33333334
        %v833 = vmul.f32 %v753, 0.33333334
        %v834 = vmul.f32 %v758, 0.33333334
        %v835 = vmul.f32 %v761, 0.33333334
        %v836 = vmul.f32 %v766, 0.33333334
        %v837 = vmul.f32 %v769, 0.33333334
        %v838 = vmul.f32 %v774, 0.33333334
        %v839 = vmul.f32 %v777, 0.33333334
        %v840 = vmul.f32 %v782, 0.33333334
        %v841 = vmul.f32 %v785, 0.33333334
        %v842 = vmul.f32 %v790, 0.33333334
        %v843 = vmul.f32 %v793, 0.33333334
        %v844 = vadd.f32 %v828, 1.0
        %v845 = vadd.f32 %v829, 1.0
        %v846 = vadd.f32 %v830, 1.0
        %v847 = vadd.f32 %v831, 1.0
        %v848 = vadd.f32 %v832, 1.0
        %v849 = vadd.f32 %v833, 1.0
        %v850 = vadd.f32 %v834, 1.0
        %v851 = vadd.f32 %v835, 1.0
        %v852 = vadd.f32 %v836, 1.0
        %v853 = vadd.f32 %v837, 1.0
        %v854 = vadd.f32 %v838, 1.0
        %v855 = vadd.f32 %v839, 1.0
        %v856 = vadd.f32 %v840, 1.0
        %v857 = vadd.f32 %v841, 1.0
        %v858 = vadd.f32 %v842, 1.0
        %v859 = vadd.f32 %v843, 1.0
        %v860 = vmul.f32 %v812, %v844
        %v861 = vmul.f32 %v813, %v845
        %v862 = vmul.f32 %v814, %v846
        %v863 = vmul.f32 %v815, %v847
        %v864 = vmul.f32 %v816, %v848
        %v865 = vmul.f32 %v817, %v849
        %v866 = vmul.f32 %v818, %v850
        %v867 = vmul.f32 %v819, %v851
        %v868 = vmul.f32 %v820, %v852
        %v869 = vmul.f32 %v821, %v853
        %v870 = vmul.f32 %v822, %v854
        %v871 = vmul.f32 %v823, %v855
        %v872 = vmul.f32 %v824, %v856
        %v873 = vmul.f32 %v825, %v857
        %v874 = vmul.f32 %v826, %v858
        %v875 = vmul.f32 %v827, %v859
        %v876 = vadd.f32 %v860, 1.0
        %v877 = vadd.f32 %v861, 1.0
        %v878 = vadd.f32 %v862, 1.0
        %v879 = vadd.f32 %v863, 1.0
        %v880 = vadd.f32 %v864, 1.0
        %v881 = vadd.f32 %v865, 1.0
        %v882 = vadd.f32 %v866, 1.0
        %v883 = vadd.f32 %v867, 1.0
        %v884 = vadd.f32 %v868, 1.0
        %v885 = vadd.f32 %v869, 1.0
        %v886 = vadd.f32 %v870, 1.0
        %v887 = vadd.f32 %v871, 1.0
        %v888 = vadd.f32 %v872, 1.0
        %v889 = vadd.f32 %v873, 1.0
        %v890 = vadd.f32 %v874, 1.0
        %v891 = vadd.f32 %v875, 1.0
        %v892 = vmul.f32 %v734, %v876
        %v893 = vmul.f32 %v737, %v877
        %v894 = vmul.f32 %v742, %v878
        %v895 = vmul.f32 %v745, %v879
        %v896 = vmul.f32 %v750, %v880
        %v897 = vmul.f32 %v753, %v881
        %v898 = vmul.f32 %v758, %v882
        %v899 = vmul.f32 %v761, %v883
        %v900 = vmul.f32 %v766, %v884
        %v901 = vmul.f32 %v769, %v885
        %v902 = vmul.f32 %v774, %v886
        %v903 = vmul.f32 %v777, %v887
        %v904 = vmul.f32 %v782, %v888
        %v905 = vmul.f32 %v785, %v889
        %v906 = vmul.f32 %v790, %v890
        %v907 = vmul.f32 %v793, %v891
        %v908 = vand.u32 2147483647, %v734
        %v909 = vand.u32 2147483647, %v737
        %v910 = vand.u32 2147483647, %v742
        %v911 = vand.u32 2147483647, %v745
        %v912 = vand.u32 2147483647, %v750
        %v913 = vand.u32 2147483647, %v753
        %v914 = vand.u32 2147483647, %v758
        %v915 = vand.u32 2147483647, %v761
        %v916 = vand.u32 2147483647, %v766
        %v917 = vand.u32 2147483647, %v769
        %v918 = vand.u32 2147483647, %v774
        %v919 = vand.u32 2147483647, %v777
        %v920 = vand.u32 2147483647, %v782
        %v921 = vand.u32 2147483647, %v785
        %v922 = vand.u32 2147483647, %v790
        %v923 = vand.u32 2147483647, %v793
        %vm924 = vcmp.lt.f32.partialorder %v908, 0.2
        %vm925 = vcmp.lt.f32.partialorder %v909, 0.2
        %vm926 = vcmp.lt.f32.partialorder %v910, 0.2
        %vm927 = vcmp.lt.f32.partialorder %v911, 0.2
        %vm928 = vcmp.lt.f32.partialorder %v912, 0.2
        %vm929 = vcmp.lt.f32.partialorder %v913, 0.2
        %vm930 = vcmp.lt.f32.partialorder %v914, 0.2
        %vm931 = vcmp.lt.f32.partialorder %v915, 0.2
        %vm932 = vcmp.lt.f32.partialorder %v916, 0.2
        %vm933 = vcmp.lt.f32.partialorder %v917, 0.2
        %vm934 = vcmp.lt.f32.partialorder %v918, 0.2
        %vm935 = vcmp.lt.f32.partialorder %v919, 0.2
        %vm936 = vcmp.lt.f32.partialorder %v920, 0.2
        %vm937 = vcmp.lt.f32.partialorder %v921, 0.2
        %vm938 = vcmp.lt.f32.partialorder %v922, 0.2
        %vm939 = vcmp.lt.f32.partialorder %v923, 0.2
        %v940 = vmul.f32 %v734, 1.442695
        %v941 = vpow.pop %v940
        %v942 = vmul.f32 %v737, 1.442695
        %v943 = vpow.pop %v942
        %v944 = vmul.f32 %v742, 1.442695
        %v945 = vpow.pop %v944
        %v946 = vmul.f32 %v745, 1.442695
        %v947 = vpow.pop %v946
        %v948 = vmul.f32 %v750, 1.442695
        %v949 = vpow.pop %v948
        %v950 = vmul.f32 %v753, 1.442695
        %v951 = vpow.pop %v950
        %v952 = vmul.f32 %v758, 1.442695
        %v953 = vpow.pop %v952
        %v954 = vmul.f32 %v761, 1.442695
        %v955 = vpow.pop %v954
        %v956 = vmul.f32 %v766, 1.442695
        %v957 = vpow.pop %v956
        %v958 = vmul.f32 %v769, 1.442695
        %v959 = vpow.pop %v958
        %v960 = vmul.f32 %v774, 1.442695
        %v961 = vpow.pop %v960
        %v962 = vmul.f32 %v777, 1.442695
        %v963 = vpow.pop %v962
        %v964 = vmul.f32 %v782, 1.442695
        %v965 = vpow.pop %v964
        %v966 = vmul.f32 %v785, 1.442695
        %v967 = vpow.pop %v966
        %v968 = vmul.f32 %v790, 1.442695
        %v969 = vpow.pop %v968
        %v970 = vmul.f32 %v793, 1.442695
        %v971 = vpow.pop %v970
        %v972 = vsub.f32 %v941, 1.0
        %v973 = vsub.f32 %v943, 1.0
        %v974 = vsub.f32 %v945, 1.0
        %v975 = vsub.f32 %v947, 1.0
        %v976 = vsub.f32 %v949, 1.0
        %v977 = vsub.f32 %v951, 1.0
        %v978 = vsub.f32 %v953, 1.0
        %v979 = vsub.f32 %v955, 1.0
        %v980 = vsub.f32 %v957, 1.0
        %v981 = vsub.f32 %v959, 1.0
        %v982 = vsub.f32 %v961, 1.0
        %v983 = vsub.f32 %v963, 1.0
        %v984 = vsub.f32 %v965, 1.0
        %v985 = vsub.f32 %v967, 1.0
        %v986 = vsub.f32 %v969, 1.0
        %v987 = vsub.f32 %v971, 1.0
        %v988 = vsel %vm924, %v892, %v972
        %v989 = vsel %vm925, %v893, %v973
        %v990 = vsel %vm926, %v894, %v974
        %v991 = vsel %vm927, %v895, %v975
        %v992 = vsel %vm928, %v896, %v976
        %v993 = vsel %vm929, %v897, %v977
        %v994 = vsel %vm930, %v898, %v978
        %v995 = vsel %vm931, %v899, %v979
        %v996 = vsel %vm932, %v900, %v980
        %v997 = vsel %vm933, %v901, %v981
        %v998 = vsel %vm934, %v902, %v982
        %v999 = vsel %vm935, %v903, %v983
        %v1000 = vsel %vm936, %v904, %v984
        %v1001 = vsel %vm937, %v905, %v985
        %v1002 = vsel %vm938, %v906, %v986
        %v1003 = vsel %vm939, %v907, %v987
        %v1004 = vsel %vm796, %v734, %v988
        %v1005 = vsel %vm797, %v737, %v989
        %v1006 = vsel %vm798, %v742, %v990
        %v1007 = vsel %vm799, %v745, %v991
        %v1008 = vsel %vm800, %v750, %v992
        %v1009 = vsel %vm801, %v753, %v993
        %v1010 = vsel %vm802, %v758, %v994
        %v1011 = vsel %vm803, %v761, %v995
        %v1012 = vsel %vm804, %v766, %v996
        %v1013 = vsel %vm805, %v769, %v997
        %v1014 = vsel %vm806, %v774, %v998
        %v1015 = vsel %vm807, %v777, %v999
        %v1016 = vsel %vm808, %v782, %v1000
        %v1017 = vsel %vm809, %v785, %v1001
        %v1018 = vsel %vm810, %v790, %v1002
        %v1019 = vsel %vm811, %v793, %v1003
        %v1020 = vld [vmem:[%s3] sm:$0xf]
        %v1021 = vld [vmem:[%s3 + $0x4] sm:$0xf]
        %v1022 = vld [vmem:[%s3 + $0x8] sm:$0xf]
        %v1023 = vld [vmem:[%s3 + $0xc] sm:$0xf]
        %v1024 = vld [vmem:[%s3 + $0x10] sm:$0xf]
        %v1025 = vld [vmem:[%s3 + $0x14] sm:$0xf]
        %v1026 = vld [vmem:[%s3 + $0x18] sm:$0xf]
        %v1027 = vld [vmem:[%s3 + $0x1c] sm:$0xf]
        %v1028 = vld [vmem:[%s3 + $0x20] sm:$0xf]
        %v1029 = vld [vmem:[%s3 + $0x24] sm:$0xf]
        %v1030 = vld [vmem:[%s3 + $0x28] sm:$0xf]
        %v1031 = vld [vmem:[%s3 + $0x2c] sm:$0xf]
        %v1032 = vld [vmem:[%s3 + $0x30] sm:$0xf]
        %v1033 = vld [vmem:[%s3 + $0x34] sm:$0xf]
        %v1034 = vld [vmem:[%s3 + $0x38] sm:$0xf]
        %v1035 = vld [vmem:[%s3 + $0x3c] sm:$0xf]
        %v1036 = vpack.c.bf16 %v1005, %v1004
        %v1037 = vpack.c.bf16 %v1007, %v1006
        %v1038 = vpack.c.bf16 %v1009, %v1008
        %v1039 = vpack.c.bf16 %v1011, %v1010
        %v1040 = vpack.c.bf16 %v1013, %v1012
        %v1041 = vpack.c.bf16 %v1015, %v1014
        %v1042 = vpack.c.bf16 %v1017, %v1016
        %v1043 = vpack.c.bf16 %v1019, %v1018
        %v1060 = vunpack.c.l.b16 %v1020
        %v1061 = vunpack.c.l.b16 %v1021
        %v1062 = vunpack.c.l.b16 %v1022
        %v1063 = vunpack.c.l.b16 %v1023
        %v1064 = vunpack.c.l.b16 %v1024
        %v1065 = vunpack.c.l.b16 %v1025
        %v1066 = vunpack.c.l.b16 %v1026
        %v1067 = vunpack.c.l.b16 %v1027
        %v1068 = vunpack.c.l.b16 %v1028
        %v1069 = vunpack.c.l.b16 %v1029
        %v1070 = vunpack.c.l.b16 %v1030
        %v1071 = vunpack.c.l.b16 %v1031
        %v1072 = vunpack.c.l.b16 %v1032
        %v1073 = vunpack.c.l.b16 %v1033
        %v1074 = vunpack.c.l.b16 %v1034
        %v1075 = vunpack.c.l.b16 %v1035
        %v1076 = vpack.c.b16 %v1061, %v1060
        %v1077 = vpack.c.b16 %v1063, %v1062
        %v1078 = vpack.c.b16 %v1065, %v1064
        %v1079 = vpack.c.b16 %v1067, %v1066
        %v1080 = vpack.c.b16 %v1069, %v1068
        %v1081 = vpack.c.b16 %v1071, %v1070
        %v1082 = vpack.c.b16 %v1073, %v1072
        %v1083 = vpack.c.b16 %v1075, %v1074
        %1092 = vmatprep.subr.bf16.mxu0 0
        %1093 = vmatpush1.bf16.msra.mxu0 %v1083
        %1094 = vmatprep.subr.bf16.mxu0 0
        %1095 = vmatpush1.bf16.msra.mxu0 %v1082
        %1096 = vmatprep.subr.bf16.mxu0 0
        %1097 = vmatpush1.bf16.msra.mxu0 %v1081
        %1098 = vmatprep.subr.bf16.mxu0 0
        %1099 = vmatpush1.bf16.msra.mxu0 %v1080
        %1100 = vmatprep.subr.bf16.mxu0 0
        %1101 = vmatpush1.bf16.msra.mxu0 %v1079
        %1102 = vmatprep.subr.bf16.mxu0 0
        %1103 = vmatpush1.bf16.msra.mxu0 %v1078
        %1104 = vmatprep.subr.bf16.mxu0 0
        %1105 = vmatpush1.bf16.msra.mxu0 %v1077
        %1106 = vmatprep.subr.bf16.mxu0 0
        %1107 = vmatpush1.bf16.msra.mxu0 %v1076
        %1108 = vmatprep.subr.bf16.mxu0 0
        %1109 = vmatpush2.bf16.msra.mxu0 0
        %1110 = vmatprep.subr.bf16.mxu0 0
        %1111 = vmatpush2.bf16.msra.mxu0 0
        %1112 = vmatprep.subr.bf16.mxu0 0
        %1113 = vmatpush2.bf16.msra.mxu0 0
        %1114 = vmatprep.subr.bf16.mxu0 0
        %1115 = vmatpush2.bf16.msra.mxu0 0
        %1116 = vmatprep.subr.bf16.mxu0 0
        %1117 = vmatpush2.bf16.msra.mxu0 0
        %1118 = vmatprep.subr.bf16.mxu0 0
        %1119 = vmatpush2.bf16.msra.mxu0 0
        %1120 = vmatprep.subr.bf16.mxu0 0
        %1121 = vmatpush2.bf16.msra.mxu0 0
        %1122 = vmatprep.subr.bf16.mxu0 0
        %1123 = vmatpush2.bf16.msra.mxu0 0
        %1124 = vmatprep.mubr.bf16.mxu0 0
        %1125 = vmatmul.mubr.bf16.gmra.mxu0 %v1036
        %v1126 = vpop.f32.mrf.mxu0
        %v1127 = vadd.f32 0.0, %v1126
        %v1128 = vpop.f32.mrf.mxu0
        %v1129 = vpop.f32.mrf.mxu0
        %v1130 = vadd.f32 0.0, %v1129
        %v1131 = vpop.f32.mrf.mxu0
        %1132 = vmatprep.mubr.bf16.mxu0 0
        %1133 = vmatmul.mubr.bf16.gmra.mxu0 %v1037
        %v1134 = vpop.f32.mrf.mxu0
        %v1135 = vadd.f32 0.0, %v1134
        %v1136 = vpop.f32.mrf.mxu0
        %v1137 = vpop.f32.mrf.mxu0
        %v1138 = vadd.f32 0.0, %v1137
        %v1139 = vpop.f32.mrf.mxu0
        %1140 = vmatprep.mubr.bf16.mxu0 0
        %1141 = vmatmul.mubr.bf16.gmra.mxu0 %v1038
        %v1142 = vpop.f32.mrf.mxu0
        %v1143 = vadd.f32 0.0, %v1142
        %v1144 = vpop.f32.mrf.mxu0
        %v1145 = vpop.f32.mrf.mxu0
        %v1146 = vadd.f32 0.0, %v1145
        %v1147 = vpop.f32.mrf.mxu0
        %1148 = vmatprep.mubr.bf16.mxu0 0
        %1149 = vmatmul.mubr.bf16.gmra.mxu0 %v1039
        %v1150 = vpop.f32.mrf.mxu0
        %v1151 = vadd.f32 0.0, %v1150
        %v1152 = vpop.f32.mrf.mxu0
        %v1153 = vpop.f32.mrf.mxu0
        %v1154 = vadd.f32 0.0, %v1153
        %v1155 = vpop.f32.mrf.mxu0
        %1156 = vmatprep.mubr.bf16.mxu0 0
        %1157 = vmatmul.mubr.bf16.gmra.mxu0 %v1040
        %v1158 = vpop.f32.mrf.mxu0
        %v1159 = vadd.f32 0.0, %v1158
        %v1160 = vpop.f32.mrf.mxu0
        %v1161 = vpop.f32.mrf.mxu0
        %v1162 = vadd.f32 0.0, %v1161
        %v1163 = vpop.f32.mrf.mxu0
        %1164 = vmatprep.mubr.bf16.mxu0 0
        %1165 = vmatmul.mubr.bf16.gmra.mxu0 %v1041
        %v1166 = vpop.f32.mrf.mxu0
        %v1167 = vadd.f32 0.0, %v1166
        %v1168 = vpop.f32.mrf.mxu0
        %v1169 = vpop.f32.mrf.mxu0
        %v1170 = vadd.f32 0.0, %v1169
        %v1171 = vpop.f32.mrf.mxu0
        %1172 = vmatprep.mubr.bf16.mxu0 0
        %1173 = vmatmul.mubr.bf16.gmra.mxu0 %v1042
        %v1174 = vpop.f32.mrf.mxu0
        %v1175 = vadd.f32 0.0, %v1174
        %v1176 = vpop.f32.mrf.mxu0
        %v1177 = vpop.f32.mrf.mxu0
        %v1178 = vadd.f32 0.0, %v1177
        %v1179 = vpop.f32.mrf.mxu0
        %1180 = vmatprep.mubr.bf16.mxu0 0
        %1181 = vmatmul.mubr.bf16.gmra.mxu0 %v1043
        %v1182 = vpop.f32.mrf.mxu0
        %v1183 = vadd.f32 0.0, %v1182
        %v1184 = vpop.f32.mrf.mxu0
        %v1185 = vpop.f32.mrf.mxu0
        %v1186 = vadd.f32 0.0, %v1185
        %v1187 = vpop.f32.mrf.mxu0
        %1188 = vdwg.mxu0
        %vm1189 = vcmp.gt.f32.partialorder %v1127, 0.0
        %vm1190 = vcmp.gt.f32.partialorder %v1130, 0.0
        %vm1191 = vcmp.gt.f32.partialorder %v1135, 0.0
        %vm1192 = vcmp.gt.f32.partialorder %v1138, 0.0
        %vm1193 = vcmp.gt.f32.partialorder %v1143, 0.0
        %vm1194 = vcmp.gt.f32.partialorder %v1146, 0.0
        %vm1195 = vcmp.gt.f32.partialorder %v1151, 0.0
        %vm1196 = vcmp.gt.f32.partialorder %v1154, 0.0
        %vm1197 = vcmp.gt.f32.partialorder %v1159, 0.0
        %vm1198 = vcmp.gt.f32.partialorder %v1162, 0.0
        %vm1199 = vcmp.gt.f32.partialorder %v1167, 0.0
        %vm1200 = vcmp.gt.f32.partialorder %v1170, 0.0
        %vm1201 = vcmp.gt.f32.partialorder %v1175, 0.0
        %vm1202 = vcmp.gt.f32.partialorder %v1178, 0.0
        %vm1203 = vcmp.gt.f32.partialorder %v1183, 0.0
        %vm1204 = vcmp.gt.f32.partialorder %v1186, 0.0
        %v1205 = vmul.f32 %v1127, 0.5
        %v1206 = vmul.f32 %v1130, 0.5
        %v1207 = vmul.f32 %v1135, 0.5
        %v1208 = vmul.f32 %v1138, 0.5
        %v1209 = vmul.f32 %v1143, 0.5
        %v1210 = vmul.f32 %v1146, 0.5
        %v1211 = vmul.f32 %v1151, 0.5
        %v1212 = vmul.f32 %v1154, 0.5
        %v1213 = vmul.f32 %v1159, 0.5
        %v1214 = vmul.f32 %v1162, 0.5
        %v1215 = vmul.f32 %v1167, 0.5
        %v1216 = vmul.f32 %v1170, 0.5
        %v1217 = vmul.f32 %v1175, 0.5
        %v1218 = vmul.f32 %v1178, 0.5
        %v1219 = vmul.f32 %v1183, 0.5
        %v1220 = vmul.f32 %v1186, 0.5
        %v1221 = vmul.f32 %v1127, 0.33333334
        %v1222 = vmul.f32 %v1130, 0.33333334
        %v1223 = vmul.f32 %v1135, 0.33333334
        %v1224 = vmul.f32 %v1138, 0.33333334
        %v1225 = vmul.f32 %v1143, 0.33333334
        %v1226 = vmul.f32 %v1146, 0.33333334
        %v1227 = vmul.f32 %v1151, 0.33333334
        %v1228 = vmul.f32 %v1154, 0.33333334
        %v1229 = vmul.f32 %v1159, 0.33333334
        %v1230 = vmul.f32 %v1162, 0.33333334
        %v1231 = vmul.f32 %v1167, 0.33333334
        %v1232 = vmul.f32 %v1170, 0.33333334
        %v1233 = vmul.f32 %v1175, 0.33333334
        %v1234 = vmul.f32 %v1178, 0.33333334
        %v1235 = vmul.f32 %v1183, 0.33333334
        %v1236 = vmul.f32 %v1186, 0.33333334
        %v1237 = vadd.f32 %v1221, 1.0
        %v1238 = vadd.f32 %v1222, 1.0
        %v1239 = vadd.f32 %v1223, 1.0
        %v1240 = vadd.f32 %v1224, 1.0
        %v1241 = vadd.f32 %v1225, 1.0
        %v1242 = vadd.f32 %v1226, 1.0
        %v1243 = vadd.f32 %v1227, 1.0
        %v1244 = vadd.f32 %v1228, 1.0
        %v1245 = vadd.f32 %v1229, 1.0
        %v1246 = vadd.f32 %v1230, 1.0
        %v1247 = vadd.f32 %v1231, 1.0
        %v1248 = vadd.f32 %v1232, 1.0
        %v1249 = vadd.f32 %v1233, 1.0
        %v1250 = vadd.f32 %v1234, 1.0
        %v1251 = vadd.f32 %v1235, 1.0
        %v1252 = vadd.f32 %v1236, 1.0
        %v1253 = vmul.f32 %v1205, %v1237
        %v1254 = vmul.f32 %v1206, %v1238
        %v1255 = vmul.f32 %v1207, %v1239
        %v1256 = vmul.f32 %v1208, %v1240
        %v1257 = vmul.f32 %v1209, %v1241
        %v1258 = vmul.f32 %v1210, %v1242
        %v1259 = vmul.f32 %v1211, %v1243
        %v1260 = vmul.f32 %v1212, %v1244
        %v1261 = vmul.f32 %v1213, %v1245
        %v1262 = vmul.f32 %v1214, %v1246
        %v1263 = vmul.f32 %v1215, %v1247
        %v1264 = vmul.f32 %v1216, %v1248
        %v1265 = vmul.f32 %v1217, %v1249
        %v1266 = vmul.f32 %v1218, %v1250
        %v1267 = vmul.f32 %v1219, %v1251
        %v1268 = vmul.f32 %v1220, %v1252
        %v1269 = vadd.f32 %v1253, 1.0
        %v1270 = vadd.f32 %v1254, 1.0
        %v1271 = vadd.f32 %v1255, 1.0
        %v1272 = vadd.f32 %v1256, 1.0
        %v1273 = vadd.f32 %v1257, 1.0
        %v1274 = vadd.f32 %v1258, 1.0
        %v1275 = vadd.f32 %v1259, 1.0
        %v1276 = vadd.f32 %v1260, 1.0
        %v1277 = vadd.f32 %v1261, 1.0
        %v1278 = vadd.f32 %v1262, 1.0
        %v1279 = vadd.f32 %v1263, 1.0
        %v1280 = vadd.f32 %v1264, 1.0
        %v1281 = vadd.f32 %v1265, 1.0
        %v1282 = vadd.f32 %v1266, 1.0
        %v1283 = vadd.f32 %v1267, 1.0
        %v1284 = vadd.f32 %v1268, 1.0
        %v1285 = vmul.f32 %v1127, %v1269
        %v1286 = vmul.f32 %v1130, %v1270
        %v1287 = vmul.f32 %v1135, %v1271
        %v1288 = vmul.f32 %v1138, %v1272
        %v1289 = vmul.f32 %v1143, %v1273
        %v1290 = vmul.f32 %v1146, %v1274
        %v1291 = vmul.f32 %v1151, %v1275
        %v1292 = vmul.f32 %v1154, %v1276
        %v1293 = vmul.f32 %v1159, %v1277
        %v1294 = vmul.f32 %v1162, %v1278
        %v1295 = vmul.f32 %v1167, %v1279
        %v1296 = vmul.f32 %v1170, %v1280
        %v1297 = vmul.f32 %v1175, %v1281
        %v1298 = vmul.f32 %v1178, %v1282
        %v1299 = vmul.f32 %v1183, %v1283
        %v1300 = vmul.f32 %v1186, %v1284
        %v1301 = vand.u32 2147483647, %v1127
        %v1302 = vand.u32 2147483647, %v1130
        %v1303 = vand.u32 2147483647, %v1135
        %v1304 = vand.u32 2147483647, %v1138
        %v1305 = vand.u32 2147483647, %v1143
        %v1306 = vand.u32 2147483647, %v1146
        %v1307 = vand.u32 2147483647, %v1151
        %v1308 = vand.u32 2147483647, %v1154
        %v1309 = vand.u32 2147483647, %v1159
        %v1310 = vand.u32 2147483647, %v1162
        %v1311 = vand.u32 2147483647, %v1167
        %v1312 = vand.u32 2147483647, %v1170
        %v1313 = vand.u32 2147483647, %v1175
        %v1314 = vand.u32 2147483647, %v1178
        %v1315 = vand.u32 2147483647, %v1183
        %v1316 = vand.u32 2147483647, %v1186
        %vm1317 = vcmp.lt.f32.partialorder %v1301, 0.2
        %vm1318 = vcmp.lt.f32.partialorder %v1302, 0.2
        %vm1319 = vcmp.lt.f32.partialorder %v1303, 0.2
        %vm1320 = vcmp.lt.f32.partialorder %v1304, 0.2
        %vm1321 = vcmp.lt.f32.partialorder %v1305, 0.2
        %vm1322 = vcmp.lt.f32.partialorder %v1306, 0.2
        %vm1323 = vcmp.lt.f32.partialorder %v1307, 0.2
        %vm1324 = vcmp.lt.f32.partialorder %v1308, 0.2
        %vm1325 = vcmp.lt.f32.partialorder %v1309, 0.2
        %vm1326 = vcmp.lt.f32.partialorder %v1310, 0.2
        %vm1327 = vcmp.lt.f32.partialorder %v1311, 0.2
        %vm1328 = vcmp.lt.f32.partialorder %v1312, 0.2
        %vm1329 = vcmp.lt.f32.partialorder %v1313, 0.2
        %vm1330 = vcmp.lt.f32.partialorder %v1314, 0.2
        %vm1331 = vcmp.lt.f32.partialorder %v1315, 0.2
        %vm1332 = vcmp.lt.f32.partialorder %v1316, 0.2
        %v1333 = vmul.f32 %v1127, 1.442695
        %v1334 = vpow.pop %v1333
        %v1335 = vmul.f32 %v1130, 1.442695
        %v1336 = vpow.pop %v1335
        %v1337 = vmul.f32 %v1135, 1.442695
        %v1338 = vpow.pop %v1337
        %v1339 = vmul.f32 %v1138, 1.442695
        %v1340 = vpow.pop %v1339
        %v1341 = vmul.f32 %v1143, 1.442695
        %v1342 = vpow.pop %v1341
        %v1343 = vmul.f32 %v1146, 1.442695
        %v1344 = vpow.pop %v1343
        %v1345 = vmul.f32 %v1151, 1.442695
        %v1346 = vpow.pop %v1345
        %v1347 = vmul.f32 %v1154, 1.442695
        %v1348 = vpow.pop %v1347
        %v1349 = vmul.f32 %v1159, 1.442695
        %v1350 = vpow.pop %v1349
        %v1351 = vmul.f32 %v1162, 1.442695
        %v1352 = vpow.pop %v1351
        %v1353 = vmul.f32 %v1167, 1.442695
        %v1354 = vpow.pop %v1353
        %v1355 = vmul.f32 %v1170, 1.442695
        %v1356 = vpow.pop %v1355
        %v1357 = vmul.f32 %v1175, 1.442695
        %v1358 = vpow.pop %v1357
        %v1359 = vmul.f32 %v1178, 1.442695
        %v1360 = vpow.pop %v1359
        %v1361 = vmul.f32 %v1183, 1.442695
        %v1362 = vpow.pop %v1361
        %v1363 = vmul.f32 %v1186, 1.442695
        %v1364 = vpow.pop %v1363
        %v1365 = vsub.f32 %v1334, 1.0
        %v1366 = vsub.f32 %v1336, 1.0
        %v1367 = vsub.f32 %v1338, 1.0
        %v1368 = vsub.f32 %v1340, 1.0
        %v1369 = vsub.f32 %v1342, 1.0
        %v1370 = vsub.f32 %v1344, 1.0
        %v1371 = vsub.f32 %v1346, 1.0
        %v1372 = vsub.f32 %v1348, 1.0
        %v1373 = vsub.f32 %v1350, 1.0
        %v1374 = vsub.f32 %v1352, 1.0
        %v1375 = vsub.f32 %v1354, 1.0
        %v1376 = vsub.f32 %v1356, 1.0
        %v1377 = vsub.f32 %v1358, 1.0
        %v1378 = vsub.f32 %v1360, 1.0
        %v1379 = vsub.f32 %v1362, 1.0
        %v1380 = vsub.f32 %v1364, 1.0
        %v1381 = vsel %vm1317, %v1285, %v1365
        %v1382 = vsel %vm1318, %v1286, %v1366
        %v1383 = vsel %vm1319, %v1287, %v1367
        %v1384 = vsel %vm1320, %v1288, %v1368
        %v1385 = vsel %vm1321, %v1289, %v1369
        %v1386 = vsel %vm1322, %v1290, %v1370
        %v1387 = vsel %vm1323, %v1291, %v1371
        %v1388 = vsel %vm1324, %v1292, %v1372
        %v1389 = vsel %vm1325, %v1293, %v1373
        %v1390 = vsel %vm1326, %v1294, %v1374
        %v1391 = vsel %vm1327, %v1295, %v1375
        %v1392 = vsel %vm1328, %v1296, %v1376
        %v1393 = vsel %vm1329, %v1297, %v1377
        %v1394 = vsel %vm1330, %v1298, %v1378
        %v1395 = vsel %vm1331, %v1299, %v1379
        %v1396 = vsel %vm1332, %v1300, %v1380
        %v1397 = vsel %vm1189, %v1127, %v1381
        %v1398 = vsel %vm1190, %v1130, %v1382
        %v1399 = vsel %vm1191, %v1135, %v1383
        %v1400 = vsel %vm1192, %v1138, %v1384
        %v1401 = vsel %vm1193, %v1143, %v1385
        %v1402 = vsel %vm1194, %v1146, %v1386
        %v1403 = vsel %vm1195, %v1151, %v1387
        %v1404 = vsel %vm1196, %v1154, %v1388
        %v1405 = vsel %vm1197, %v1159, %v1389
        %v1406 = vsel %vm1198, %v1162, %v1390
        %v1407 = vsel %vm1199, %v1167, %v1391
        %v1408 = vsel %vm1200, %v1170, %v1392
        %v1409 = vsel %vm1201, %v1175, %v1393
        %v1410 = vsel %vm1202, %v1178, %v1394
        %v1411 = vsel %vm1203, %v1183, %v1395
        %v1412 = vsel %vm1204, %v1186, %v1396
        %v1413 = vld [vmem:[%s4] sm:$0xf]
        %v1414 = vld [vmem:[%s4 + $0x4] sm:$0xf]
        %v1415 = vld [vmem:[%s4 + $0x8] sm:$0xf]
        %v1416 = vld [vmem:[%s4 + $0xc] sm:$0xf]
        %v1417 = vld [vmem:[%s4 + $0x10] sm:$0xf]
        %v1418 = vld [vmem:[%s4 + $0x14] sm:$0xf]
        %v1419 = vld [vmem:[%s4 + $0x18] sm:$0xf]
        %v1420 = vld [vmem:[%s4 + $0x1c] sm:$0xf]
        %v1421 = vld [vmem:[%s4 + $0x20] sm:$0xf]
        %v1422 = vld [vmem:[%s4 + $0x24] sm:$0xf]
        %v1423 = vld [vmem:[%s4 + $0x28] sm:$0xf]
        %v1424 = vld [vmem:[%s4 + $0x2c] sm:$0xf]
        %v1425 = vld [vmem:[%s4 + $0x30] sm:$0xf]
        %v1426 = vld [vmem:[%s4 + $0x34] sm:$0xf]
        %v1427 = vld [vmem:[%s4 + $0x38] sm:$0xf]
        %v1428 = vld [vmem:[%s4 + $0x3c] sm:$0xf]
        %v1429 = vpack.c.bf16 %v1398, %v1397
        %v1430 = vpack.c.bf16 %v1400, %v1399
        %v1431 = vpack.c.bf16 %v1402, %v1401
        %v1432 = vpack.c.bf16 %v1404, %v1403
        %v1433 = vpack.c.bf16 %v1406, %v1405
        %v1434 = vpack.c.bf16 %v1408, %v1407
        %v1435 = vpack.c.bf16 %v1410, %v1409
        %v1436 = vpack.c.bf16 %v1412, %v1411
        %v1453 = vunpack.c.l.b16 %v1413
        %v1454 = vunpack.c.l.b16 %v1414
        %v1455 = vunpack.c.l.b16 %v1415
        %v1456 = vunpack.c.l.b16 %v1416
        %v1457 = vunpack.c.l.b16 %v1417
        %v1458 = vunpack.c.l.b16 %v1418
        %v1459 = vunpack.c.l.b16 %v1419
        %v1460 = vunpack.c.l.b16 %v1420
        %v1461 = vunpack.c.l.b16 %v1421
        %v1462 = vunpack.c.l.b16 %v1422
        %v1463 = vunpack.c.l.b16 %v1423
        %v1464 = vunpack.c.l.b16 %v1424
        %v1465 = vunpack.c.l.b16 %v1425
        %v1466 = vunpack.c.l.b16 %v1426
        %v1467 = vunpack.c.l.b16 %v1427
        %v1468 = vunpack.c.l.b16 %v1428
        %v1469 = vpack.c.b16 %v1454, %v1453
        %v1470 = vpack.c.b16 %v1456, %v1455
        %v1471 = vpack.c.b16 %v1458, %v1457
        %v1472 = vpack.c.b16 %v1460, %v1459
        %v1473 = vpack.c.b16 %v1462, %v1461
        %v1474 = vpack.c.b16 %v1464, %v1463
        %v1475 = vpack.c.b16 %v1466, %v1465
        %v1476 = vpack.c.b16 %v1468, %v1467
        %1485 = vxpose.xlu0.c.b16.start [1/8] %v1469, 128
        %1486 = vxpose.xlu0.c.b16.cont [2/8] %v1470, 128
        %1487 = vxpose.xlu0.c.b16.cont [3/8] %v1471, 128
        %1488 = vxpose.xlu0.c.b16.cont [4/8] %v1472, 128
        %1489 = vxpose.xlu0.c.b16.cont [5/8] %v1473, 128
        %1490 = vxpose.xlu0.c.b16.cont [6/8] %v1474, 128
        %1491 = vxpose.xlu0.c.b16.cont [7/8] %v1475, 128
        %1492 = vxpose.xlu0.c.b16.end [8/8] %v1476, 128
        %v1493 = vpop.trf.xlu0
        %v1494 = vpop.trf.xlu0
        %v1495 = vpop.trf.xlu0
        %v1496 = vpop.trf.xlu0
        %v1497 = vpop.trf.xlu0
        %v1498 = vpop.trf.xlu0
        %v1499 = vpop.trf.xlu0
        %v1500 = vpop.trf.xlu0
        %1501 = vmatprep.subr.bf16.mxu0 0
        %1502 = vmatpush1.bf16.xpose.msra.mxu0 %v1436
        %1503 = vmatprep.subr.bf16.mxu0 0
        %1504 = vmatpush1.bf16.xpose.msra.mxu0 %v1435
        %1505 = vmatprep.subr.bf16.mxu0 0
        %1506 = vmatpush1.bf16.xpose.msra.mxu0 %v1434
        %1507 = vmatprep.subr.bf16.mxu0 0
        %1508 = vmatpush1.bf16.xpose.msra.mxu0 %v1433
        %1509 = vmatprep.subr.bf16.mxu0 0
        %1510 = vmatpush1.bf16.xpose.msra.mxu0 %v1432
        %1511 = vmatprep.subr.bf16.mxu0 0
        %1512 = vmatpush1.bf16.xpose.msra.mxu0 %v1431
        %1513 = vmatprep.subr.bf16.mxu0 0
        %1514 = vmatpush1.bf16.xpose.msra.mxu0 %v1430
        %1515 = vmatprep.subr.bf16.mxu0 0
        %1516 = vmatpush1.bf16.xpose.msra.mxu0 %v1429
        %1517 = vmatprep.subr.bf16.mxu0 0
        %1518 = vmatpush2.bf16.xpose.msra.mxu0 0
        %1519 = vmatprep.subr.bf16.mxu0 0
        %1520 = vmatpush2.bf16.xpose.msra.mxu0 0
        %1521 = vmatprep.subr.bf16.mxu0 0
        %1522 = vmatpush2.bf16.xpose.msra.mxu0 0
        %1523 = vmatprep.subr.bf16.mxu0 0
        %1524 = vmatpush2.bf16.xpose.msra.mxu0 0
        %1525 = vmatprep.subr.bf16.mxu0 0
        %1526 = vmatpush2.bf16.xpose.msra.mxu0 0
        %1527 = vmatprep.subr.bf16.mxu0 0
        %1528 = vmatpush2.bf16.xpose.msra.mxu0 0
        %1529 = vmatprep.subr.bf16.mxu0 0
        %1530 = vmatpush2.bf16.xpose.msra.mxu0 0
        %1531 = vmatprep.subr.bf16.mxu0 0
        %1532 = vmatpush2.bf16.xpose.msra.mxu0 0
        %1533 = vmatprep.mubr.bf16.mxu0 0
        %1534 = vmatmul.mubr.bf16.gmra.mxu0 %v1493
        %v1535 = vpop.f32.mrf.mxu0
        %v1536 = vadd.f32 0.0, %v1535
        %v1537 = vpop.f32.mrf.mxu0
        %v1538 = vpop.f32.mrf.mxu0
        %v1539 = vpop.f32.mrf.mxu0
        %1540 = vdwg.mxu0
        %v1541 = vmul.f32 %v1536, 0.0078125
        %vm1542 = vcmp.gt.f32.partialorder %v1541, 0.0
        %v1543 = vmul.f32 %v1541, 0.5
        %v1544 = vmul.f32 %v1541, 0.33333334
        %v1545 = vadd.f32 %v1544, 1.0
        %v1546 = vmul.f32 %v1543, %v1545
        %v1547 = vadd.f32 %v1546, 1.0
        %v1548 = vmul.f32 %v1541, %v1547
        %v1549 = vand.u32 2147483647, %v1541
        %vm1550 = vcmp.lt.f32.partialorder %v1549, 0.2
        %v1551 = vmul.f32 %v1541, 1.442695
        %v1552 = vpow.pop %v1551
        %v1553 = vsub.f32 %v1552, 1.0
        %v1554 = vsel %vm1550, %v1548, %v1553
        %v1555 = vsel %vm1542, %v1541, %v1554
        %1556 = vst [vmem:[%s217] sm:$0x1] %v1555
        %s1557 = sand.u32 %s137, 1
        %s1558 = scalar_lea.sflag [#allocation3], %s1557
        %s1559 = sand.u32 %s137, 1
        %s1560 = scalar_lea.vmem [#allocation2], %s1559
        // Predicated region
        $region41: #{tpu_custom_call.1} parent=39 // pred_check
          %p1561 = pneg %p147
        $region42: #{tpu_custom_call.1} parent=39 // pred_check_branch
          %1563 = sbr.rel (%p1561) target = $region44
        $region43: #{tpu_custom_call.1} parent=39 // pred_region
          %s1565 = ssub.s32 16, 16
          %1566 = vsyncadd %s1558, %s1565
          %s1567 = smul.addr %s19, 16
          %s1568 = scalar_lea.hbm %s5, %s1567
          %s1570 = sshll.u32 %s1560, 4
          %s1571 = int_to_ptr.vmem [resolvable:$true] %s1570
          %1573 = dma.vmem_to_hbm [thread:$0]  %s1571, 16, %s1568, %s1558
        $region44: #{tpu_custom_call.1} parent=39 // pred_fallthru
          _
      $region40: #{tpu_custom_call.1} parent=5 // pred_fallthru
        _
      %p1574 = scmp.le.s32.totalorder 2, %s14
      // Predicated region
      $region45: #{tpu_custom_call.1} parent=5 // pred_check
        %p1575 = pneg %p1574
      $region46: #{tpu_custom_call.1} parent=5 // pred_check_branch
        %1577 = sbr.rel (%p1575) target = $region48
      $region47: #{tpu_custom_call.1} parent=5 // pred_region
        %s1578 = ssub.s32 %s14, 2
        // Predicated region
        $region49: #{tpu_custom_call.1} parent=47 // pred_check
          %p1579 = pneg %p153
        $region50: #{tpu_custom_call.1} parent=47 // pred_check_branch
          %1581 = sbr.rel (%p1579) target = $region52
        $region51: #{tpu_custom_call.1} parent=47 // pred_region
          %s1582 = sand.u32 %s138, 1
          %s1583 = scalar_lea.sflag [#allocation3], %s1582
          %s1584 = sand.u32 %s138, 1
          %s1585 = scalar_lea.vmem [#allocation2], %s1584
          %1586 = dma.done %s1583, 16
        $region52: #{tpu_custom_call.1} parent=47 // pred_fallthru
          _
      $region48: #{tpu_custom_call.1} parent=5 // pred_fallthru
        _
    $region6: #{tpu_custom_call.1} parent=1 // loop_footer
      %s18 = sadd.s32 1, %s14
    $region7: #{tpu_custom_call.1} parent=1 // loop_footer_branch
      %13 = sbr.rel target = $region3
    $region8: #{tpu_custom_call.1} parent=1 // loop_exit
      _
    %1587 = vsyncpa [#allocation3], 1
    %s1588 = scalar_lea.sflag [#allocation3], 1
    %1589 = vsyncpa %s1588, 1

// kernel: tpu_custom_call.1
$region0: #{tpu_custom_call.1}
  #allocation0 [shape = 'u32[]', space=smem, size = 0x4, offset = 0x4, fixed_abs, tag = 'smem constant byte address 0x4 - core index']
  #allocation1 [shape = 'u32[144,128]{1,0:T(1,128)}', space=vmem, size = 0x12000, scoped, tag = 'internal scratch']
  %s0 = inlined_call_operand.vmem [shape: f32[256,64], index: 0, kind: input, shape index: {}]
  %s1 = inlined_call_operand.vmem [shape: bf16[64,128], index: 1, kind: input, shape index: {}]
  %s2 = inlined_call_operand.vmem [shape: bf16[128,128], index: 2, kind: input, shape index: {}]
  %s3 = inlined_call_operand.vmem [shape: bf16[128,128], index: 3, kind: input, shape index: {}]
  %s4 = inlined_call_operand.vmem [shape: bf16[128,1], index: 4, kind: input, shape index: {}]
  %s5 = inlined_call_operand.hbm [shape: f32[1,256], index: 5, kind: output, shape index: {}]
  %s6 = sld [smem:[#allocation0]]
  $region53: #{tpu_custom_call.1} parent=0
    _
  %s8 = ssub.s32 1, %s6
  %s9 = scalar_select 0, %s8, %s6
  $region1: #{tpu_custom_call.1} parent=0
    #allocation2 [shape = 'u8[1024]{0}', space=vmem, size = 0x400, scoped, tag = 'output window, operand 0']
    #allocation3 [shape = 's32[2]{0}', space=sflag, size = 0x8, scoped, tag = 'scoped memory for tpu_custom_call.1']
    %10 = vsyncpa [#allocation3], 0
    %s11 = scalar_lea.sflag [#allocation3], 1
    %12 = vsyncpa %s11, 0
    loop: start=0, step=1, limit=4
    $region2: #{tpu_custom_call.1} parent=1 // loop_pre_header
      _
    $region3: #{tpu_custom_call.1} parent=1 // loop_header
      %s14 = sphi 0, %s18
      %p15 = scmp.ge.s32.totalorder %s14, 4
      %s24 = sphi 0, %s26
      %s27 = sphi 0, %s24
      %s28 = sphi 0, %s27
      %s44 = sphi 0, %s28
      %s48 = sphi 0, %s48
      %s50 = sphi 0, %s48
      %s51 = sphi 0, %s50
      %s65 = sphi 0, %s51
      %s69 = sphi 0, %s69
      %s71 = sphi 0, %s69
      %s72 = sphi 0, %s71
      %s86 = sphi 0, %s72
      %s90 = sphi 0, %s90
      %s92 = sphi 0, %s90
      %s93 = sphi 0, %s92
      %s107 = sphi 0, %s93
      %s111 = sphi 0, %s111
      %s113 = sphi 0, %s111
      %s114 = sphi 0, %s113
      %s128 = sphi 0, %s114
      %s134 = sphi 0, %s136
      %s137 = sphi 0, %s134
      %s138 = sphi 0, %s137
      %s154 = sphi 0, %s138
    $region4: #{tpu_custom_call.1} parent=1 // loop_header_branch
      %17 = sbr.rel (%p15) target = $region8
    $region5: #{tpu_custom_call.1} parent=1 // loop_body
      %s19 = ssub.s32 %s14, 1
      %s20 = ssub.s32 %s14, 2
      %s21 = sadd.s32 %s14, 1
      %s22 = ssub.s32 %s14, %s21
      %p23 = scmp.eq.s32.totalorder %s22, 0
      %s25 = sadd.s32 %s24, 1
      %s26 = scalar_select %p23, %s24, %s25
      %p29 = pneg %p23
      %p30 = scmp.eq.s32.totalorder %s14, 1
      %p31 = por %p29, %p30
      %p32 = scmp.ne.s32.totalorder %s24, %s27
      %p33 = scmp.eq.s32.totalorder %s14, 0
      %p34 = por %p32, %p33
      %p35 = scmp.ne.s32.totalorder %s24, %s27
      %p36 = scmp.eq.s32.totalorder %s19, 1
      %p37 = por %p35, %p36
      %p38 = scmp.ne.s32.totalorder %s27, %s28
      %p39 = scmp.eq.s32.totalorder %s19, 0
      %p40 = por %p38, %p39
      %p41 = scmp.ne.s32.totalorder %s27, %s28
      %p42 = scmp.eq.s32.totalorder %s20, 1
      %p43 = por %p41, %p42
      %p45 = scmp.ne.s32.totalorder %s28, %s44
      %p46 = scmp.eq.s32.totalorder %s20, 0
      %p47 = por %p45, %p46
      %s49 = sadd.s32 %s48, 1
      %p52 = scmp.eq.s32.totalorder %s14, 1
      %p53 = scmp.ne.s32.totalorder %s48, %s50
      %p54 = scmp.eq.s32.totalorder %s14, 0
      %p55 = por %p53, %p54
      %p56 = scmp.ne.s32.totalorder %s48, %s50
      %p57 = scmp.eq.s32.totalorder %s19, 1
      %p58 = por %p56, %p57
      %p59 = scmp.ne.s32.totalorder %s50, %s51
      %p60 = scmp.eq.s32.totalorder %s19, 0
      %p61 = por %p59, %p60
      %p62 = scmp.ne.s32.totalorder %s50, %s51
      %p63 = scmp.eq.s32.totalorder %s20, 1
      %p64 = por %p62, %p63
      %p66 = scmp.ne.s32.totalorder %s51, %s65
      %p67 = scmp.eq.s32.totalorder %s20, 0
      %p68 = por %p66, %p67
      %s70 = sadd.s32 %s69, 1
      %p73 = scmp.eq.s32.totalorder %s14, 1
      %p74 = scmp.ne.s32.totalorder %s69, %s71
      %p75 = scmp.eq.s32.totalorder %s14, 0
      %p76 = por %p74, %p75
      %p77 = scmp.ne.s32.totalorder %s69, %s71
      %p78 = scmp.eq.s32.totalorder %s19, 1
      %p79 = por %p77, %p78
      %p80 = scmp.ne.s32.totalorder %s71, %s72
      %p81 = scmp.eq.s32.totalorder %s19, 0
      %p82 = por %p80, %p81
      %p83 = scmp.ne.s32.totalorder %s71, %s72
      %p84 = scmp.eq.s32.totalorder %s20, 1
      %p85 = por %p83, %p84
      %p87 = scmp.ne.s32.totalorder %s72, %s86
      %p88 = scmp.eq.s32.totalorder %s20, 0
      %p89 = por %p87, %p88
      %s91 = sadd.s32 %s90, 1
      %p94 = scmp.eq.s32.totalorder %s14, 1
      %p95 = scmp.ne.s32.totalorder %s90, %s92
      %p96 = scmp.eq.s32.totalorder %s14, 0
      %p97 = por %p95, %p96
      %p98 = scmp.ne.s32.totalorder %s90, %s92
      %p99 = scmp.eq.s32.totalorder %s19, 1
      %p100 = por %p98, %p99
      %p101 = scmp.ne.s32.totalorder %s92, %s93
      %p102 = scmp.eq.s32.totalorder %s19, 0
      %p103 = por %p101, %p102
      %p104 = scmp.ne.s32.totalorder %s92, %s93
      %p105 = scmp.eq.s32.totalorder %s20, 1
      %p106 = por %p104, %p105
      %p108 = scmp.ne.s32.totalorder %s93, %s107
      %p109 = scmp.eq.s32.totalorder %s20, 0
      %p110 = por %p108, %p109
      %s112 = sadd.s32 %s111, 1
      %p115 = scmp.eq.s32.totalorder %s14, 1
      %p116 = scmp.ne.s32.totalorder %s111, %s113
      %p117 = scmp.eq.s32.totalorder %s14, 0
      %p118 = por %p116, %p117
      %p119 = scmp.ne.s32.totalorder %s111, %s113
      %p120 = scmp.eq.s32.totalorder %s19, 1
      %p121 = por %p119, %p120
      %p122 = scmp.ne.s32.totalorder %s113, %s114
      %p123 = scmp.eq.s32.totalorder %s19, 0
      %p124 = por %p122, %p123
      %p125 = scmp.ne.s32.totalorder %s113, %s114
      %p126 = scmp.eq.s32.totalorder %s20, 1
      %p127 = por %p125, %p126
      %p129 = scmp.ne.s32.totalorder %s114, %s128
      %p130 = scmp.eq.s32.totalorder %s20, 0
      %p131 = por %p129, %p130
      %s132 = ssub.s32 %s14, %s21
      %p133 = scmp.eq.s32.totalorder %s132, 0
      %s135 = sadd.s32 %s134, 1
      %s136 = scalar_select %p133, %s134, %s135
      %p139 = pneg %p133
      %p140 = scmp.eq.s32.totalorder %s14, 1
      %p141 = por %p139, %p140
      %p142 = scmp.ne.s32.totalorder %s134, %s137
      %p143 = scmp.eq.s32.totalorder %s14, 0
      %p144 = por %p142, %p143
      %p145 = scmp.ne.s32.totalorder %s134, %s137
      %p146 = scmp.eq.s32.totalorder %s19, 1
      %p147 = por %p145, %p146
      %p148 = scmp.ne.s32.totalorder %s137, %s138
      %p149 = scmp.eq.s32.totalorder %s19, 0
      %p150 = por %p148, %p149
      %p151 = scmp.ne.s32.totalorder %s137, %s138
      %p152 = scmp.eq.s32.totalorder %s20, 1
      %p153 = por %p151, %p152
      %p155 = scmp.ne.s32.totalorder %s138, %s154
      %p156 = scmp.eq.s32.totalorder %s20, 0
      %p157 = por %p155, %p156
      %p158 = scmp.le.s32.totalorder 1, %s14
      %p159 = scmp.lt.s32.totalorder %s14, 3
      %p160 = pnand %p158, %p159
      %p161 = pneg %p160
      // Predicated region
      $region9: #{tpu_custom_call.1} parent=5 // pred_check
        _
      $region10: #{tpu_custom_call.1} parent=5 // pred_check_branch
        %163 = sbr.rel (%p160) target = $region12
      $region11: #{tpu_custom_call.1} parent=5 // pred_region
        %s164 = ssub.s32 %s14, 1
        // Predicated region
        $region13: #{tpu_custom_call.1} parent=11 // pred_check
          %p165 = pneg %p61
        $region14: #{tpu_custom_call.1} parent=11 // pred_check_branch
          %167 = sbr.rel (%p165) target = $region16
        $region15: #{tpu_custom_call.1} parent=11 // pred_region
          _
        $region16: #{tpu_custom_call.1} parent=11 // pred_fallthru
          _
        // Predicated region
        $region17: #{tpu_custom_call.1} parent=11 // pred_check
          %p168 = pneg %p82
        $region18: #{tpu_custom_call.1} parent=11 // pred_check_branch
          %170 = sbr.rel (%p168) target = $region20
        $region19: #{tpu_custom_call.1} parent=11 // pred_region
          _
        $region20: #{tpu_custom_call.1} parent=11 // pred_fallthru
          _
        // Predicated region
        $region21: #{tpu_custom_call.1} parent=11 // pred_check
          %p171 = pneg %p103
        $region22: #{tpu_custom_call.1} parent=11 // pred_check_branch
          %173 = sbr.rel (%p171) target = $region24
        $region23: #{tpu_custom_call.1} parent=11 // pred_region
          _
        $region24: #{tpu_custom_call.1} parent=11 // pred_fallthru
          _
        // Predicated region
        $region25: #{tpu_custom_call.1} parent=11 // pred_check
          %p174 = pneg %p124
        $region26: #{tpu_custom_call.1} parent=11 // pred_check_branch
          %176 = sbr.rel (%p174) target = $region28
        $region27: #{tpu_custom_call.1} parent=11 // pred_region
          _
        $region28: #{tpu_custom_call.1} parent=11 // pred_fallthru
          _
      $region12: #{tpu_custom_call.1} parent=5 // pred_fallthru
        _
      %p177 = scmp.lt.s32.totalorder %s14, 2
      // Predicated region
      $region29: #{tpu_custom_call.1} parent=5 // pred_check
        %p178 = pneg %p177
      $region30: #{tpu_custom_call.1} parent=5 // pred_check_branch
        %180 = sbr.rel (%p178) target = $region32
      $region31: #{tpu_custom_call.1} parent=5 // pred_region
        // Predicated region
        $region33: #{tpu_custom_call.1} parent=31 // pred_check
          %p181 = pneg %p34
        $region34: #{tpu_custom_call.1} parent=31 // pred_check_branch
          %183 = sbr.rel (%p181) target = $region36
        $region35: #{tpu_custom_call.1} parent=31 // pred_region
          %s184 = smul.u32 16, %s14
          %p185 = scmp.lt.s32.totalorder %s184, 31
          %s186 = scalar_select %p185, %s184, 31
          %s187 = smul.addr %s186, 8
          %s188 = scalar_lea.vmem %s0, %s187
          %s189 = smul.u32 16, %s14
        $region36: #{tpu_custom_call.1} parent=31 // pred_fallthru
          _
      $region32: #{tpu_custom_call.1} parent=5 // pred_fallthru
        _
      %p190 = scmp.le.s32.totalorder 1, %s14
      %p191 = scmp.lt.s32.totalorder %s14, 3
      %p192 = pnand %p190, %p191
      %p193 = pneg %p192
      // Predicated region
      $region37: #{tpu_custom_call.1} parent=5 // pred_check
        _
      $region38: #{tpu_custom_call.1} parent=5 // pred_check_branch
        %195 = sbr.rel (%p192) target = $region40
      $region39: #{tpu_custom_call.1} parent=5 // pred_region
        %s196 = ssub.s32 %s14, 1
        %s197 = smul.u32 16, %s19
        %p198 = scmp.lt.s32.totalorder %s197, 31
        %s199 = scalar_select %p198, %s197, 31
        %s200 = smul.addr %s199, 8
        %s201 = scalar_lea.vmem %s0, %s200
        %p202 = pneg %p40
        %p203 = pneg %p37
        %p204 = pneg %p61
        %p205 = pneg %p58
        %p206 = pneg %p82
        %p207 = pneg %p79
        %p208 = pneg %p103
        %p209 = pneg %p100
        %p210 = pneg %p124
        %p211 = pneg %p121
        %p212 = pneg %p150
        %p213 = pneg %p147
        %s214 = sand.u32 %s137, 1
        %s215 = scalar_lea.sflag [#allocation3], %s214
        %s216 = sand.u32 %s137, 1
        %s217 = scalar_lea.vmem [#allocation2], %s216
        %s218 = smul.u32 16, %s19
        %p219 = scmp.lt.s32.totalorder %s218, 31
        %s220 = scalar_select %p219, %s218, 31
        %s221 = smul.addr %s220, 8
        %s222 = scalar_lea.vmem %s0, %s221
        %s223 = smul.u32 16, %s19
        %v225 = vld [vmem:[%s222] sm:$0xff]
        %v226 = vld [vmem:[%s222 + $0x8] sm:$0xff]
        %v227 = vld [vmem:[%s222 + $0x10] sm:$0xff]
        %v228 = vld [vmem:[%s222 + $0x18] sm:$0xff]
        %v229 = vld [vmem:[%s222 + $0x20] sm:$0xff]
        %v230 = vld [vmem:[%s222 + $0x28] sm:$0xff]
        %v231 = vld [vmem:[%s222 + $0x30] sm:$0xff]
        %v232 = vld [vmem:[%s222 + $0x38] sm:$0xff]
        %v233 = vld [vmem:[%s222 + $0x40] sm:$0xff]
        %v234 = vld [vmem:[%s222 + $0x48] sm:$0xff]
        %v235 = vld [vmem:[%s222 + $0x50] sm:$0xff]
        %v236 = vld [vmem:[%s222 + $0x58] sm:$0xff]
        %v237 = vld [vmem:[%s222 + $0x60] sm:$0xff]
        %v238 = vld [vmem:[%s222 + $0x68] sm:$0xff]
        %v239 = vld [vmem:[%s222 + $0x70] sm:$0xff]
        %v240 = vld [vmem:[%s222 + $0x78] sm:$0xff]
        %v241 = vld [vmem:[%s1] sm:$0xf]
        %v242 = vld [vmem:[%s1 + $0x4] sm:$0xf]
        %v243 = vld [vmem:[%s1 + $0x8] sm:$0xf]
        %v244 = vld [vmem:[%s1 + $0xc] sm:$0xf]
        %v245 = vld [vmem:[%s1 + $0x10] sm:$0xf]
        %v246 = vld [vmem:[%s1 + $0x14] sm:$0xf]
        %v247 = vld [vmem:[%s1 + $0x18] sm:$0xf]
        %v248 = vld [vmem:[%s1 + $0x1c] sm:$0xf]
        %v249 = vpack.c.bf16 %v226, %v225
        %v250 = vpack.c.bf16 %v228, %v227
        %v251 = vpack.c.bf16 %v230, %v229
        %v252 = vpack.c.bf16 %v232, %v231
        %v253 = vpack.c.bf16 %v234, %v233
        %v254 = vpack.c.bf16 %v236, %v235
        %v255 = vpack.c.bf16 %v238, %v237
        %v256 = vpack.c.bf16 %v240, %v239
        %v265 = vunpack.c.l.b16 %v241
        %v266 = vunpack.c.l.b16 %v242
        %v267 = vunpack.c.l.b16 %v243
        %v268 = vunpack.c.l.b16 %v244
        %v269 = vunpack.c.l.b16 %v245
        %v270 = vunpack.c.l.b16 %v246
        %v271 = vunpack.c.l.b16 %v247
        %v272 = vunpack.c.l.b16 %v248
        %v273 = vpack.c.b16 %v266, %v265
        %v274 = vpack.c.b16 %v268, %v267
        %v275 = vpack.c.b16 %v270, %v269
        %v276 = vpack.c.b16 %v272, %v271
        %vm281 = vcmask 523264
        %v283 = vsel %vm281, %v249, 0
        %v286 = vsel %vm281, %v250, 0
        %v289 = vsel %vm281, %v251, 0
        %v292 = vsel %vm281, %v252, 0
        %v295 = vsel %vm281, %v253, 0
        %v298 = vsel %vm281, %v254, 0
        %v301 = vsel %vm281, %v255, 0
        %v304 = vsel %vm281, %v256, 0
        %306 = vmatprep.subr.bf16.mxu0 0
        %307 = vmatpush1.bf16.msra.mxu0 0
        %308 = vmatprep.subr.bf16.mxu0 0
        %309 = vmatpush1.bf16.msra.mxu0 0
        %310 = vmatprep.subr.bf16.mxu0 0
        %311 = vmatpush1.bf16.msra.mxu0 0
        %312 = vmatprep.subr.bf16.mxu0 0
        %313 = vmatpush1.bf16.msra.mxu0 0
        %314 = vmatprep.subr.bf16.mxu0 0
        %315 = vmatpush1.bf16.msra.mxu0 %v276
        %316 = vmatprep.subr.bf16.mxu0 0
        %317 = vmatpush1.bf16.msra.mxu0 %v275
        %318 = vmatprep.subr.bf16.mxu0 0
        %319 = vmatpush1.bf16.msra.mxu0 %v274
        %320 = vmatprep.subr.bf16.mxu0 0
        %321 = vmatpush1.bf16.msra.mxu0 %v273
        %322 = vmatprep.subr.bf16.mxu0 0
        %323 = vmatpush2.bf16.msra.mxu0 0
        %324 = vmatprep.subr.bf16.mxu0 0
        %325 = vmatpush2.bf16.msra.mxu0 0
        %326 = vmatprep.subr.bf16.mxu0 0
        %327 = vmatpush2.bf16.msra.mxu0 0
        %328 = vmatprep.subr.bf16.mxu0 0
        %329 = vmatpush2.bf16.msra.mxu0 0
        %330 = vmatprep.subr.bf16.mxu0 0
        %331 = vmatpush2.bf16.msra.mxu0 0
        %332 = vmatprep.subr.bf16.mxu0 0
        %333 = vmatpush2.bf16.msra.mxu0 0
        %334 = vmatprep.subr.bf16.mxu0 0
        %335 = vmatpush2.bf16.msra.mxu0 0
        %336 = vmatprep.subr.bf16.mxu0 0
        %337 = vmatpush2.bf16.msra.mxu0 0
        %338 = vmatprep.mubr.bf16.mxu0 0
        %339 = vmatmul.mubr.bf16.gmra.mxu0 %v283
        %v340 = vpop.f32.mrf.mxu0
        %v341 = vadd.f32 0.0, %v340
        %v342 = vpop.f32.mrf.mxu0
        %v343 = vpop.f32.mrf.mxu0
        %v344 = vadd.f32 0.0, %v343
        %v345 = vpop.f32.mrf.mxu0
        %346 = vmatprep.mubr.bf16.mxu0 0
        %347 = vmatmul.mubr.bf16.gmra.mxu0 %v286
        %v348 = vpop.f32.mrf.mxu0
        %v349 = vadd.f32 0.0, %v348
        %v350 = vpop.f32.mrf.mxu0
        %v351 = vpop.f32.mrf.mxu0
        %v352 = vadd.f32 0.0, %v351
        %v353 = vpop.f32.mrf.mxu0
        %354 = vmatprep.mubr.bf16.mxu0 0
        %355 = vmatmul.mubr.bf16.gmra.mxu0 %v289
        %v356 = vpop.f32.mrf.mxu0
        %v357 = vadd.f32 0.0, %v356
        %v358 = vpop.f32.mrf.mxu0
        %v359 = vpop.f32.mrf.mxu0
        %v360 = vadd.f32 0.0, %v359
        %v361 = vpop.f32.mrf.mxu0
        %362 = vmatprep.mubr.bf16.mxu0 0
        %363 = vmatmul.mubr.bf16.gmra.mxu0 %v292
        %v364 = vpop.f32.mrf.mxu0
        %v365 = vadd.f32 0.0, %v364
        %v366 = vpop.f32.mrf.mxu0
        %v367 = vpop.f32.mrf.mxu0
        %v368 = vadd.f32 0.0, %v367
        %v369 = vpop.f32.mrf.mxu0
        %370 = vmatprep.mubr.bf16.mxu0 0
        %371 = vmatmul.mubr.bf16.gmra.mxu0 %v295
        %v372 = vpop.f32.mrf.mxu0
        %v373 = vadd.f32 0.0, %v372
        %v374 = vpop.f32.mrf.mxu0
        %v375 = vpop.f32.mrf.mxu0
        %v376 = vadd.f32 0.0, %v375
        %v377 = vpop.f32.mrf.mxu0
        %378 = vmatprep.mubr.bf16.mxu0 0
        %379 = vmatmul.mubr.bf16.gmra.mxu0 %v298
        %v380 = vpop.f32.mrf.mxu0
        %v381 = vadd.f32 0.0, %v380
        %v382 = vpop.f32.mrf.mxu0
        %v383 = vpop.f32.mrf.mxu0
        %v384 = vadd.f32 0.0, %v383
        %v385 = vpop.f32.mrf.mxu0
        %386 = vmatprep.mubr.bf16.mxu0 0
        %387 = vmatmul.mubr.bf16.gmra.mxu0 %v301
        %v388 = vpop.f32.mrf.mxu0
        %v389 = vadd.f32 0.0, %v388
        %v390 = vpop.f32.mrf.mxu0
        %v391 = vpop.f32.mrf.mxu0
        %v392 = vadd.f32 0.0, %v391
        %v393 = vpop.f32.mrf.mxu0
        %394 = vmatprep.mubr.bf16.mxu0 0
        %395 = vmatmul.mubr.bf16.gmra.mxu0 %v304
        %v396 = vpop.f32.mrf.mxu0
        %v397 = vadd.f32 0.0, %v396
        %v398 = vpop.f32.mrf.mxu0
        %v399 = vpop.f32.mrf.mxu0
        %v400 = vadd.f32 0.0, %v399
        %v401 = vpop.f32.mrf.mxu0
        %402 = vdwg.mxu0
        %vm403 = vcmp.gt.f32.partialorder %v341, 0.0
        %vm404 = vcmp.gt.f32.partialorder %v344, 0.0
        %vm405 = vcmp.gt.f32.partialorder %v349, 0.0
        %vm406 = vcmp.gt.f32.partialorder %v352, 0.0
        %vm407 = vcmp.gt.f32.partialorder %v357, 0.0
        %vm408 = vcmp.gt.f32.partialorder %v360, 0.0
        %vm409 = vcmp.gt.f32.partialorder %v365, 0.0
        %vm410 = vcmp.gt.f32.partialorder %v368, 0.0
        %vm411 = vcmp.gt.f32.partialorder %v373, 0.0
        %vm412 = vcmp.gt.f32.partialorder %v376, 0.0
        %vm413 = vcmp.gt.f32.partialorder %v381, 0.0
        %vm414 = vcmp.gt.f32.partialorder %v384, 0.0
        %vm415 = vcmp.gt.f32.partialorder %v389, 0.0
        %vm416 = vcmp.gt.f32.partialorder %v392, 0.0
        %vm417 = vcmp.gt.f32.partialorder %v397, 0.0
        %vm418 = vcmp.gt.f32.partialorder %v400, 0.0
        %v419 = vmul.f32 %v341, 0.5
        %v420 = vmul.f32 %v344, 0.5
        %v421 = vmul.f32 %v349, 0.5
        %v422 = vmul.f32 %v352, 0.5
        %v423 = vmul.f32 %v357, 0.5
        %v424 = vmul.f32 %v360, 0.5
        %v425 = vmul.f32 %v365, 0.5
        %v426 = vmul.f32 %v368, 0.5
        %v427 = vmul.f32 %v373, 0.5
        %v428 = vmul.f32 %v376, 0.5
        %v429 = vmul.f32 %v381, 0.5
        %v430 = vmul.f32 %v384, 0.5
        %v431 = vmul.f32 %v389, 0.5
        %v432 = vmul.f32 %v392, 0.5
        %v433 = vmul.f32 %v397, 0.5
        %v434 = vmul.f32 %v400, 0.5
        %v435 = vmul.f32 %v341, 0.33333334
        %v436 = vmul.f32 %v344, 0.33333334
        %v437 = vmul.f32 %v349, 0.33333334
        %v438 = vmul.f32 %v352, 0.33333334
        %v439 = vmul.f32 %v357, 0.33333334
        %v440 = vmul.f32 %v360, 0.33333334
        %v441 = vmul.f32 %v365, 0.33333334
        %v442 = vmul.f32 %v368, 0.33333334
        %v443 = vmul.f32 %v373, 0.33333334
        %v444 = vmul.f32 %v376, 0.33333334
        %v445 = vmul.f32 %v381, 0.33333334
        %v446 = vmul.f32 %v384, 0.33333334
        %v447 = vmul.f32 %v389, 0.33333334
        %v448 = vmul.f32 %v392, 0.33333334
        %v449 = vmul.f32 %v397, 0.33333334
        %v450 = vmul.f32 %v400, 0.33333334
        %v451 = vadd.f32 %v435, 1.0
        %v452 = vadd.f32 %v436, 1.0
        %v453 = vadd.f32 %v437, 1.0
        %v454 = vadd.f32 %v438, 1.0
        %v455 = vadd.f32 %v439, 1.0
        %v456 = vadd.f32 %v440, 1.0
        %v457 = vadd.f32 %v441, 1.0
        %v458 = vadd.f32 %v442, 1.0
        %v459 = vadd.f32 %v443, 1.0
        %v460 = vadd.f32 %v444, 1.0
        %v461 = vadd.f32 %v445, 1.0
        %v462 = vadd.f32 %v446, 1.0
        %v463 = vadd.f32 %v447, 1.0
        %v464 = vadd.f32 %v448, 1.0
        %v465 = vadd.f32 %v449, 1.0
        %v466 = vadd.f32 %v450, 1.0
        %v467 = vmul.f32 %v419, %v451
        %v468 = vmul.f32 %v420, %v452
        %v469 = vmul.f32 %v421, %v453
        %v470 = vmul.f32 %v422, %v454
        %v471 = vmul.f32 %v423, %v455
        %v472 = vmul.f32 %v424, %v456
        %v473 = vmul.f32 %v425, %v457
        %v474 = vmul.f32 %v426, %v458
        %v475 = vmul.f32 %v427, %v459
        %v476 = vmul.f32 %v428, %v460
        %v477 = vmul.f32 %v429, %v461
        %v478 = vmul.f32 %v430, %v462
        %v479 = vmul.f32 %v431, %v463
        %v480 = vmul.f32 %v432, %v464
        %v481 = vmul.f32 %v433, %v465
        %v482 = vmul.f32 %v434, %v466
        %v483 = vadd.f32 %v467, 1.0
        %v484 = vadd.f32 %v468, 1.0
        %v485 = vadd.f32 %v469, 1.0
        %v486 = vadd.f32 %v470, 1.0
        %v487 = vadd.f32 %v471, 1.0
        %v488 = vadd.f32 %v472, 1.0
        %v489 = vadd.f32 %v473, 1.0
        %v490 = vadd.f32 %v474, 1.0
        %v491 = vadd.f32 %v475, 1.0
        %v492 = vadd.f32 %v476, 1.0
        %v493 = vadd.f32 %v477, 1.0
        %v494 = vadd.f32 %v478, 1.0
        %v495 = vadd.f32 %v479, 1.0
        %v496 = vadd.f32 %v480, 1.0
        %v497 = vadd.f32 %v481, 1.0
        %v498 = vadd.f32 %v482, 1.0
        %v499 = vmul.f32 %v341, %v483
        %v500 = vmul.f32 %v344, %v484
        %v501 = vmul.f32 %v349, %v485
        %v502 = vmul.f32 %v352, %v486
        %v503 = vmul.f32 %v357, %v487
        %v504 = vmul.f32 %v360, %v488
        %v505 = vmul.f32 %v365, %v489
        %v506 = vmul.f32 %v368, %v490
        %v507 = vmul.f32 %v373, %v491
        %v508 = vmul.f32 %v376, %v492
        %v509 = vmul.f32 %v381, %v493
        %v510 = vmul.f32 %v384, %v494
        %v511 = vmul.f32 %v389, %v495
        %v512 = vmul.f32 %v392, %v496
        %v513 = vmul.f32 %v397, %v497
        %v514 = vmul.f32 %v400, %v498
        %v515 = vand.u32 2147483647, %v341
        %v516 = vand.u32 2147483647, %v344
        %v517 = vand.u32 2147483647, %v349
        %v518 = vand.u32 2147483647, %v352
        %v519 = vand.u32 2147483647, %v357
        %v520 = vand.u32 2147483647, %v360
        %v521 = vand.u32 2147483647, %v365
        %v522 = vand.u32 2147483647, %v368
        %v523 = vand.u32 2147483647, %v373
        %v524 = vand.u32 2147483647, %v376
        %v525 = vand.u32 2147483647, %v381
        %v526 = vand.u32 2147483647, %v384
        %v527 = vand.u32 2147483647, %v389
        %v528 = vand.u32 2147483647, %v392
        %v529 = vand.u32 2147483647, %v397
        %v530 = vand.u32 2147483647, %v400
        %vm531 = vcmp.lt.f32.partialorder %v515, 0.2
        %vm532 = vcmp.lt.f32.partialorder %v516, 0.2
        %vm533 = vcmp.lt.f32.partialorder %v517, 0.2
        %vm534 = vcmp.lt.f32.partialorder %v518, 0.2
        %vm535 = vcmp.lt.f32.partialorder %v519, 0.2
        %vm536 = vcmp.lt.f32.partialorder %v520, 0.2
        %vm537 = vcmp.lt.f32.partialorder %v521, 0.2
        %vm538 = vcmp.lt.f32.partialorder %v522, 0.2
        %vm539 = vcmp.lt.f32.partialorder %v523, 0.2
        %vm540 = vcmp.lt.f32.partialorder %v524, 0.2
        %vm541 = vcmp.lt.f32.partialorder %v525, 0.2
        %vm542 = vcmp.lt.f32.partialorder %v526, 0.2
        %vm543 = vcmp.lt.f32.partialorder %v527, 0.2
        %vm544 = vcmp.lt.f32.partialorder %v528, 0.2
        %vm545 = vcmp.lt.f32.partialorder %v529, 0.2
        %vm546 = vcmp.lt.f32.partialorder %v530, 0.2
        %v547 = vmul.f32 %v341, 1.442695
        %v548 = vpow.pop %v547
        %v549 = vmul.f32 %v344, 1.442695
        %v550 = vpow.pop %v549
        %v551 = vmul.f32 %v349, 1.442695
        %v552 = vpow.pop %v551
        %v553 = vmul.f32 %v352, 1.442695
        %v554 = vpow.pop %v553
        %v555 = vmul.f32 %v357, 1.442695
        %v556 = vpow.pop %v555
        %v557 = vmul.f32 %v360, 1.442695
        %v558 = vpow.pop %v557
        %v559 = vmul.f32 %v365, 1.442695
        %v560 = vpow.pop %v559
        %v561 = vmul.f32 %v368, 1.442695
        %v562 = vpow.pop %v561
        %v563 = vmul.f32 %v373, 1.442695
        %v564 = vpow.pop %v563
        %v565 = vmul.f32 %v376, 1.442695
        %v566 = vpow.pop %v565
        %v567 = vmul.f32 %v381, 1.442695
        %v568 = vpow.pop %v567
        %v569 = vmul.f32 %v384, 1.442695
        %v570 = vpow.pop %v569
        %v571 = vmul.f32 %v389, 1.442695
        %v572 = vpow.pop %v571
        %v573 = vmul.f32 %v392, 1.442695
        %v574 = vpow.pop %v573
        %v575 = vmul.f32 %v397, 1.442695
        %v576 = vpow.pop %v575
        %v577 = vmul.f32 %v400, 1.442695
        %v578 = vpow.pop %v577
        %v579 = vsub.f32 %v548, 1.0
        %v580 = vsub.f32 %v550, 1.0
        %v581 = vsub.f32 %v552, 1.0
        %v582 = vsub.f32 %v554, 1.0
        %v583 = vsub.f32 %v556, 1.0
        %v584 = vsub.f32 %v558, 1.0
        %v585 = vsub.f32 %v560, 1.0
        %v586 = vsub.f32 %v562, 1.0
        %v587 = vsub.f32 %v564, 1.0
        %v588 = vsub.f32 %v566, 1.0
        %v589 = vsub.f32 %v568, 1.0
        %v590 = vsub.f32 %v570, 1.0
        %v591 = vsub.f32 %v572, 1.0
        %v592 = vsub.f32 %v574, 1.0
        %v593 = vsub.f32 %v576, 1.0
        %v594 = vsub.f32 %v578, 1.0
        %v595 = vsel %vm531, %v499, %v579
        %v596 = vsel %vm532, %v500, %v580
        %v597 = vsel %vm533, %v501, %v581
        %v598 = vsel %vm534, %v502, %v582
        %v599 = vsel %vm535, %v503, %v583
        %v600 = vsel %vm536, %v504, %v584
        %v601 = vsel %vm537, %v505, %v585
        %v602 = vsel %vm538, %v506, %v586
        %v603 = vsel %vm539, %v507, %v587
        %v604 = vsel %vm540, %v508, %v588
        %v605 = vsel %vm541, %v509, %v589
        %v606 = vsel %vm542, %v510, %v590
        %v607 = vsel %vm543, %v511, %v591
        %v608 = vsel %vm544, %v512, %v592
        %v609 = vsel %vm545, %v513, %v593
        %v610 = vsel %vm546, %v514, %v594
        %v611 = vsel %vm403, %v341, %v595
        %v612 = vsel %vm404, %v344, %v596
        %v613 = vsel %vm405, %v349, %v597
        %v614 = vsel %vm406, %v352, %v598
        %v615 = vsel %vm407, %v357, %v599
        %v616 = vsel %vm408, %v360, %v600
        %v617 = vsel %vm409, %v365, %v601
        %v618 = vsel %vm410, %v368, %v602
        %v619 = vsel %vm411, %v373, %v603
        %v620 = vsel %vm412, %v376, %v604
        %v621 = vsel %vm413, %v381, %v605
        %v622 = vsel %vm414, %v384, %v606
        %v623 = vsel %vm415, %v389, %v607
        %v624 = vsel %vm416, %v392, %v608
        %v625 = vsel %vm417, %v397, %v609
        %v626 = vsel %vm418, %v400, %v610
        %v627 = vld [vmem:[%s2] sm:$0xf]
        %v628 = vld [vmem:[%s2 + $0x4] sm:$0xf]
        %v629 = vld [vmem:[%s2 + $0x8] sm:$0xf]
        %v630 = vld [vmem:[%s2 + $0xc] sm:$0xf]
        %v631 = vld [vmem:[%s2 + $0x10] sm:$0xf]
        %v632 = vld [vmem:[%s2 + $0x14] sm:$0xf]
        %v633 = vld [vmem:[%s2 + $0x18] sm:$0xf]
        %v634 = vld [vmem:[%s2 + $0x1c] sm:$0xf]
        %v635 = vld [vmem:[%s2 + $0x20] sm:$0xf]
        %v636 = vld [vmem:[%s2 + $0x24] sm:$0xf]
        %v637 = vld [vmem:[%s2 + $0x28] sm:$0xf]
        %v638 = vld [vmem:[%s2 + $0x2c] sm:$0xf]
        %v639 = vld [vmem:[%s2 + $0x30] sm:$0xf]
        %v640 = vld [vmem:[%s2 + $0x34] sm:$0xf]
        %v641 = vld [vmem:[%s2 + $0x38] sm:$0xf]
        %v642 = vld [vmem:[%s2 + $0x3c] sm:$0xf]
        %v643 = vpack.c.bf16 %v612, %v611
        %v644 = vpack.c.bf16 %v614, %v613
        %v645 = vpack.c.bf16 %v616, %v615
        %v646 = vpack.c.bf16 %v618, %v617
        %v647 = vpack.c.bf16 %v620, %v619
        %v648 = vpack.c.bf16 %v622, %v621
        %v649 = vpack.c.bf16 %v624, %v623
        %v650 = vpack.c.bf16 %v626, %v625
        %v667 = vunpack.c.l.b16 %v627
        %v668 = vunpack.c.l.b16 %v628
        %v669 = vunpack.c.l.b16 %v629
        %v670 = vunpack.c.l.b16 %v630
        %v671 = vunpack.c.l.b16 %v631
        %v672 = vunpack.c.l.b16 %v632
        %v673 = vunpack.c.l.b16 %v633
        %v674 = vunpack.c.l.b16 %v634
        %v675 = vunpack.c.l.b16 %v635
        %v676 = vunpack.c.l.b16 %v636
        %v677 = vunpack.c.l.b16 %v637
        %v678 = vunpack.c.l.b16 %v638
        %v679 = vunpack.c.l.b16 %v639
        %v680 = vunpack.c.l.b16 %v640
        %v681 = vunpack.c.l.b16 %v641
        %v682 = vunpack.c.l.b16 %v642
        %v683 = vpack.c.b16 %v668, %v667
        %v684 = vpack.c.b16 %v670, %v669
        %v685 = vpack.c.b16 %v672, %v671
        %v686 = vpack.c.b16 %v674, %v673
        %v687 = vpack.c.b16 %v676, %v675
        %v688 = vpack.c.b16 %v678, %v677
        %v689 = vpack.c.b16 %v680, %v679
        %v690 = vpack.c.b16 %v682, %v681
        %699 = vmatprep.subr.bf16.mxu0 0
        %700 = vmatpush1.bf16.msra.mxu0 %v690
        %701 = vmatprep.subr.bf16.mxu0 0
        %702 = vmatpush1.bf16.msra.mxu0 %v689
        %703 = vmatprep.subr.bf16.mxu0 0
        %704 = vmatpush1.bf16.msra.mxu0 %v688
        %705 = vmatprep.subr.bf16.mxu0 0
        %706 = vmatpush1.bf16.msra.mxu0 %v687
        %707 = vmatprep.subr.bf16.mxu0 0
        %708 = vmatpush1.bf16.msra.mxu0 %v686
        %709 = vmatprep.subr.bf16.mxu0 0
        %710 = vmatpush1.bf16.msra.mxu0 %v685
        %711 = vmatprep.subr.bf16.mxu0 0
        %712 = vmatpush1.bf16.msra.mxu0 %v684
        %713 = vmatprep.subr.bf16.mxu0 0
        %714 = vmatpush1.bf16.msra.mxu0 %v683
        %715 = vmatprep.subr.bf16.mxu0 0
        %716 = vmatpush2.bf16.msra.mxu0 0
        %717 = vmatprep.subr.bf16.mxu0 0
        %718 = vmatpush2.bf16.msra.mxu0 0
        %719 = vmatprep.subr.bf16.mxu0 0
        %720 = vmatpush2.bf16.msra.mxu0 0
        %721 = vmatprep.subr.bf16.mxu0 0
        %722 = vmatpush2.bf16.msra.mxu0 0
        %723 = vmatprep.subr.bf16.mxu0 0
        %724 = vmatpush2.bf16.msra.mxu0 0
        %725 = vmatprep.subr.bf16.mxu0 0
        %726 = vmatpush2.bf16.msra.mxu0 0
        %727 = vmatprep.subr.bf16.mxu0 0
        %728 = vmatpush2.bf16.msra.mxu0 0
        %729 = vmatprep.subr.bf16.mxu0 0
        %730 = vmatpush2.bf16.msra.mxu0 0
        %731 = vmatprep.mubr.bf16.mxu0 0
        %732 = vmatmul.mubr.bf16.gmra.mxu0 %v643
        %v733 = vpop.f32.mrf.mxu0
        %v734 = vadd.f32 0.0, %v733
        %v735 = vpop.f32.mrf.mxu0
        %v736 = vpop.f32.mrf.mxu0
        %v737 = vadd.f32 0.0, %v736
        %v738 = vpop.f32.mrf.mxu0
        %739 = vmatprep.mubr.bf16.mxu0 0
        %740 = vmatmul.mubr.bf16.gmra.mxu0 %v644
        %v741 = vpop.f32.mrf.mxu0
        %v742 = vadd.f32 0.0, %v741
        %v743 = vpop.f32.mrf.mxu0
        %v744 = vpop.f32.mrf.mxu0
        %v745 = vadd.f32 0.0, %v744
        %v746 = vpop.f32.mrf.mxu0
        %747 = vmatprep.mubr.bf16.mxu0 0
        %748 = vmatmul.mubr.bf16.gmra.mxu0 %v645
        %v749 = vpop.f32.mrf.mxu0
        %v750 = vadd.f32 0.0, %v749
        %v751 = vpop.f32.mrf.mxu0
        %v752 = vpop.f32.mrf.mxu0
        %v753 = vadd.f32 0.0, %v752
        %v754 = vpop.f32.mrf.mxu0
        %755 = vmatprep.mubr.bf16.mxu0 0
        %756 = vmatmul.mubr.bf16.gmra.mxu0 %v646
        %v757 = vpop.f32.mrf.mxu0
        %v758 = vadd.f32 0.0, %v757
        %v759 = vpop.f32.mrf.mxu0
        %v760 = vpop.f32.mrf.mxu0
        %v761 = vadd.f32 0.0, %v760
        %v762 = vpop.f32.mrf.mxu0
        %763 = vmatprep.mubr.bf16.mxu0 0
        %764 = vmatmul.mubr.bf16.gmra.mxu0 %v647
        %v765 = vpop.f32.mrf.mxu0
        %v766 = vadd.f32 0.0, %v765
        %v767 = vpop.f32.mrf.mxu0
        %v768 = vpop.f32.mrf.mxu0
        %v769 = vadd.f32 0.0, %v768
        %v770 = vpop.f32.mrf.mxu0
        %771 = vmatprep.mubr.bf16.mxu0 0
        %772 = vmatmul.mubr.bf16.gmra.mxu0 %v648
        %v773 = vpop.f32.mrf.mxu0
        %v774 = vadd.f32 0.0, %v773
        %v775 = vpop.f32.mrf.mxu0
        %v776 = vpop.f32.mrf.mxu0
        %v777 = vadd.f32 0.0, %v776
        %v778 = vpop.f32.mrf.mxu0
        %779 = vmatprep.mubr.bf16.mxu0 0
        %780 = vmatmul.mubr.bf16.gmra.mxu0 %v649
        %v781 = vpop.f32.mrf.mxu0
        %v782 = vadd.f32 0.0, %v781
        %v783 = vpop.f32.mrf.mxu0
        %v784 = vpop.f32.mrf.mxu0
        %v785 = vadd.f32 0.0, %v784
        %v786 = vpop.f32.mrf.mxu0
        %787 = vmatprep.mubr.bf16.mxu0 0
        %788 = vmatmul.mubr.bf16.gmra.mxu0 %v650
        %v789 = vpop.f32.mrf.mxu0
        %v790 = vadd.f32 0.0, %v789
        %v791 = vpop.f32.mrf.mxu0
        %v792 = vpop.f32.mrf.mxu0
        %v793 = vadd.f32 0.0, %v792
        %v794 = vpop.f32.mrf.mxu0
        %795 = vdwg.mxu0
        %vm796 = vcmp.gt.f32.partialorder %v734, 0.0
        %vm797 = vcmp.gt.f32.partialorder %v737, 0.0
        %vm798 = vcmp.gt.f32.partialorder %v742, 0.0
        %vm799 = vcmp.gt.f32.partialorder %v745, 0.0
        %vm800 = vcmp.gt.f32.partialorder %v750, 0.0
        %vm801 = vcmp.gt.f32.partialorder %v753, 0.0
        %vm802 = vcmp.gt.f32.partialorder %v758, 0.0
        %vm803 = vcmp.gt.f32.partialorder %v761, 0.0
        %vm804 = vcmp.gt.f32.partialorder %v766, 0.0
        %vm805 = vcmp.gt.f32.partialorder %v769, 0.0
        %vm806 = vcmp.gt.f32.partialorder %v774, 0.0
        %vm807 = vcmp.gt.f32.partialorder %v777, 0.0
        %vm808 = vcmp.gt.f32.partialorder %v782, 0.0
        %vm809 = vcmp.gt.f32.partialorder %v785, 0.0
        %vm810 = vcmp.gt.f32.partialorder %v790, 0.0
        %vm811 = vcmp.gt.f32.partialorder %v793, 0.0
        %v812 = vmul.f32 %v734, 0.5
        %v813 = vmul.f32 %v737, 0.5
        %v814 = vmul.f32 %v742, 0.5
        %v815 = vmul.f32 %v745, 0.5
        %v816 = vmul.f32 %v750, 0.5
        %v817 = vmul.f32 %v753, 0.5
        %v818 = vmul.f32 %v758, 0.5
        %v819 = vmul.f32 %v761, 0.5
        %v820 = vmul.f32 %v766, 0.5
        %v821 = vmul.f32 %v769, 0.5
        %v822 = vmul.f32 %v774, 0.5
        %v823 = vmul.f32 %v777, 0.5
        %v824 = vmul.f32 %v782, 0.5
        %v825 = vmul.f32 %v785, 0.5
        %v826 = vmul.f32 %v790, 0.5
        %v827 = vmul.f32 %v793, 0.5
        %v828 = vmul.f32 %v734, 0.33333334
        %v829 = vmul.f32 %v737, 0.33333334
        %v830 = vmul.f32 %v742, 0.33333334
        %v831 = vmul.f32 %v745, 0.33333334
        %v832 = vmul.f32 %v750, 0.33333334
        %v833 = vmul.f32 %v753, 0.33333334
        %v834 = vmul.f32 %v758, 0.33333334
        %v835 = vmul.f32 %v761, 0.33333334
        %v836 = vmul.f32 %v766, 0.33333334
        %v837 = vmul.f32 %v769, 0.33333334
        %v838 = vmul.f32 %v774, 0.33333334
        %v839 = vmul.f32 %v777, 0.33333334
        %v840 = vmul.f32 %v782, 0.33333334
        %v841 = vmul.f32 %v785, 0.33333334
        %v842 = vmul.f32 %v790, 0.33333334
        %v843 = vmul.f32 %v793, 0.33333334
        %v844 = vadd.f32 %v828, 1.0
        %v845 = vadd.f32 %v829, 1.0
        %v846 = vadd.f32 %v830, 1.0
        %v847 = vadd.f32 %v831, 1.0
        %v848 = vadd.f32 %v832, 1.0
        %v849 = vadd.f32 %v833, 1.0
        %v850 = vadd.f32 %v834, 1.0
        %v851 = vadd.f32 %v835, 1.0
        %v852 = vadd.f32 %v836, 1.0
        %v853 = vadd.f32 %v837, 1.0
        %v854 = vadd.f32 %v838, 1.0
        %v855 = vadd.f32 %v839, 1.0
        %v856 = vadd.f32 %v840, 1.0
        %v857 = vadd.f32 %v841, 1.0
        %v858 = vadd.f32 %v842, 1.0
        %v859 = vadd.f32 %v843, 1.0
        %v860 = vmul.f32 %v812, %v844
        %v861 = vmul.f32 %v813, %v845
        %v862 = vmul.f32 %v814, %v846
        %v863 = vmul.f32 %v815, %v847
        %v864 = vmul.f32 %v816, %v848
        %v865 = vmul.f32 %v817, %v849
        %v866 = vmul.f32 %v818, %v850
        %v867 = vmul.f32 %v819, %v851
        %v868 = vmul.f32 %v820, %v852
        %v869 = vmul.f32 %v821, %v853
        %v870 = vmul.f32 %v822, %v854
        %v871 = vmul.f32 %v823, %v855
        %v872 = vmul.f32 %v824, %v856
        %v873 = vmul.f32 %v825, %v857
        %v874 = vmul.f32 %v826, %v858
        %v875 = vmul.f32 %v827, %v859
        %v876 = vadd.f32 %v860, 1.0
        %v877 = vadd.f32 %v861, 1.0
        %v878 = vadd.f32 %v862, 1.0
        %v879 = vadd.f32 %v863, 1.0
        %v880 = vadd.f32 %v864, 1.0
        %v881 = vadd.f32 %v865, 1.0
        %v882 = vadd.f32 %v866, 1.0
        %v883 = vadd.f32 %v867, 1.0
        %v884 = vadd.f32 %v868, 1.0
        %v885 = vadd.f32 %v869, 1.0
        %v886 = vadd.f32 %v870, 1.0
        %v887 = vadd.f32 %v871, 1.0
        %v888 = vadd.f32 %v872, 1.0
        %v889 = vadd.f32 %v873, 1.0
        %v890 = vadd.f32 %v874, 1.0
        %v891 = vadd.f32 %v875, 1.0
        %v892 = vmul.f32 %v734, %v876
        %v893 = vmul.f32 %v737, %v877
        %v894 = vmul.f32 %v742, %v878
        %v895 = vmul.f32 %v745, %v879
        %v896 = vmul.f32 %v750, %v880
        %v897 = vmul.f32 %v753, %v881
        %v898 = vmul.f32 %v758, %v882
        %v899 = vmul.f32 %v761, %v883
        %v900 = vmul.f32 %v766, %v884
        %v901 = vmul.f32 %v769, %v885
        %v902 = vmul.f32 %v774, %v886
        %v903 = vmul.f32 %v777, %v887
        %v904 = vmul.f32 %v782, %v888
        %v905 = vmul.f32 %v785, %v889
        %v906 = vmul.f32 %v790, %v890
        %v907 = vmul.f32 %v793, %v891
        %v908 = vand.u32 2147483647, %v734
        %v909 = vand.u32 2147483647, %v737
        %v910 = vand.u32 2147483647, %v742
        %v911 = vand.u32 2147483647, %v745
        %v912 = vand.u32 2147483647, %v750
        %v913 = vand.u32 2147483647, %v753
        %v914 = vand.u32 2147483647, %v758
        %v915 = vand.u32 2147483647, %v761
        %v916 = vand.u32 2147483647, %v766
        %v917 = vand.u32 2147483647, %v769
        %v918 = vand.u32 2147483647, %v774
        %v919 = vand.u32 2147483647, %v777
        %v920 = vand.u32 2147483647, %v782
        %v921 = vand.u32 2147483647, %v785
        %v922 = vand.u32 2147483647, %v790
        %v923 = vand.u32 2147483647, %v793
        %vm924 = vcmp.lt.f32.partialorder %v908, 0.2
        %vm925 = vcmp.lt.f32.partialorder %v909, 0.2
        %vm926 = vcmp.lt.f32.partialorder %v910, 0.2
        %vm927 = vcmp.lt.f32.partialorder %v911, 0.2
        %vm928 = vcmp.lt.f32.partialorder %v912, 0.2
        %vm929 = vcmp.lt.f32.partialorder %v913, 0.2
        %vm930 = vcmp.lt.f32.partialorder %v914, 0.2
        %vm931 = vcmp.lt.f32.partialorder %v915, 0.2
        %vm932 = vcmp.lt.f32.partialorder %v916, 0.2
        %vm933 = vcmp.lt.f32.partialorder %v917, 0.2
        %vm934 = vcmp.lt.f32.partialorder %v918, 0.2
        %vm935 = vcmp.lt.f32.partialorder %v919, 0.2
        %vm936 = vcmp.lt.f32.partialorder %v920, 0.2
        %vm937 = vcmp.lt.f32.partialorder %v921, 0.2
        %vm938 = vcmp.lt.f32.partialorder %v922, 0.2
        %vm939 = vcmp.lt.f32.partialorder %v923, 0.2
        %v940 = vmul.f32 %v734, 1.442695
        %v941 = vpow.pop %v940
        %v942 = vmul.f32 %v737, 1.442695
        %v943 = vpow.pop %v942
        %v944 = vmul.f32 %v742, 1.442695
        %v945 = vpow.pop %v944
        %v946 = vmul.f32 %v745, 1.442695
        %v947 = vpow.pop %v946
        %v948 = vmul.f32 %v750, 1.442695
        %v949 = vpow.pop %v948
        %v950 = vmul.f32 %v753, 1.442695
        %v951 = vpow.pop %v950
        %v952 = vmul.f32 %v758, 1.442695
        %v953 = vpow.pop %v952
        %v954 = vmul.f32 %v761, 1.442695
        %v955 = vpow.pop %v954
        %v956 = vmul.f32 %v766, 1.442695
        %v957 = vpow.pop %v956
        %v958 = vmul.f32 %v769, 1.442695
        %v959 = vpow.pop %v958
        %v960 = vmul.f32 %v774, 1.442695
        %v961 = vpow.pop %v960
        %v962 = vmul.f32 %v777, 1.442695
        %v963 = vpow.pop %v962
        %v964 = vmul.f32 %v782, 1.442695
        %v965 = vpow.pop %v964
        %v966 = vmul.f32 %v785, 1.442695
        %v967 = vpow.pop %v966
        %v968 = vmul.f32 %v790, 1.442695
        %v969 = vpow.pop %v968
        %v970 = vmul.f32 %v793, 1.442695
        %v971 = vpow.pop %v970
        %v972 = vsub.f32 %v941, 1.0
        %v973 = vsub.f32 %v943, 1.0
        %v974 = vsub.f32 %v945, 1.0
        %v975 = vsub.f32 %v947, 1.0
        %v976 = vsub.f32 %v949, 1.0
        %v977 = vsub.f32 %v951, 1.0
        %v978 = vsub.f32 %v953, 1.0
        %v979 = vsub.f32 %v955, 1.0
        %v980 = vsub.f32 %v957, 1.0
        %v981 = vsub.f32 %v959, 1.0
        %v982 = vsub.f32 %v961, 1.0
        %v983 = vsub.f32 %v963, 1.0
        %v984 = vsub.f32 %v965, 1.0
        %v985 = vsub.f32 %v967, 1.0
        %v986 = vsub.f32 %v969, 1.0
        %v987 = vsub.f32 %v971, 1.0
        %v988 = vsel %vm924, %v892, %v972
        %v989 = vsel %vm925, %v893, %v973
        %v990 = vsel %vm926, %v894, %v974
        %v991 = vsel %vm927, %v895, %v975
        %v992 = vsel %vm928, %v896, %v976
        %v993 = vsel %vm929, %v897, %v977
        %v994 = vsel %vm930, %v898, %v978
        %v995 = vsel %vm931, %v899, %v979
        %v996 = vsel %vm932, %v900, %v980
        %v997 = vsel %vm933, %v901, %v981
        %v998 = vsel %vm934, %v902, %v982
        %v999 = vsel %vm935, %v903, %v983
        %v1000 = vsel %vm936, %v904, %v984
        %v1001 = vsel %vm937, %v905, %v985
        %v1002 = vsel %vm938, %v906, %v986
        %v1003 = vsel %vm939, %v907, %v987
        %v1004 = vsel %vm796, %v734, %v988
        %v1005 = vsel %vm797, %v737, %v989
        %v1006 = vsel %vm798, %v742, %v990
        %v1007 = vsel %vm799, %v745, %v991
        %v1008 = vsel %vm800, %v750, %v992
        %v1009 = vsel %vm801, %v753, %v993
        %v1010 = vsel %vm802, %v758, %v994
        %v1011 = vsel %vm803, %v761, %v995
        %v1012 = vsel %vm804, %v766, %v996
        %v1013 = vsel %vm805, %v769, %v997
        %v1014 = vsel %vm806, %v774, %v998
        %v1015 = vsel %vm807, %v777, %v999
        %v1016 = vsel %vm808, %v782, %v1000
        %v1017 = vsel %vm809, %v785, %v1001
        %v1018 = vsel %vm810, %v790, %v1002
        %v1019 = vsel %vm811, %v793, %v1003
        %v1020 = vld [vmem:[%s3] sm:$0xf]
        %v1021 = vld [vmem:[%s3 + $0x4] sm:$0xf]
        %v1022 = vld [vmem:[%s3 + $0x8] sm:$0xf]
        %v1023 = vld [vmem:[%s3 + $0xc] sm:$0xf]
        %v1024 = vld [vmem:[%s3 + $0x10] sm:$0xf]
        %v1025 = vld [vmem:[%s3 + $0x14] sm:$0xf]
        %v1026 = vld [vmem:[%s3 + $0x18] sm:$0xf]
        %v1027 = vld [vmem:[%s3 + $0x1c] sm:$0xf]
        %v1028 = vld [vmem:[%s3 + $0x20] sm:$0xf]
        %v1029 = vld [vmem:[%s3 + $0x24] sm:$0xf]
        %v1030 = vld [vmem:[%s3 + $0x28] sm:$0xf]
        %v1031 = vld [vmem:[%s3 + $0x2c] sm:$0xf]
        %v1032 = vld [vmem:[%s3 + $0x30] sm:$0xf]
        %v1033 = vld [vmem:[%s3 + $0x34] sm:$0xf]
        %v1034 = vld [vmem:[%s3 + $0x38] sm:$0xf]
        %v1035 = vld [vmem:[%s3 + $0x3c] sm:$0xf]
        %v1036 = vpack.c.bf16 %v1005, %v1004
        %v1037 = vpack.c.bf16 %v1007, %v1006
        %v1038 = vpack.c.bf16 %v1009, %v1008
        %v1039 = vpack.c.bf16 %v1011, %v1010
        %v1040 = vpack.c.bf16 %v1013, %v1012
        %v1041 = vpack.c.bf16 %v1015, %v1014
        %v1042 = vpack.c.bf16 %v1017, %v1016
        %v1043 = vpack.c.bf16 %v1019, %v1018
        %v1060 = vunpack.c.l.b16 %v1020
        %v1061 = vunpack.c.l.b16 %v1021
        %v1062 = vunpack.c.l.b16 %v1022
        %v1063 = vunpack.c.l.b16 %v1023
        %v1064 = vunpack.c.l.b16 %v1024
        %v1065 = vunpack.c.l.b16 %v1025
        %v1066 = vunpack.c.l.b16 %v1026
        %v1067 = vunpack.c.l.b16 %v1027
        %v1068 = vunpack.c.l.b16 %v1028
        %v1069 = vunpack.c.l.b16 %v1029
        %v1070 = vunpack.c.l.b16 %v1030
        %v1071 = vunpack.c.l.b16 %v1031
        %v1072 = vunpack.c.l.b16 %v1032
        %v1073 = vunpack.c.l.b16 %v1033
        %v1074 = vunpack.c.l.b16 %v1034
        %v1075 = vunpack.c.l.b16 %v1035
        %v1076 = vpack.c.b16 %v1061, %v1060
        %v1077 = vpack.c.b16 %v1063, %v1062
        %v1078 = vpack.c.b16 %v1065, %v1064
        %v1079 = vpack.c.b16 %v1067, %v1066
        %v1080 = vpack.c.b16 %v1069, %v1068
        %v1081 = vpack.c.b16 %v1071, %v1070
        %v1082 = vpack.c.b16 %v1073, %v1072
        %v1083 = vpack.c.b16 %v1075, %v1074
        %1092 = vmatprep.subr.bf16.mxu0 0
        %1093 = vmatpush1.bf16.msra.mxu0 %v1083
        %1094 = vmatprep.subr.bf16.mxu0 0
        %1095 = vmatpush1.bf16.msra.mxu0 %v1082
        %1096 = vmatprep.subr.bf16.mxu0 0
        %1097 = vmatpush1.bf16.msra.mxu0 %v1081
        %1098 = vmatprep.subr.bf16.mxu0 0
        %1099 = vmatpush1.bf16.msra.mxu0 %v1080
        %1100 = vmatprep.subr.bf16.mxu0 0
        %1101 = vmatpush1.bf16.msra.mxu0 %v1079
        %1102 = vmatprep.subr.bf16.mxu0 0
        %1103 = vmatpush1.bf16.msra.mxu0 %v1078
        %1104 = vmatprep.subr.bf16.mxu0 0
        %1105 = vmatpush1.bf16.msra.mxu0 %v1077
        %1106 = vmatprep.subr.bf16.mxu0 0
        %1107 = vmatpush1.bf16.msra.mxu0 %v1076
        %1108 = vmatprep.subr.bf16.mxu0 0
        %1109 = vmatpush2.bf16.msra.mxu0 0
        %1110 = vmatprep.subr.bf16.mxu0 0
        %1111 = vmatpush2.bf16.msra.mxu0 0
        %1112 = vmatprep.subr.bf16.mxu0 0
        %1113 = vmatpush2.bf16.msra.mxu0 0
        %1114 = vmatprep.subr.bf16.mxu0 0
        %1115 = vmatpush2.bf16.msra.mxu0 0
        %1116 = vmatprep.subr.bf16.mxu0 0
        %1117 = vmatpush2.bf16.msra.mxu0 0
        %1118 = vmatprep.subr.bf16.mxu0 0
        %1119 = vmatpush2.bf16.msra.mxu0 0
        %1120 = vmatprep.subr.bf16.mxu0 0
        %1121 = vmatpush2.bf16.msra.mxu0 0
        %1122 = vmatprep.subr.bf16.mxu0 0
        %1123 = vmatpush2.bf16.msra.mxu0 0
        %1124 = vmatprep.mubr.bf16.mxu0 0
        %1125 = vmatmul.mubr.bf16.gmra.mxu0 %v1036
        %v1126 = vpop.f32.mrf.mxu0
        %v1127 = vadd.f32 0.0, %v1126
        %v1128 = vpop.f32.mrf.mxu0
        %v1129 = vpop.f32.mrf.mxu0
        %v1130 = vadd.f32 0.0, %v1129
        %v1131 = vpop.f32.mrf.mxu0
        %1132 = vmatprep.mubr.bf16.mxu0 0
        %1133 = vmatmul.mubr.bf16.gmra.mxu0 %v1037
        %v1134 = vpop.f32.mrf.mxu0
        %v1135 = vadd.f32 0.0, %v1134
        %v1136 = vpop.f32.mrf.mxu0
        %v1137 = vpop.f32.mrf.mxu0
        %v1138 = vadd.f32 0.0, %v1137
        %v1139 = vpop.f32.mrf.mxu0
        %1140 = vmatprep.mubr.bf16.mxu0 0
        %1141 = vmatmul.mubr.bf16.gmra.mxu0 %v1038
        %v1142 = vpop.f32.mrf.mxu0
        %v1143 = vadd.f32 0.0, %v1142
        %v1144 = vpop.f32.mrf.mxu0
        %v1145 = vpop.f32.mrf.mxu0
        %v1146 = vadd.f32 0.0, %v1145
        %v1147 = vpop.f32.mrf.mxu0
        %1148 = vmatprep.mubr.bf16.mxu0 0
        %1149 = vmatmul.mubr.bf16.gmra.mxu0 %v1039
        %v1150 = vpop.f32.mrf.mxu0
        %v1151 = vadd.f32 0.0, %v1150
        %v1152 = vpop.f32.mrf.mxu0
        %v1153 = vpop.f32.mrf.mxu0
        %v1154 = vadd.f32 0.0, %v1153
        %v1155 = vpop.f32.mrf.mxu0
        %1156 = vmatprep.mubr.bf16.mxu0 0
        %1157 = vmatmul.mubr.bf16.gmra.mxu0 %v1040
        %v1158 = vpop.f32.mrf.mxu0
        %v1159 = vadd.f32 0.0, %v1158
        %v1160 = vpop.f32.mrf.mxu0
        %v1161 = vpop.f32.mrf.mxu0
        %v1162 = vadd.f32 0.0, %v1161
        %v1163 = vpop.f32.mrf.mxu0
        %1164 = vmatprep.mubr.bf16.mxu0 0
        %1165 = vmatmul.mubr.bf16.gmra.mxu0 %v1041
        %v1166 = vpop.f32.mrf.mxu0
        %v1167 = vadd.f32 0.0, %v1166
        %v1168 = vpop.f32.mrf.mxu0
        %v1169 = vpop.f32.mrf.mxu0
        %v1170 = vadd.f32 0.0, %v1169
        %v1171 = vpop.f32.mrf.mxu0
        %1172 = vmatprep.mubr.bf16.mxu0 0
        %1173 = vmatmul.mubr.bf16.gmra.mxu0 %v1042
        %v1174 = vpop.f32.mrf.mxu0
        %v1175 = vadd.f32 0.0, %v1174
        %v1176 = vpop.f32.mrf.mxu0
        %v1177 = vpop.f32.mrf.mxu0
        %v1178 = vadd.f32 0.0, %v1177
        %v1179 = vpop.f32.mrf.mxu0
        %1180 = vmatprep.mubr.bf16.mxu0 0
        %1181 = vmatmul.mubr.bf16.gmra.mxu0 %v1043
        %v1182 = vpop.f32.mrf.mxu0
        %v1183 = vadd.f32 0.0, %v1182
        %v1184 = vpop.f32.mrf.mxu0
        %v1185 = vpop.f32.mrf.mxu0
        %v1186 = vadd.f32 0.0, %v1185
        %v1187 = vpop.f32.mrf.mxu0
        %1188 = vdwg.mxu0
        %vm1189 = vcmp.gt.f32.partialorder %v1127, 0.0
        %vm1190 = vcmp.gt.f32.partialorder %v1130, 0.0
        %vm1191 = vcmp.gt.f32.partialorder %v1135, 0.0
        %vm1192 = vcmp.gt.f32.partialorder %v1138, 0.0
        %vm1193 = vcmp.gt.f32.partialorder %v1143, 0.0
        %vm1194 = vcmp.gt.f32.partialorder %v1146, 0.0
        %vm1195 = vcmp.gt.f32.partialorder %v1151, 0.0
        %vm1196 = vcmp.gt.f32.partialorder %v1154, 0.0
        %vm1197 = vcmp.gt.f32.partialorder %v1159, 0.0
        %vm1198 = vcmp.gt.f32.partialorder %v1162, 0.0
        %vm1199 = vcmp.gt.f32.partialorder %v1167, 0.0
        %vm1200 = vcmp.gt.f32.partialorder %v1170, 0.0
        %vm1201 = vcmp.gt.f32.partialorder %v1175, 0.0
        %vm1202 = vcmp.gt.f32.partialorder %v1178, 0.0
        %vm1203 = vcmp.gt.f32.partialorder %v1183, 0.0
        %vm1204 = vcmp.gt.f32.partialorder %v1186, 0.0
        %v1205 = vmul.f32 %v1127, 0.5
        %v1206 = vmul.f32 %v1130, 0.5
        %v1207 = vmul.f32 %v1135, 0.5
        %v1208 = vmul.f32 %v1138, 0.5
        %v1209 = vmul.f32 %v1143, 0.5
        %v1210 = vmul.f32 %v1146, 0.5
        %v1211 = vmul.f32 %v1151, 0.5
        %v1212 = vmul.f32 %v1154, 0.5
        %v1213 = vmul.f32 %v1159, 0.5
        %v1214 = vmul.f32 %v1162, 0.5
        %v1215 = vmul.f32 %v1167, 0.5
        %v1216 = vmul.f32 %v1170, 0.5
        %v1217 = vmul.f32 %v1175, 0.5
        %v1218 = vmul.f32 %v1178, 0.5
        %v1219 = vmul.f32 %v1183, 0.5
        %v1220 = vmul.f32 %v1186, 0.5
        %v1221 = vmul.f32 %v1127, 0.33333334
        %v1222 = vmul.f32 %v1130, 0.33333334
        %v1223 = vmul.f32 %v1135, 0.33333334
        %v1224 = vmul.f32 %v1138, 0.33333334
        %v1225 = vmul.f32 %v1143, 0.33333334
        %v1226 = vmul.f32 %v1146, 0.33333334
        %v1227 = vmul.f32 %v1151, 0.33333334
        %v1228 = vmul.f32 %v1154, 0.33333334
        %v1229 = vmul.f32 %v1159, 0.33333334
        %v1230 = vmul.f32 %v1162, 0.33333334
        %v1231 = vmul.f32 %v1167, 0.33333334
        %v1232 = vmul.f32 %v1170, 0.33333334
        %v1233 = vmul.f32 %v1175, 0.33333334
        %v1234 = vmul.f32 %v1178, 0.33333334
        %v1235 = vmul.f32 %v1183, 0.33333334
        %v1236 = vmul.f32 %v1186, 0.33333334
        %v1237 = vadd.f32 %v1221, 1.0
        %v1238 = vadd.f32 %v1222, 1.0
        %v1239 = vadd.f32 %v1223, 1.0
        %v1240 = vadd.f32 %v1224, 1.0
        %v1241 = vadd.f32 %v1225, 1.0
        %v1242 = vadd.f32 %v1226, 1.0
        %v1243 = vadd.f32 %v1227, 1.0
        %v1244 = vadd.f32 %v1228, 1.0
        %v1245 = vadd.f32 %v1229, 1.0
        %v1246 = vadd.f32 %v1230, 1.0
        %v1247 = vadd.f32 %v1231, 1.0
        %v1248 = vadd.f32 %v1232, 1.0
        %v1249 = vadd.f32 %v1233, 1.0
        %v1250 = vadd.f32 %v1234, 1.0
        %v1251 = vadd.f32 %v1235, 1.0
        %v1252 = vadd.f32 %v1236, 1.0
        %v1253 = vmul.f32 %v1205, %v1237
        %v1254 = vmul.f32 %v1206, %v1238
        %v1255 = vmul.f32 %v1207, %v1239
        %v1256 = vmul.f32 %v1208, %v1240
        %v1257 = vmul.f32 %v1209, %v1241
        %v1258 = vmul.f32 %v1210, %v1242
        %v1259 = vmul.f32 %v1211, %v1243
        %v1260 = vmul.f32 %v1212, %v1244
        %v1261 = vmul.f32 %v1213, %v1245
        %v1262 = vmul.f32 %v1214, %v1246
        %v1263 = vmul.f32 %v1215, %v1247
        %v1264 = vmul.f32 %v1216, %v1248
        %v1265 = vmul.f32 %v1217, %v1249
        %v1266 = vmul.f32 %v1218, %v1250
        %v1267 = vmul.f32 %v1219, %v1251
        %v1268 = vmul.f32 %v1220, %v1252
        %v1269 = vadd.f32 %v1253, 1.0
        %v1270 = vadd.f32 %v1254, 1.0
        %v1271 = vadd.f32 %v1255, 1.0
        %v1272 = vadd.f32 %v1256, 1.0
        %v1273 = vadd.f32 %v1257, 1.0
        %v1274 = vadd.f32 %v1258, 1.0
        %v1275 = vadd.f32 %v1259, 1.0
        %v1276 = vadd.f32 %v1260, 1.0
        %v1277 = vadd.f32 %v1261, 1.0
        %v1278 = vadd.f32 %v1262, 1.0
        %v1279 = vadd.f32 %v1263, 1.0
        %v1280 = vadd.f32 %v1264, 1.0
        %v1281 = vadd.f32 %v1265, 1.0
        %v1282 = vadd.f32 %v1266, 1.0
        %v1283 = vadd.f32 %v1267, 1.0
        %v1284 = vadd.f32 %v1268, 1.0
        %v1285 = vmul.f32 %v1127, %v1269
        %v1286 = vmul.f32 %v1130, %v1270
        %v1287 = vmul.f32 %v1135, %v1271
        %v1288 = vmul.f32 %v1138, %v1272
        %v1289 = vmul.f32 %v1143, %v1273
        %v1290 = vmul.f32 %v1146, %v1274
        %v1291 = vmul.f32 %v1151, %v1275
        %v1292 = vmul.f32 %v1154, %v1276
        %v1293 = vmul.f32 %v1159, %v1277
        %v1294 = vmul.f32 %v1162, %v1278
        %v1295 = vmul.f32 %v1167, %v1279
        %v1296 = vmul.f32 %v1170, %v1280
        %v1297 = vmul.f32 %v1175, %v1281
        %v1298 = vmul.f32 %v1178, %v1282
        %v1299 = vmul.f32 %v1183, %v1283
        %v1300 = vmul.f32 %v1186, %v1284
        %v1301 = vand.u32 2147483647, %v1127
        %v1302 = vand.u32 2147483647, %v1130
        %v1303 = vand.u32 2147483647, %v1135
        %v1304 = vand.u32 2147483647, %v1138
        %v1305 = vand.u32 2147483647, %v1143
        %v1306 = vand.u32 2147483647, %v1146
        %v1307 = vand.u32 2147483647, %v1151
        %v1308 = vand.u32 2147483647, %v1154
        %v1309 = vand.u32 2147483647, %v1159
        %v1310 = vand.u32 2147483647, %v1162
        %v1311 = vand.u32 2147483647, %v1167
        %v1312 = vand.u32 2147483647, %v1170
        %v1313 = vand.u32 2147483647, %v1175
        %v1314 = vand.u32 2147483647, %v1178
        %v1315 = vand.u32 2147483647, %v1183
        %v1316 = vand.u32 2147483647, %v1186
        %vm1317 = vcmp.lt.f32.partialorder %v1301, 0.2
        %vm1318 = vcmp.lt.f32.partialorder %v1302, 0.2
        %vm1319 = vcmp.lt.f32.partialorder %v1303, 0.2
        %vm1320 = vcmp.lt.f32.partialorder %v1304, 0.2
        %vm1321 = vcmp.lt.f32.partialorder %v1305, 0.2
        %vm1322 = vcmp.lt.f32.partialorder %v1306, 0.2
        %vm1323 = vcmp.lt.f32.partialorder %v1307, 0.2
        %vm1324 = vcmp.lt.f32.partialorder %v1308, 0.2
        %vm1325 = vcmp.lt.f32.partialorder %v1309, 0.2
        %vm1326 = vcmp.lt.f32.partialorder %v1310, 0.2
        %vm1327 = vcmp.lt.f32.partialorder %v1311, 0.2
        %vm1328 = vcmp.lt.f32.partialorder %v1312, 0.2
        %vm1329 = vcmp.lt.f32.partialorder %v1313, 0.2
        %vm1330 = vcmp.lt.f32.partialorder %v1314, 0.2
        %vm1331 = vcmp.lt.f32.partialorder %v1315, 0.2
        %vm1332 = vcmp.lt.f32.partialorder %v1316, 0.2
        %v1333 = vmul.f32 %v1127, 1.442695
        %v1334 = vpow.pop %v1333
        %v1335 = vmul.f32 %v1130, 1.442695
        %v1336 = vpow.pop %v1335
        %v1337 = vmul.f32 %v1135, 1.442695
        %v1338 = vpow.pop %v1337
        %v1339 = vmul.f32 %v1138, 1.442695
        %v1340 = vpow.pop %v1339
        %v1341 = vmul.f32 %v1143, 1.442695
        %v1342 = vpow.pop %v1341
        %v1343 = vmul.f32 %v1146, 1.442695
        %v1344 = vpow.pop %v1343
        %v1345 = vmul.f32 %v1151, 1.442695
        %v1346 = vpow.pop %v1345
        %v1347 = vmul.f32 %v1154, 1.442695
        %v1348 = vpow.pop %v1347
        %v1349 = vmul.f32 %v1159, 1.442695
        %v1350 = vpow.pop %v1349
        %v1351 = vmul.f32 %v1162, 1.442695
        %v1352 = vpow.pop %v1351
        %v1353 = vmul.f32 %v1167, 1.442695
        %v1354 = vpow.pop %v1353
        %v1355 = vmul.f32 %v1170, 1.442695
        %v1356 = vpow.pop %v1355
        %v1357 = vmul.f32 %v1175, 1.442695
        %v1358 = vpow.pop %v1357
        %v1359 = vmul.f32 %v1178, 1.442695
        %v1360 = vpow.pop %v1359
        %v1361 = vmul.f32 %v1183, 1.442695
        %v1362 = vpow.pop %v1361
        %v1363 = vmul.f32 %v1186, 1.442695
        %v1364 = vpow.pop %v1363
        %v1365 = vsub.f32 %v1334, 1.0
        %v1366 = vsub.f32 %v1336, 1.0
        %v1367 = vsub.f32 %v1338, 1.0
        %v1368 = vsub.f32 %v1340, 1.0
        %v1369 = vsub.f32 %v1342, 1.0
        %v1370 = vsub.f32 %v1344, 1.0
        %v1371 = vsub.f32 %v1346, 1.0
        %v1372 = vsub.f32 %v1348, 1.0
        %v1373 = vsub.f32 %v1350, 1.0
        %v1374 = vsub.f32 %v1352, 1.0
        %v1375 = vsub.f32 %v1354, 1.0
        %v1376 = vsub.f32 %v1356, 1.0
        %v1377 = vsub.f32 %v1358, 1.0
        %v1378 = vsub.f32 %v1360, 1.0
        %v1379 = vsub.f32 %v1362, 1.0
        %v1380 = vsub.f32 %v1364, 1.0
        %v1381 = vsel %vm1317, %v1285, %v1365
        %v1382 = vsel %vm1318, %v1286, %v1366
        %v1383 = vsel %vm1319, %v1287, %v1367
        %v1384 = vsel %vm1320, %v1288, %v1368
        %v1385 = vsel %vm1321, %v1289, %v1369
        %v1386 = vsel %vm1322, %v1290, %v1370
        %v1387 = vsel %vm1323, %v1291, %v1371
        %v1388 = vsel %vm1324, %v1292, %v1372
        %v1389 = vsel %vm1325, %v1293, %v1373
        %v1390 = vsel %vm1326, %v1294, %v1374
        %v1391 = vsel %vm1327, %v1295, %v1375
        %v1392 = vsel %vm1328, %v1296, %v1376
        %v1393 = vsel %vm1329, %v1297, %v1377
        %v1394 = vsel %vm1330, %v1298, %v1378
        %v1395 = vsel %vm1331, %v1299, %v1379
        %v1396 = vsel %vm1332, %v1300, %v1380
        %v1397 = vsel %vm1189, %v1127, %v1381
        %v1398 = vsel %vm1190, %v1130, %v1382
        %v1399 = vsel %vm1191, %v1135, %v1383
        %v1400 = vsel %vm1192, %v1138, %v1384
        %v1401 = vsel %vm1193, %v1143, %v1385
        %v1402 = vsel %vm1194, %v1146, %v1386
        %v1403 = vsel %vm1195, %v1151, %v1387
        %v1404 = vsel %vm1196, %v1154, %v1388
        %v1405 = vsel %vm1197, %v1159, %v1389
        %v1406 = vsel %vm1198, %v1162, %v1390
        %v1407 = vsel %vm1199, %v1167, %v1391
        %v1408 = vsel %vm1200, %v1170, %v1392
        %v1409 = vsel %vm1201, %v1175, %v1393
        %v1410 = vsel %vm1202, %v1178, %v1394
        %v1411 = vsel %vm1203, %v1183, %v1395
        %v1412 = vsel %vm1204, %v1186, %v1396
        %v1413 = vld [vmem:[%s4] sm:$0xf]
        %v1414 = vld [vmem:[%s4 + $0x4] sm:$0xf]
        %v1415 = vld [vmem:[%s4 + $0x8] sm:$0xf]
        %v1416 = vld [vmem:[%s4 + $0xc] sm:$0xf]
        %v1417 = vld [vmem:[%s4 + $0x10] sm:$0xf]
        %v1418 = vld [vmem:[%s4 + $0x14] sm:$0xf]
        %v1419 = vld [vmem:[%s4 + $0x18] sm:$0xf]
        %v1420 = vld [vmem:[%s4 + $0x1c] sm:$0xf]
        %v1421 = vld [vmem:[%s4 + $0x20] sm:$0xf]
        %v1422 = vld [vmem:[%s4 + $0x24] sm:$0xf]
        %v1423 = vld [vmem:[%s4 + $0x28] sm:$0xf]
        %v1424 = vld [vmem:[%s4 + $0x2c] sm:$0xf]
        %v1425 = vld [vmem:[%s4 + $0x30] sm:$0xf]
        %v1426 = vld [vmem:[%s4 + $0x34] sm:$0xf]
        %v1427 = vld [vmem:[%s4 + $0x38] sm:$0xf]
        %v1428 = vld [vmem:[%s4 + $0x3c] sm:$0xf]
        %v1429 = vpack.c.bf16 %v1398, %v1397
        %v1430 = vpack.c.bf16 %v1400, %v1399
        %v1431 = vpack.c.bf16 %v1402, %v1401
        %v1432 = vpack.c.bf16 %v1404, %v1403
        %v1433 = vpack.c.bf16 %v1406, %v1405
        %v1434 = vpack.c.bf16 %v1408, %v1407
        %v1435 = vpack.c.bf16 %v1410, %v1409
        %v1436 = vpack.c.bf16 %v1412, %v1411
        %v1453 = vunpack.c.l.b16 %v1413
        %v1454 = vunpack.c.l.b16 %v1414
        %v1455 = vunpack.c.l.b16 %v1415
        %v1456 = vunpack.c.l.b16 %v1416
        %v1457 = vunpack.c.l.b16 %v1417
        %v1458 = vunpack.c.l.b16 %v1418
        %v1459 = vunpack.c.l.b16 %v1419
        %v1460 = vunpack.c.l.b16 %v1420
        %v1461 = vunpack.c.l.b16 %v1421
        %v1462 = vunpack.c.l.b16 %v1422
        %v1463 = vunpack.c.l.b16 %v1423
        %v1464 = vunpack.c.l.b16 %v1424
        %v1465 = vunpack.c.l.b16 %v1425
        %v1466 = vunpack.c.l.b16 %v1426
        %v1467 = vunpack.c.l.b16 %v1427
        %v1468 = vunpack.c.l.b16 %v1428
        %v1469 = vpack.c.b16 %v1454, %v1453
        %v1470 = vpack.c.b16 %v1456, %v1455
        %v1471 = vpack.c.b16 %v1458, %v1457
        %v1472 = vpack.c.b16 %v1460, %v1459
        %v1473 = vpack.c.b16 %v1462, %v1461
        %v1474 = vpack.c.b16 %v1464, %v1463
        %v1475 = vpack.c.b16 %v1466, %v1465
        %v1476 = vpack.c.b16 %v1468, %v1467
        %1485 = vxpose.xlu0.c.b16.start [1/8] %v1469, 128
        %1486 = vxpose.xlu0.c.b16.cont [2/8] %v1470, 128
        %1487 = vxpose.xlu0.c.b16.cont [3/8] %v1471, 128
        %1488 = vxpose.xlu0.c.b16.cont [4/8] %v1472, 128
        %1489 = vxpose.xlu0.c.b16.cont [5/8] %v1473, 128
        %1490 = vxpose.xlu0.c.b16.cont [6/8] %v1474, 128
        %1491 = vxpose.xlu0.c.b16.cont [7/8] %v1475, 128
        %1492 = vxpose.xlu0.c.b16.end [8/8] %v1476, 128
        %v1493 = vpop.trf.xlu0
        %v1494 = vpop.trf.xlu0
        %v1495 = vpop.trf.xlu0
        %v1496 = vpop.trf.xlu0
        %v1497 = vpop.trf.xlu0
        %v1498 = vpop.trf.xlu0
        %v1499 = vpop.trf.xlu0
        %v1500 = vpop.trf.xlu0
        %1501 = vmatprep.subr.bf16.mxu0 0
        %1502 = vmatpush1.bf16.xpose.msra.mxu0 %v1436
        %1503 = vmatprep.subr.bf16.mxu0 0
        %1504 = vmatpush1.bf16.xpose.msra.mxu0 %v1435
        %1505 = vmatprep.subr.bf16.mxu0 0
        %1506 = vmatpush1.bf16.xpose.msra.mxu0 %v1434
        %1507 = vmatprep.subr.bf16.mxu0 0
        %1508 = vmatpush1.bf16.xpose.msra.mxu0 %v1433
        %1509 = vmatprep.subr.bf16.mxu0 0
        %1510 = vmatpush1.bf16.xpose.msra.mxu0 %v1432
        %1511 = vmatprep.subr.bf16.mxu0 0
        %1512 = vmatpush1.bf16.xpose.msra.mxu0 %v1431
        %1513 = vmatprep.subr.bf16.mxu0 0
        %1514 = vmatpush1.bf16.xpose.msra.mxu0 %v1430
        %1515 = vmatprep.subr.bf16.mxu0 0
        %1516 = vmatpush1.bf16.xpose.msra.mxu0 %v1429
        %1517 = vmatprep.subr.bf16.mxu0 0
        %1518 = vmatpush2.bf16.xpose.msra.mxu0 0
        %1519 = vmatprep.subr.bf16.mxu0 0
        %1520 = vmatpush2.bf16.xpose.msra.mxu0 0
        %1521 = vmatprep.subr.bf16.mxu0 0
        %1522 = vmatpush2.bf16.xpose.msra.mxu0 0
        %1523 = vmatprep.subr.bf16.mxu0 0
        %1524 = vmatpush2.bf16.xpose.msra.mxu0 0
        %1525 = vmatprep.subr.bf16.mxu0 0
        %1526 = vmatpush2.bf16.xpose.msra.mxu0 0
        %1527 = vmatprep.subr.bf16.mxu0 0
        %1528 = vmatpush2.bf16.xpose.msra.mxu0 0
        %1529 = vmatprep.subr.bf16.mxu0 0
        %1530 = vmatpush2.bf16.xpose.msra.mxu0 0
        %1531 = vmatprep.subr.bf16.mxu0 0
        %1532 = vmatpush2.bf16.xpose.msra.mxu0 0
        %1533 = vmatprep.mubr.bf16.mxu0 0
        %1534 = vmatmul.mubr.bf16.gmra.mxu0 %v1493
        %v1535 = vpop.f32.mrf.mxu0
        %v1536 = vadd.f32 0.0, %v1535
        %v1537 = vpop.f32.mrf.mxu0
        %v1538 = vpop.f32.mrf.mxu0
        %v1539 = vpop.f32.mrf.mxu0
        %1540 = vdwg.mxu0
        %v1541 = vmul.f32 %v1536, 0.0078125
        %vm1542 = vcmp.gt.f32.partialorder %v1541, 0.0
        %v1543 = vmul.f32 %v1541, 0.5
        %v1544 = vmul.f32 %v1541, 0.33333334
        %v1545 = vadd.f32 %v1544, 1.0
        %v1546 = vmul.f32 %v1543, %v1545
        %v1547 = vadd.f32 %v1546, 1.0
        %v1548 = vmul.f32 %v1541, %v1547
        %v1549 = vand.u32 2147483647, %v1541
        %vm1550 = vcmp.lt.f32.partialorder %v1549, 0.2
        %v1551 = vmul.f32 %v1541, 1.442695
        %v1552 = vpow.pop %v1551
        %v1553 = vsub.f32 %v1552, 1.0
        %v1554 = vsel %vm1550, %v1548, %v1553
        %v1555 = vsel %vm1542, %v1541, %v1554
        %1556 = vst [vmem:[%s217] sm:$0x1] %v1555
        %s1557 = sand.u32 %s137, 1
        %s1558 = scalar_lea.sflag [#allocation3], %s1557
        %s1559 = sand.u32 %s137, 1
        %s1560 = scalar_lea.vmem [#allocation2], %s1559
        // Predicated region
        $region41: #{tpu_custom_call.1} parent=39 // pred_check
          %p1561 = pneg %p147
        $region42: #{tpu_custom_call.1} parent=39 // pred_check_branch
          %1563 = sbr.rel (%p1561) target = $region44
        $region43: #{tpu_custom_call.1} parent=39 // pred_region
          %s1565 = ssub.s32 16, 16
          %1566 = vsyncadd %s1558, %s1565
          %s1567 = smul.addr %s19, 16
          %s1568 = scalar_lea.hbm %s5, %s1567
          %s1570 = sshll.u32 %s1560, 4
          %s1571 = int_to_ptr.vmem [resolvable:$true] %s1570
          %1573 = dma.vmem_to_hbm [thread:$0]  %s1571, 16, %s1568, %s1558
        $region44: #{tpu_custom_call.1} parent=39 // pred_fallthru
          _
      $region40: #{tpu_custom_call.1} parent=5 // pred_fallthru
        _
      %p1574 = scmp.le.s32.totalorder 2, %s14
      // Predicated region
      $region45: #{tpu_custom_call.1} parent=5 // pred_check
        %p1575 = pneg %p1574
      $region46: #{tpu_custom_call.1} parent=5 // pred_check_branch
        %1577 = sbr.rel (%p1575) target = $region48
      $region47: #{tpu_custom_call.1} parent=5 // pred_region
        %s1578 = ssub.s32 %s14, 2
        // Predicated region
        $region49: #{tpu_custom_call.1} parent=47 // pred_check
          %p1579 = pneg %p153
        $region50: #{tpu_custom_call.1} parent=47 // pred_check_branch
          %1581 = sbr.rel (%p1579) target = $region52
        $region51: #{tpu_custom_call.1} parent=47 // pred_region
          %s1582 = sand.u32 %s138, 1
          %s1583 = scalar_lea.sflag [#allocation3], %s1582
          %s1584 = sand.u32 %s138, 1
          %s1585 = scalar_lea.vmem [#allocation2], %s1584
          %1586 = dma.done %s1583, 16
        $region52: #{tpu_custom_call.1} parent=47 // pred_fallthru
          _
      $region48: #{tpu_custom_call.1} parent=5 // pred_fallthru
        _
    $region6: #{tpu_custom_call.1} parent=1 // loop_footer
      %s18 = sadd.s32 1, %s14
    $region7: #{tpu_custom_call.1} parent=1 // loop_footer_branch
      %13 = sbr.rel target = $region3
    $region8: #{tpu_custom_call.1} parent=1 // loop_exit
      _
    %1587 = vsyncpa [#allocation3], 1
    %s1588 = scalar_lea.sflag [#allocation3], 1
    %1589 = vsyncpa %s1588, 1

</llo_original>
